<compile_context>
chip_gen: v7x
topology: tpu7x:2x2x1
jax: 0.10.0
libtpu: 0.0.40
codegen_flags: <defaults>
</compile_context>

<pallas_src>
import math
import functools

import jax
import jax.numpy as jnp
from jax.experimental import pallas as pl
from jax.experimental.pallas import tpu as pltpu

# ---- small compat shims across jax versions (names only; semantics identical) ----
_CompilerParams = getattr(pltpu, "CompilerParams", None) or getattr(pltpu, "TPUCompilerParams", None)
_MemSpace = getattr(pltpu, "MemorySpace", None) or getattr(pltpu, "TPUMemorySpace", None)


def _squeezed_dim():
    # pl.Squeezed() keeps the kernel view a clean lane-dense (N, D) slab.
    return pl.Squeezed() if hasattr(pl, "Squeezed") else None


def _attention_block_kernel(
    x_ref,               # (N, D)   f32   (batch dim squeezed)
    g1_ref, b1_ref,      # (1, D)   f32   block LayerNorm (eps=1e-6)
    wqkv_ref, bqkv_ref,  # (D, 3D) compute_dtype, (1, 3D) f32  (q part pre-scaled)
    wo_ref, bo_ref,      # (D, D)  compute_dtype, (1, D)  f32  attn out_proj
    g2_ref, b2_ref,      # (1, D)   f32   adapter LayerNorm (eps=1e-5)
    wd_ref, bd_ref,      # (D, Ddp) compute_dtype, (1, Ddp) f32 adapter down_proj (padded)
    wu_ref, bu_ref,      # (Ddp, D) compute_dtype, (1, D)  f32  adapter up_proj   (padded)
    o_ref,               # (N, D)   f32
    *,
    num_heads: int,
    kv_tile: int,
    compute_dtype,
    exact_softmax: bool,
):
    x = x_ref[...]                     # (N, D) f32
    N, D = x.shape
    H = num_heads
    hd = D // H

    # ---- block LayerNorm (eps = 1e-6, elementwise affine), f32 ----
    mu = jnp.mean(x, axis=-1, keepdims=True)
    var = jnp.mean((x - mu) * (x - mu), axis=-1, keepdims=True)
    xn = (x - mu) * jax.lax.rsqrt(var + 1e-6) * g1_ref[...] + b1_ref[...]     # (N, D)

    # ---- fused QKV projection: one wide MXU matmul (1/sqrt(hd) folded into Wq/bq) ----
    qkv = jnp.dot(xn.astype(compute_dtype), wqkv_ref[...],
                  preferred_element_type=jnp.float32) + bqkv_ref[...]         # (N, 3D) f32

    # cast BEFORE the head relayout (halves relayout bytes on the bf16 path)
    q = qkv[:, 0 * D:1 * D].astype(compute_dtype).reshape(N, H, hd).transpose(1, 0, 2)
    k = qkv[:, 1 * D:2 * D].astype(compute_dtype).reshape(N, H, hd).transpose(1, 0, 2)
    v = qkv[:, 2 * D:3 * D].astype(compute_dtype).reshape(N, H, hd).transpose(1, 0, 2)

    # ---- KV-chunked online softmax (flash-style), normalization deferred to the end.
    # Largest live score tensor is (H, N, tk) instead of (H, N, N).
    tk = min(kv_tile, N)
    n_chunks = (N + tk - 1) // tk       # static Python unroll (kv_tile-sized chunks)
    m = l = acc = None
    for c in range(n_chunks):
        lo = c * tk
        hi = min(N, lo + tk)
        kc = k[:, lo:hi, :]
        vc = v[:, lo:hi, :]
        s = jnp.einsum('hnd,hmd->hnm', q, kc,
                       preferred_element_type=jnp.float32)                    # (H, N, tk)
        cm = jnp.max(s, axis=-1, keepdims=True)
        if c == 0:
            m = cm
            p = jnp.exp(s - m)
            l = jnp.sum(p, axis=-1, keepdims=True)
            acc = jnp.einsum('hnm,hmd->hnd', p.astype(compute_dtype), vc,
                             preferred_element_type=jnp.float32)              # (H, N, hd)
        else:
            m_new = jnp.maximum(m, cm)
            alpha = jnp.exp(m - m_new)
            p = jnp.exp(s - m_new)
            l = alpha * l + jnp.sum(p, axis=-1, keepdims=True)
            acc = alpha * acc + jnp.einsum('hnm,hmd->hnd', p.astype(compute_dtype), vc,
                                           preferred_element_type=jnp.float32)
            m = m_new

    # deferred normalization: one (H, N, hd) scale instead of an (H, N, N) multiply
    if exact_softmax:
        oh = acc / l
    else:
        oh = acc * pl.reciprocal(l, approx=True)                              # (H, N, hd) f32

    # ---- output projection: merge heads back to a lane-dense (N, D) slab and do a
    # single K = D MXU matmul (no (H, N, D) intermediate, no cross-head VPU reduce) ----
    attn = oh.astype(compute_dtype).transpose(1, 0, 2).reshape(N, D)          # (N, H*hd)
    out1 = jnp.dot(attn, wo_ref[...],
                   preferred_element_type=jnp.float32) + bo_ref[...]          # (N, D) f32

    # ---- Adapter (layernorm_option='in', eps=1e-5, scale=1.0, dropout=0.0) ----
    mu2 = jnp.mean(xn, axis=-1, keepdims=True)
    var2 = jnp.mean((xn - mu2) * (xn - mu2), axis=-1, keepdims=True)
    xa = (xn - mu2) * jax.lax.rsqrt(var2 + 1e-5) * g2_ref[...] + b2_ref[...]
    down = jnp.dot(xa.astype(compute_dtype), wd_ref[...],
                   preferred_element_type=jnp.float32) + bd_ref[...]          # (N, Ddp)
    down = jnp.maximum(down, 0.0)                                             # ReLU
    up = jnp.dot(down.astype(compute_dtype), wu_ref[...],
                 preferred_element_type=jnp.float32) + bu_ref[...]            # (N, D)

    # ---- residual sum ----
    o_ref[...] = (x + out1 + up).astype(o_ref.dtype)


def pack_params(params, num_heads, compute_dtype=jnp.float32):
    """Host-side one-time prep: fuse QKV, fold 1/sqrt(head_dim) into Wq/bq, zero-pad the
    adapter bottleneck to a lane-dense multiple of 128, cast matmul weights to the MXU
    compute dtype (bf16 is the perf path on v5e/v6e/v7x)."""
    D = params["w_q"].shape[0]
    hd = D // num_heads
    scale = 1.0 / math.sqrt(hd)

    w_qkv = jnp.concatenate(
        [params["w_q"] * scale, params["w_k"], params["w_v"]], axis=1)        # (D, 3D)
    b_qkv = jnp.concatenate(
        [params["b_q"] * scale, params["b_k"], params["b_v"]], axis=1)        # (1, 3D)

    Dd = params["w_down"].shape[1]
    Dd_pad = max(128, ((Dd + 127) // 128) * 128)
    w_down = jnp.zeros((D, Dd_pad), jnp.float32).at[:, :Dd].set(params["w_down"])
    b_down = jnp.zeros((1, Dd_pad), jnp.float32).at[:, :Dd].set(params["b_down"])
    w_up = jnp.zeros((Dd_pad, D), jnp.float32).at[:Dd, :].set(params["w_up"])

    cd = compute_dtype
    return {
        "ln1_g": params["ln1_g"], "ln1_b": params["ln1_b"],
        "w_qkv": w_qkv.astype(cd), "b_qkv": b_qkv,
        "w_o": params["w_o"].astype(cd), "b_o": params["b_o"],
        "ln2_g": params["ln2_g"], "ln2_b": params["ln2_b"],
        "w_down": w_down.astype(cd), "b_down": b_down,
        "w_up": w_up.astype(cd), "b_up": params["b_up"],
    }


def _pick_vmem_limit(N, D, H, Dd_pad, kv_tile, compute_dtype):
    """Size the VMEM request from actual usage + headroom instead of hard-coding 64 MiB
    (which is ALL of a v7x TensorCore's VMEM and leaves no compiler scratch)."""
    cs = jnp.dtype(compute_dtype).itemsize
    tk = min(kv_tile, N)
    weights = ((3 * D * D + D * D + D * Dd_pad + Dd_pad * D) * cs
               + (3 * D + 6 * D + 2 * Dd_pad) * 4)
    acts = (6 * N * D * 4            # x, xn, xa, out1, up, sum temps (f32)
            + 3 * N * D * 4          # qkv (f32)
            + 3 * N * D * cs         # q/k/v head-major copies
            + 2 * H * N * tk * 4     # score chunk + exp(score)
            + 2 * N * D * 4          # online-softmax accumulator / oh
            + N * D * cs             # merged-head slab for the out-proj
            + 2 * N * Dd_pad * 4)    # adapter down / relu
    io = 2 * 2 * N * D * 4           # double-buffered x / o tiles
    need = int(1.5 * (weights + acts + io)) + (4 << 20)
    try:
        phys = int(pltpu.get_tpu_info().vmem_capacity_bytes)
    except Exception:
        phys = 64 << 20              # conservative: v7x per-TensorCore VMEM
    return max(min(max(need, 32 << 20), phys - (8 << 20)), 16 << 20)


def attention_block(x, packed, num_heads, *, compute_dtype=jnp.float32, kv_tile=256):
    """x: (B, N, D). Production shapes should keep D (and ideally head_dim) multiples of
    128 and N a multiple of 8; otherwise stores become masked and MXU fill collapses."""
    B, N, D = x.shape
    Dd_pad = packed["w_down"].shape[1]
    exact_softmax = jnp.dtype(compute_dtype) == jnp.dtype(jnp.float32)

    # Whole-array VMEM residents: fetched once, single-buffered.
    vmem = lambda: pl.BlockSpec(memory_space=_MemSpace.VMEM)
    xo_spec = lambda: pl.BlockSpec((_squeezed_dim(), N, D), lambda b: (b, 0, 0))

    kernel = functools.partial(
        _attention_block_kernel, num_heads=num_heads, kv_tile=kv_tile,
        compute_dtype=compute_dtype, exact_softmax=exact_softmax)

    return pl.pallas_call(
        kernel,
        out_shape=jax.ShapeDtypeStruct((B, N, D), x.dtype),
        grid=(B,),
        in_specs=[xo_spec()] + [vmem() for _ in range(12)],
        out_specs=xo_spec(),
        compiler_params=_CompilerParams(
            dimension_semantics=("parallel",),
            vmem_limit_bytes=_pick_vmem_limit(N, D, num_heads, Dd_pad, kv_tile, compute_dtype),
        ),
    )(
        x,
        packed["ln1_g"], packed["ln1_b"],
        packed["w_qkv"], packed["b_qkv"],
        packed["w_o"], packed["b_o"],
        packed["ln2_g"], packed["ln2_b"],
        packed["w_down"], packed["b_down"],
        packed["w_up"], packed["b_up"],
    )


def _reference(x, p, num_heads):
    """Pure-JAX f32 reference mirroring the PyTorch forward (HIGHEST matmul precision)."""
    HI = jax.lax.Precision.HIGHEST
    B, N, D = x.shape
    hd = D // num_heads
    mu = jnp.mean(x, -1, keepdims=True)
    var = jnp.mean((x - mu) ** 2, -1, keepdims=True)
    xn = (x - mu) / jnp.sqrt(var + 1e-6) * p["ln1_g"] + p["ln1_b"]

    q = jnp.einsum("bnd,de->bne", xn, p["w_q"], precision=HI) + p["b_q"]
    k = jnp.einsum("bnd,de->bne", xn, p["w_k"], precision=HI) + p["b_k"]
    v = jnp.einsum("bnd,de->bne", xn, p["w_v"], precision=HI) + p["b_v"]
    qh = q.reshape(B, N, num_heads, hd).transpose(0, 2, 1, 3) / math.sqrt(hd)
    kh = k.reshape(B, N, num_heads, hd).transpose(0, 2, 1, 3)
    vh = v.reshape(B, N, num_heads, hd).transpose(0, 2, 1, 3)
    s = jnp.einsum("bhnd,bhmd->bhnm", qh, kh, precision=HI)
    pattn = jax.nn.softmax(s, axis=-1)
    a = jnp.einsum("bhnm,bhmd->bhnd", pattn, vh,
                   precision=HI).transpose(0, 2, 1, 3).reshape(B, N, D)
    out1 = jnp.einsum("bnd,de->bne", a, p["w_o"], precision=HI) + p["b_o"]

    mu2 = jnp.mean(xn, -1, keepdims=True)
    var2 = jnp.mean((xn - mu2) ** 2, -1, keepdims=True)
    xa = (xn - mu2) / jnp.sqrt(var2 + 1e-5) * p["ln2_g"] + p["ln2_b"]
    down = jnp.maximum(jnp.einsum("bnd,dk->bnk", xa, p["w_down"], precision=HI)
                       + p["b_down"], 0.0)
    out2 = jnp.einsum("bnk,kd->bnd", down, p["w_up"], precision=HI) + p["b_up"]
    return x + out1 + out2


def init_params(key, dim, down_size):
    """Deterministic synthetic init (module __init__ gives the shapes).
    Note: PyTorch zero-inits the adapter up_proj; small random values are used here so
    the up-projection matmul is actually exercised."""
    ks = jax.random.split(key, 8)
    f = lambda k, shape, s=0.05: (jax.random.normal(k, shape, jnp.float32) * s)
    return {
        "ln1_g": jnp.ones((1, dim), jnp.float32),
        "ln1_b": jnp.zeros((1, dim), jnp.float32),
        "w_q": f(ks[0], (dim, dim)),
        "w_k": f(ks[1], (dim, dim)),
        "w_v": f(ks[2], (dim, dim)),
        "b_q": jnp.zeros((1, dim), jnp.float32),
        "b_k": jnp.zeros((1, dim), jnp.float32),
        "b_v": jnp.zeros((1, dim), jnp.float32),
        "w_o": f(ks[3], (dim, dim)),
        "b_o": f(ks[4], (1, dim), 0.01),
        "ln2_g": jnp.ones((1, dim), jnp.float32),
        "ln2_b": jnp.zeros((1, dim), jnp.float32),
        "w_down": f(ks[5], (dim, down_size)),
        "b_down": jnp.zeros((1, down_size), jnp.float32),
        "w_up": f(ks[6], (down_size, dim)),
        "b_up": jnp.zeros((1, dim), jnp.float32),
    }


if __name__ == "__main__":
    # head_dim = 128 keeps the in-kernel head split/merge reshapes lane-aligned.
    B, N, D, H, R = 2, 16, 256, 2, 4
    key = jax.random.PRNGKey(0)
    kx, kp = jax.random.split(key)
    x = jax.random.normal(kx, (B, N, D), jnp.float32)
    params = init_params(kp, D, D // R)
    ref = _reference(x, params, H)

    # f32 MXU operands + exact softmax normalization: tight check (single KV chunk).
    packed_f32 = pack_params(params, H, compute_dtype=jnp.float32)
    out_f32 = jax.block_until_ready(
        attention_block(x, packed_f32, H, compute_dtype=jnp.float32))
    assert out_f32.shape == (B, N, D)
    assert jnp.allclose(out_f32, ref, atol=5e-3, rtol=5e-3), \
        float(jnp.max(jnp.abs(out_f32 - ref)))

    # Same params, multi-chunk online-softmax (flash-style) path exercised (kv_tile < N).
    out_chunk = jax.block_until_ready(
        attention_block(x, packed_f32, H, compute_dtype=jnp.float32, kv_tile=8))
    assert jnp.allclose(out_chunk, ref, atol=5e-3, rtol=5e-3), \
        float(jnp.max(jnp.abs(out_chunk - ref)))

    # bf16 MXU operands (perf path on v5e/v6e/v7x), f32 accumulation: looser tolerance.
    packed_bf16 = pack_params(params, H, compute_dtype=jnp.bfloat16)
    out_bf16 = jax.block_until_ready(
        attention_block(x, packed_bf16, H, compute_dtype=jnp.bfloat16))
    assert out_bf16.shape == (B, N, D)
    assert jnp.allclose(out_bf16, ref, atol=7.5e-2, rtol=7.5e-2), \
        float(jnp.max(jnp.abs(out_bf16 - ref)))

    print("KERNEL_OK")
</pallas_src>

<mosaic_0001>
module attributes {stable_mosaic.version = 11 : i64} {
  func.func @_attention_block_kernel(%arg0: i32, %arg1: memref<1x16x256xf32, #tpu.memory_space<vmem>>, %arg2: memref<1x256xf32, #tpu.memory_space<vmem>>, %arg3: memref<1x256xf32, #tpu.memory_space<vmem>>, %arg4: memref<256x768xf32, #tpu.memory_space<vmem>>, %arg5: memref<1x768xf32, #tpu.memory_space<vmem>>, %arg6: memref<256x256xf32, #tpu.memory_space<vmem>>, %arg7: memref<1x256xf32, #tpu.memory_space<vmem>>, %arg8: memref<1x256xf32, #tpu.memory_space<vmem>>, %arg9: memref<1x256xf32, #tpu.memory_space<vmem>>, %arg10: memref<256x128xf32, #tpu.memory_space<vmem>>, %arg11: memref<1x128xf32, #tpu.memory_space<vmem>>, %arg12: memref<128x256xf32, #tpu.memory_space<vmem>>, %arg13: memref<1x256xf32, #tpu.memory_space<vmem>>, %arg14: memref<1x16x256xf32, #tpu.memory_space<vmem>>) attributes {dimension_semantics = [#tpu.dimension_semantics<parallel>], iteration_bounds = array<i64: 2>, scalar_prefetch = 0 : i64, scratch_operands = 0 : i64, tpu.core_type = #tpu.core_type<tc>, window_params = [{transform_indices = @transform_0, window_bounds = array<i64: 1, 16, 256>}, {pipeline_mode = #tpu.pipeline_mode<synchronous>, transform_indices = @transform_1, window_bounds = array<i64: 1, 256>}, {pipeline_mode = #tpu.pipeline_mode<synchronous>, transform_indices = @transform_2, window_bounds = array<i64: 1, 256>}, {pipeline_mode = #tpu.pipeline_mode<synchronous>, transform_indices = @transform_3, window_bounds = array<i64: 256, 768>}, {pipeline_mode = #tpu.pipeline_mode<synchronous>, transform_indices = @transform_4, window_bounds = array<i64: 1, 768>}, {pipeline_mode = #tpu.pipeline_mode<synchronous>, transform_indices = @transform_5, window_bounds = array<i64: 256, 256>}, {pipeline_mode = #tpu.pipeline_mode<synchronous>, transform_indices = @transform_6, window_bounds = array<i64: 1, 256>}, {pipeline_mode = #tpu.pipeline_mode<synchronous>, transform_indices = @transform_7, window_bounds = array<i64: 1, 256>}, {pipeline_mode = #tpu.pipeline_mode<synchronous>, transform_indices = @transform_8, window_bounds = array<i64: 1, 256>}, {pipeline_mode = #tpu.pipeline_mode<synchronous>, transform_indices = @transform_9, window_bounds = array<i64: 256, 128>}, {pipeline_mode = #tpu.pipeline_mode<synchronous>, transform_indices = @transform_10, window_bounds = array<i64: 1, 128>}, {pipeline_mode = #tpu.pipeline_mode<synchronous>, transform_indices = @transform_11, window_bounds = array<i64: 128, 256>}, {pipeline_mode = #tpu.pipeline_mode<synchronous>, transform_indices = @transform_12, window_bounds = array<i64: 1, 256>}, {transform_indices = @transform_13, window_bounds = array<i64: 1, 16, 256>}]} {
    %c0 = arith.constant 0 : index
    %c0_0 = arith.constant 0 : index
    %c0_1 = arith.constant 0 : index
    %0 = vector.load %arg1[%c0, %c0_0, %c0_1] : memref<1x16x256xf32, #tpu.memory_space<vmem>>, vector<1x16x256xf32>
    %1 = vector.shape_cast %0 : vector<1x16x256xf32> to vector<16x256xf32>
    %cst = arith.constant dense<0.000000e+00> : vector<16xf32>
    %2 = vector.multi_reduction <add>, %1, %cst [1] : vector<16x256xf32> to vector<16xf32>
    %3 = vector.shape_cast %2 : vector<16xf32> to vector<16x1xf32>
    %cst_2 = arith.constant 2.560000e+02 : f32
    %4 = vector.broadcast %cst_2 : f32 to vector<16x1xf32>
    %5 = arith.divf %3, %4 : vector<16x1xf32>
    %6 = vector.broadcast %5 : vector<16x1xf32> to vector<16x256xf32>
    %7 = arith.subf %1, %6 : vector<16x256xf32>
    %8 = vector.broadcast %5 : vector<16x1xf32> to vector<16x256xf32>
    %9 = arith.subf %1, %8 : vector<16x256xf32>
    %10 = arith.mulf %7, %9 : vector<16x256xf32>
    %cst_3 = arith.constant dense<0.000000e+00> : vector<16xf32>
    %11 = vector.multi_reduction <add>, %10, %cst_3 [1] : vector<16x256xf32> to vector<16xf32>
    %12 = vector.shape_cast %11 : vector<16xf32> to vector<16x1xf32>
    %cst_4 = arith.constant 2.560000e+02 : f32
    %13 = vector.broadcast %cst_4 : f32 to vector<16x1xf32>
    %14 = arith.divf %12, %13 : vector<16x1xf32>
    %15 = vector.broadcast %5 : vector<16x1xf32> to vector<16x256xf32>
    %16 = arith.subf %1, %15 : vector<16x256xf32>
    %cst_5 = arith.constant 9.99999997E-7 : f32
    %17 = vector.broadcast %cst_5 : f32 to vector<16x1xf32>
    %18 = arith.addf %14, %17 : vector<16x1xf32>
    %19 = math.rsqrt %18 : vector<16x1xf32>
    %20 = vector.broadcast %19 : vector<16x1xf32> to vector<16x256xf32>
    %21 = arith.mulf %16, %20 : vector<16x256xf32>
    %c0_6 = arith.constant 0 : index
    %c0_7 = arith.constant 0 : index
    %22 = vector.load %arg2[%c0_6, %c0_7] : memref<1x256xf32, #tpu.memory_space<vmem>>, vector<1x256xf32>
    %23 = vector.broadcast %22 : vector<1x256xf32> to vector<16x256xf32>
    %24 = arith.mulf %21, %23 : vector<16x256xf32>
    %c0_8 = arith.constant 0 : index
    %c0_9 = arith.constant 0 : index
    %25 = vector.load %arg3[%c0_8, %c0_9] : memref<1x256xf32, #tpu.memory_space<vmem>>, vector<1x256xf32>
    %26 = vector.broadcast %25 : vector<1x256xf32> to vector<16x256xf32>
    %27 = arith.addf %24, %26 : vector<16x256xf32>
    %c0_10 = arith.constant 0 : index
    %c0_11 = arith.constant 0 : index
    %28 = vector.load %arg4[%c0_10, %c0_11] : memref<256x768xf32, #tpu.memory_space<vmem>>, vector<256x768xf32>
    %cst_12 = arith.constant dense<0.000000e+00> : vector<16x768xf32>
    %29 = tpu.matmul %27, %28, %cst_12 {dimension_numbers = #tpu.dot_dimension_numbers<[1], [0], [0], [1], [0, 0, 1, 1], [], []>} : vector<16x256xf32>, vector<256x768xf32>, vector<16x768xf32> -> vector<16x768xf32>
    %c0_13 = arith.constant 0 : index
    %c0_14 = arith.constant 0 : index
    %30 = vector.load %arg5[%c0_13, %c0_14] : memref<1x768xf32, #tpu.memory_space<vmem>>, vector<1x768xf32>
    %31 = vector.broadcast %30 : vector<1x768xf32> to vector<16x768xf32>
    %32 = arith.addf %29, %31 : vector<16x768xf32>
    %33 = vector.extract_strided_slice %32 {offsets = [0, 0], sizes = [16, 256], strides = [1, 1]} : vector<16x768xf32> to vector<16x256xf32>
    %34 = vector.shape_cast %33 : vector<16x256xf32> to vector<16x2x128xf32>
    %35 = tpu.transpose %34, [1, 0, 2] : vector<16x2x128xf32> -> vector<2x16x128xf32>
    %36 = vector.extract_strided_slice %32 {offsets = [0, 256], sizes = [16, 256], strides = [1, 1]} : vector<16x768xf32> to vector<16x256xf32>
    %37 = vector.shape_cast %36 : vector<16x256xf32> to vector<16x2x128xf32>
    %38 = tpu.transpose %37, [1, 0, 2] : vector<16x2x128xf32> -> vector<2x16x128xf32>
    %39 = vector.extract_strided_slice %32 {offsets = [0, 512], sizes = [16, 256], strides = [1, 1]} : vector<16x768xf32> to vector<16x256xf32>
    %40 = vector.shape_cast %39 : vector<16x256xf32> to vector<16x2x128xf32>
    %41 = tpu.transpose %40, [1, 0, 2] : vector<16x2x128xf32> -> vector<2x16x128xf32>
    "tpu.trace_start"() <{level = 10 : i32, message = "hnd,hmd->hnm"}> : () -> ()
    %cst_15 = arith.constant dense<0.000000e+00> : vector<2x16x16xf32>
    %42 = tpu.matmul %35, %38, %cst_15 {dimension_numbers = #tpu.dot_dimension_numbers<[2], [2], [1], [1], [0, 0, 0, 1, 1, 1], [0], [0]>} : vector<2x16x128xf32>, vector<2x16x128xf32>, vector<2x16x16xf32> -> vector<2x16x16xf32>
    "tpu.trace_stop"() : () -> ()
    %cst_16 = arith.constant dense<0xFF800000> : vector<2x16xf32>
    %43 = vector.multi_reduction <maximumf>, %42, %cst_16 [2] : vector<2x16x16xf32> to vector<2x16xf32>
    %44 = vector.shape_cast %43 : vector<2x16xf32> to vector<2x16x1xf32>
    %45 = vector.broadcast %44 : vector<2x16x1xf32> to vector<2x16x16xf32>
    %46 = arith.subf %42, %45 : vector<2x16x16xf32>
    %47 = math.exp %46 : vector<2x16x16xf32>
    %cst_17 = arith.constant dense<0.000000e+00> : vector<2x16xf32>
    %48 = vector.multi_reduction <add>, %47, %cst_17 [2] : vector<2x16x16xf32> to vector<2x16xf32>
    %49 = vector.shape_cast %48 : vector<2x16xf32> to vector<2x16x1xf32>
    "tpu.trace_start"() <{level = 10 : i32, message = "hnm,hmd->hnd"}> : () -> ()
    %cst_18 = arith.constant dense<0.000000e+00> : vector<2x16x128xf32>
    %50 = tpu.matmul %47, %41, %cst_18 {dimension_numbers = #tpu.dot_dimension_numbers<[2], [1], [1], [2], [0, 0, 0, 1, 1, 2], [0], [0]>} : vector<2x16x16xf32>, vector<2x16x128xf32>, vector<2x16x128xf32> -> vector<2x16x128xf32>
    "tpu.trace_stop"() : () -> ()
    %51 = vector.broadcast %49 : vector<2x16x1xf32> to vector<2x16x128xf32>
    %52 = arith.divf %50, %51 : vector<2x16x128xf32>
    %53 = tpu.transpose %52, [1, 0, 2] : vector<2x16x128xf32> -> vector<16x2x128xf32>
    %54 = vector.shape_cast %53 : vector<16x2x128xf32> to vector<16x256xf32>
    %c0_19 = arith.constant 0 : index
    %c0_20 = arith.constant 0 : index
    %55 = vector.load %arg6[%c0_19, %c0_20] : memref<256x256xf32, #tpu.memory_space<vmem>>, vector<256x256xf32>
    %cst_21 = arith.constant dense<0.000000e+00> : vector<16x256xf32>
    %56 = tpu.matmul %54, %55, %cst_21 {dimension_numbers = #tpu.dot_dimension_numbers<[1], [0], [0], [1], [0, 0, 1, 1], [], []>} : vector<16x256xf32>, vector<256x256xf32>, vector<16x256xf32> -> vector<16x256xf32>
    %c0_22 = arith.constant 0 : index
    %c0_23 = arith.constant 0 : index
    %57 = vector.load %arg7[%c0_22, %c0_23] : memref<1x256xf32, #tpu.memory_space<vmem>>, vector<1x256xf32>
    %58 = vector.broadcast %57 : vector<1x256xf32> to vector<16x256xf32>
    %59 = arith.addf %56, %58 : vector<16x256xf32>
    %cst_24 = arith.constant dense<0.000000e+00> : vector<16xf32>
    %60 = vector.multi_reduction <add>, %27, %cst_24 [1] : vector<16x256xf32> to vector<16xf32>
    %61 = vector.shape_cast %60 : vector<16xf32> to vector<16x1xf32>
    %cst_25 = arith.constant 2.560000e+02 : f32
    %62 = vector.broadcast %cst_25 : f32 to vector<16x1xf32>
    %63 = arith.divf %61, %62 : vector<16x1xf32>
    %64 = vector.broadcast %63 : vector<16x1xf32> to vector<16x256xf32>
    %65 = arith.subf %27, %64 : vector<16x256xf32>
    %66 = vector.broadcast %63 : vector<16x1xf32> to vector<16x256xf32>
    %67 = arith.subf %27, %66 : vector<16x256xf32>
    %68 = arith.mulf %65, %67 : vector<16x256xf32>
    %cst_26 = arith.constant dense<0.000000e+00> : vector<16xf32>
    %69 = vector.multi_reduction <add>, %68, %cst_26 [1] : vector<16x256xf32> to vector<16xf32>
    %70 = vector.shape_cast %69 : vector<16xf32> to vector<16x1xf32>
    %cst_27 = arith.constant 2.560000e+02 : f32
    %71 = vector.broadcast %cst_27 : f32 to vector<16x1xf32>
    %72 = arith.divf %70, %71 : vector<16x1xf32>
    %73 = vector.broadcast %63 : vector<16x1xf32> to vector<16x256xf32>
    %74 = arith.subf %27, %73 : vector<16x256xf32>
    %cst_28 = arith.constant 9.99999974E-6 : f32
    %75 = vector.broadcast %cst_28 : f32 to vector<16x1xf32>
    %76 = arith.addf %72, %75 : vector<16x1xf32>
    %77 = math.rsqrt %76 : vector<16x1xf32>
    %78 = vector.broadcast %77 : vector<16x1xf32> to vector<16x256xf32>
    %79 = arith.mulf %74, %78 : vector<16x256xf32>
    %c0_29 = arith.constant 0 : index
    %c0_30 = arith.constant 0 : index
    %80 = vector.load %arg8[%c0_29, %c0_30] : memref<1x256xf32, #tpu.memory_space<vmem>>, vector<1x256xf32>
    %81 = vector.broadcast %80 : vector<1x256xf32> to vector<16x256xf32>
    %82 = arith.mulf %79, %81 : vector<16x256xf32>
    %c0_31 = arith.constant 0 : index
    %c0_32 = arith.constant 0 : index
    %83 = vector.load %arg9[%c0_31, %c0_32] : memref<1x256xf32, #tpu.memory_space<vmem>>, vector<1x256xf32>
    %84 = vector.broadcast %83 : vector<1x256xf32> to vector<16x256xf32>
    %85 = arith.addf %82, %84 : vector<16x256xf32>
    %c0_33 = arith.constant 0 : index
    %c0_34 = arith.constant 0 : index
    %86 = vector.load %arg10[%c0_33, %c0_34] : memref<256x128xf32, #tpu.memory_space<vmem>>, vector<256x128xf32>
    %cst_35 = arith.constant dense<0.000000e+00> : vector<16x128xf32>
    %87 = tpu.matmul %85, %86, %cst_35 {dimension_numbers = #tpu.dot_dimension_numbers<[1], [0], [0], [1], [0, 0, 1, 1], [], []>} : vector<16x256xf32>, vector<256x128xf32>, vector<16x128xf32> -> vector<16x128xf32>
    %c0_36 = arith.constant 0 : index
    %c0_37 = arith.constant 0 : index
    %88 = vector.load %arg11[%c0_36, %c0_37] : memref<1x128xf32, #tpu.memory_space<vmem>>, vector<1x128xf32>
    %89 = vector.broadcast %88 : vector<1x128xf32> to vector<16x128xf32>
    %90 = arith.addf %87, %89 : vector<16x128xf32>
    %cst_38 = arith.constant 0.000000e+00 : f32
    %91 = vector.broadcast %cst_38 : f32 to vector<16x128xf32>
    %92 = arith.maximumf %90, %91 : vector<16x128xf32>
    %c0_39 = arith.constant 0 : index
    %c0_40 = arith.constant 0 : index
    %93 = vector.load %arg12[%c0_39, %c0_40] : memref<128x256xf32, #tpu.memory_space<vmem>>, vector<128x256xf32>
    %cst_41 = arith.constant dense<0.000000e+00> : vector<16x256xf32>
    %94 = tpu.matmul %92, %93, %cst_41 {dimension_numbers = #tpu.dot_dimension_numbers<[1], [0], [0], [1], [0, 0, 1, 1], [], []>} : vector<16x128xf32>, vector<128x256xf32>, vector<16x256xf32> -> vector<16x256xf32>
    %c0_42 = arith.constant 0 : index
    %c0_43 = arith.constant 0 : index
    %95 = vector.load %arg13[%c0_42, %c0_43] : memref<1x256xf32, #tpu.memory_space<vmem>>, vector<1x256xf32>
    %96 = vector.broadcast %95 : vector<1x256xf32> to vector<16x256xf32>
    %97 = arith.addf %94, %96 : vector<16x256xf32>
    %98 = arith.addf %1, %59 : vector<16x256xf32>
    %99 = arith.addf %98, %97 : vector<16x256xf32>
    %c0_44 = arith.constant 0 : index
    %c0_45 = arith.constant 0 : index
    %c0_46 = arith.constant 0 : index
    %100 = vector.load %arg14[%c0_44, %c0_45, %c0_46] : memref<1x16x256xf32, #tpu.memory_space<vmem>>, vector<1x16x256xf32>
    %101 = vector.shape_cast %100 : vector<1x16x256xf32> to vector<16x256xf32>
    %102 = vector.shape_cast %99 : vector<16x256xf32> to vector<1x16x256xf32>
    tpu.vector_store %arg14[%c0_44, %c0_45, %c0_46], %102 {strides = array<i32>} : memref<1x16x256xf32, #tpu.memory_space<vmem>>, vector<1x16x256xf32>,
    return
  }
  func.func @transform_0(%arg0: i32) -> (i32, i32, i32) {
    %c0_i32 = arith.constant 0 : i32
    %c0_i32_0 = arith.constant 0 : i32
    %c0_i32_1 = arith.constant 0 : i32
    return %arg0, %c0_i32, %c0_i32_0 : i32, i32, i32
  }
  func.func @transform_1(%arg0: i32) -> (i32, i32) {
    %c0_i32 = arith.constant 0 : i32
    %c0_i32_0 = arith.constant 0 : i32
    %c0_i32_1 = arith.constant 0 : i32
    return %c0_i32, %c0_i32_0 : i32, i32
  }
  func.func @transform_2(%arg0: i32) -> (i32, i32) {
    %c0_i32 = arith.constant 0 : i32
    %c0_i32_0 = arith.constant 0 : i32
    %c0_i32_1 = arith.constant 0 : i32
    return %c0_i32, %c0_i32_0 : i32, i32
  }
  func.func @transform_3(%arg0: i32) -> (i32, i32) {
    %c0_i32 = arith.constant 0 : i32
    %c0_i32_0 = arith.constant 0 : i32
    %c0_i32_1 = arith.constant 0 : i32
    return %c0_i32, %c0_i32_0 : i32, i32
  }
  func.func @transform_4(%arg0: i32) -> (i32, i32) {
    %c0_i32 = arith.constant 0 : i32
    %c0_i32_0 = arith.constant 0 : i32
    %c0_i32_1 = arith.constant 0 : i32
    return %c0_i32, %c0_i32_0 : i32, i32
  }
  func.func @transform_5(%arg0: i32) -> (i32, i32) {
    %c0_i32 = arith.constant 0 : i32
    %c0_i32_0 = arith.constant 0 : i32
    %c0_i32_1 = arith.constant 0 : i32
    return %c0_i32, %c0_i32_0 : i32, i32
  }
  func.func @transform_6(%arg0: i32) -> (i32, i32) {
    %c0_i32 = arith.constant 0 : i32
    %c0_i32_0 = arith.constant 0 : i32
    %c0_i32_1 = arith.constant 0 : i32
    return %c0_i32, %c0_i32_0 : i32, i32
  }
  func.func @transform_7(%arg0: i32) -> (i32, i32) {
    %c0_i32 = arith.constant 0 : i32
    %c0_i32_0 = arith.constant 0 : i32
    %c0_i32_1 = arith.constant 0 : i32
    return %c0_i32, %c0_i32_0 : i32, i32
  }
  func.func @transform_8(%arg0: i32) -> (i32, i32) {
    %c0_i32 = arith.constant 0 : i32
    %c0_i32_0 = arith.constant 0 : i32
    %c0_i32_1 = arith.constant 0 : i32
    return %c0_i32, %c0_i32_0 : i32, i32
  }
  func.func @transform_9(%arg0: i32) -> (i32, i32) {
    %c0_i32 = arith.constant 0 : i32
    %c0_i32_0 = arith.constant 0 : i32
    %c0_i32_1 = arith.constant 0 : i32
    return %c0_i32, %c0_i32_0 : i32, i32
  }
  func.func @transform_10(%arg0: i32) -> (i32, i32) {
    %c0_i32 = arith.constant 0 : i32
    %c0_i32_0 = arith.constant 0 : i32
    %c0_i32_1 = arith.constant 0 : i32
    return %c0_i32, %c0_i32_0 : i32, i32
  }
  func.func @transform_11(%arg0: i32) -> (i32, i32) {
    %c0_i32 = arith.constant 0 : i32
    %c0_i32_0 = arith.constant 0 : i32
    %c0_i32_1 = arith.constant 0 : i32
    return %c0_i32, %c0_i32_0 : i32, i32
  }
  func.func @transform_12(%arg0: i32) -> (i32, i32) {
    %c0_i32 = arith.constant 0 : i32
    %c0_i32_0 = arith.constant 0 : i32
    %c0_i32_1 = arith.constant 0 : i32
    return %c0_i32, %c0_i32_0 : i32, i32
  }
  func.func @transform_13(%arg0: i32) -> (i32, i32, i32) {
    %c0_i32 = arith.constant 0 : i32
    %c0_i32_0 = arith.constant 0 : i32
    %c0_i32_1 = arith.constant 0 : i32
    return %arg0, %c0_i32, %c0_i32_0 : i32, i32, i32
  }
}

</mosaic_0001>

<llo_original>
// kernel: tpu_custom_call.1
$region0: #{tpu_custom_call.1}
  #allocation0 [shape = 'u32[]', space=smem, size = 0x4, offset = 0x4, fixed_abs, tag = 'smem constant byte address 0x4 - core index']
  #allocation1 [shape = 'u32[144,128]{1,0:T(1,128)}', space=vmem, size = 0x12000, scoped, tag = 'internal scratch']
  %s0 = inlined_call_operand.hbm [shape: f32[2,16,256], index: 0, kind: input, shape index: {}]
  %s1 = inlined_call_operand.vmem [shape: f32[1,256], index: 1, kind: input, shape index: {}]
  %s2 = inlined_call_operand.vmem [shape: f32[1,256], index: 2, kind: input, shape index: {}]
  %s3 = inlined_call_operand.hbm [shape: f32[256,768], index: 3, kind: input, shape index: {}]
  %s4 = inlined_call_operand.vmem [shape: f32[1,768], index: 4, kind: input, shape index: {}]
  %s5 = inlined_call_operand.hbm [shape: f32[256,256], index: 5, kind: input, shape index: {}]
  %s6 = inlined_call_operand.vmem [shape: f32[1,256], index: 6, kind: input, shape index: {}]
  %s7 = inlined_call_operand.vmem [shape: f32[1,256], index: 7, kind: input, shape index: {}]
  %s8 = inlined_call_operand.vmem [shape: f32[1,256], index: 8, kind: input, shape index: {}]
  %s9 = inlined_call_operand.hbm [shape: f32[256,128], index: 9, kind: input, shape index: {}]
  %s10 = inlined_call_operand.vmem [shape: f32[1,128], index: 10, kind: input, shape index: {}]
  %s11 = inlined_call_operand.hbm [shape: f32[128,256], index: 11, kind: input, shape index: {}]
  %s12 = inlined_call_operand.vmem [shape: f32[1,256], index: 12, kind: input, shape index: {}]
  %s13 = inlined_call_operand.hbm [shape: f32[2,16,256], index: 13, kind: output, shape index: {}]
  %s14 = sld [smem:[#allocation0]]
  $region105: #{tpu_custom_call.1} parent=0
    _
  %s16 = ssub.s32 1, %s14
  %s17 = scalar_select 0, %s16, %s14
  $region1: #{tpu_custom_call.1} parent=0
    #allocation2 [shape = 'u8[32768]{0}', space=vmem, size = 0x8000, scoped, tag = 'input window, operand 0']
    #allocation3 [shape = 's32[2]{0}', space=sflag, size = 0x8, scoped, tag = 'scoped memory for tpu_custom_call.1']
    #allocation4 [shape = 's32[2]{0}', space=sflag, size = 0x8, scoped, tag = 'scoped memory for tpu_custom_call.1']
    #allocation5 [shape = 'u8[786432]{0}', space=vmem, size = 0xc0000, scoped, tag = 'input window, operand 3, single buffered']
    #allocation6 [shape = 's32[1]{0}', space=sflag, size = 0x4, scoped, tag = 'scoped memory for tpu_custom_call.1']
    #allocation7 [shape = 'u8[262144]{0}', space=vmem, size = 0x40000, scoped, tag = 'input window, operand 5, single buffered']
    #allocation8 [shape = 'u8[131072]{0}', space=vmem, size = 0x20000, scoped, tag = 'input window, operand 9, single buffered']
    #allocation9 [shape = 's32[1]{0}', space=sflag, size = 0x4, scoped, tag = 'scoped memory for tpu_custom_call.1']
    #allocation10 [shape = 'u8[131072]{0}', space=vmem, size = 0x20000, scoped, tag = 'input window, operand 11, single buffered']
    #allocation11 [shape = 'u8[32768]{0}', space=vmem, size = 0x8000, scoped, tag = 'output window, operand 0']
    %18 = vsyncpa [#allocation3], 0
    %s19 = scalar_lea.sflag [#allocation3], 1
    %20 = vsyncpa %s19, 0
    %21 = vsyncpa [#allocation6], 0
    %22 = vsyncpa [#allocation9], 0
    %23 = vsyncpa [#allocation4], 0
    %s24 = scalar_lea.sflag [#allocation4], 1
    %25 = vsyncpa %s24, 0
    loop: start=0, step=1, limit=4
    $region2: #{tpu_custom_call.1} parent=1 // loop_pre_header
      _
    $region3: #{tpu_custom_call.1} parent=1 // loop_header
      %s27 = sphi 0, %s31
      %p28 = scmp.ge.s32.totalorder %s27, 4
      %s37 = sphi 0, %s39
      %s40 = sphi 0, %s37
      %s41 = sphi 0, %s40
      %s57 = sphi 0, %s41
      %s61 = sphi 0, %s61
      %s63 = sphi 0, %s61
      %s64 = sphi 0, %s63
      %s78 = sphi 0, %s64
      %s82 = sphi 0, %s82
      %s84 = sphi 0, %s82
      %s85 = sphi 0, %s84
      %s99 = sphi 0, %s85
      %s103 = sphi 0, %s103
      %s105 = sphi 0, %s103
      %s106 = sphi 0, %s105
      %s120 = sphi 0, %s106
      %s124 = sphi 0, %s124
      %s126 = sphi 0, %s124
      %s127 = sphi 0, %s126
      %s141 = sphi 0, %s127
      %s145 = sphi 0, %s145
      %s147 = sphi 0, %s145
      %s148 = sphi 0, %s147
      %s162 = sphi 0, %s148
      %s166 = sphi 0, %s166
      %s168 = sphi 0, %s166
      %s169 = sphi 0, %s168
      %s183 = sphi 0, %s169
      %s187 = sphi 0, %s187
      %s189 = sphi 0, %s187
      %s190 = sphi 0, %s189
      %s204 = sphi 0, %s190
      %s208 = sphi 0, %s208
      %s210 = sphi 0, %s208
      %s211 = sphi 0, %s210
      %s225 = sphi 0, %s211
      %s229 = sphi 0, %s229
      %s231 = sphi 0, %s229
      %s232 = sphi 0, %s231
      %s246 = sphi 0, %s232
      %s250 = sphi 0, %s250
      %s252 = sphi 0, %s250
      %s253 = sphi 0, %s252
      %s267 = sphi 0, %s253
      %s271 = sphi 0, %s271
      %s273 = sphi 0, %s271
      %s274 = sphi 0, %s273
      %s288 = sphi 0, %s274
      %s292 = sphi 0, %s292
      %s294 = sphi 0, %s292
      %s295 = sphi 0, %s294
      %s309 = sphi 0, %s295
      %s315 = sphi 0, %s317
      %s318 = sphi 0, %s315
      %s319 = sphi 0, %s318
      %s335 = sphi 0, %s319
    $region4: #{tpu_custom_call.1} parent=1 // loop_header_branch
      %30 = sbr.rel (%p28) target = $region8
    $region5: #{tpu_custom_call.1} parent=1 // loop_body
      %s32 = ssub.s32 %s27, 1
      %s33 = ssub.s32 %s27, 2
      %s34 = sadd.s32 %s27, 1
      %s35 = ssub.s32 %s27, %s34
      %p36 = scmp.eq.s32.totalorder %s35, 0
      %s38 = sadd.s32 %s37, 1
      %s39 = scalar_select %p36, %s37, %s38
      %p42 = pneg %p36
      %p43 = scmp.eq.s32.totalorder %s27, 1
      %p44 = por %p42, %p43
      %p45 = scmp.ne.s32.totalorder %s37, %s40
      %p46 = scmp.eq.s32.totalorder %s27, 0
      %p47 = por %p45, %p46
      %p48 = scmp.ne.s32.totalorder %s37, %s40
      %p49 = scmp.eq.s32.totalorder %s32, 1
      %p50 = por %p48, %p49
      %p51 = scmp.ne.s32.totalorder %s40, %s41
      %p52 = scmp.eq.s32.totalorder %s32, 0
      %p53 = por %p51, %p52
      %p54 = scmp.ne.s32.totalorder %s40, %s41
      %p55 = scmp.eq.s32.totalorder %s33, 1
      %p56 = por %p54, %p55
      %p58 = scmp.ne.s32.totalorder %s41, %s57
      %p59 = scmp.eq.s32.totalorder %s33, 0
      %p60 = por %p58, %p59
      %s62 = sadd.s32 %s61, 1
      %p65 = scmp.eq.s32.totalorder %s27, 1
      %p66 = scmp.ne.s32.totalorder %s61, %s63
      %p67 = scmp.eq.s32.totalorder %s27, 0
      %p68 = por %p66, %p67
      %p69 = scmp.ne.s32.totalorder %s61, %s63
      %p70 = scmp.eq.s32.totalorder %s32, 1
      %p71 = por %p69, %p70
      %p72 = scmp.ne.s32.totalorder %s63, %s64
      %p73 = scmp.eq.s32.totalorder %s32, 0
      %p74 = por %p72, %p73
      %p75 = scmp.ne.s32.totalorder %s63, %s64
      %p76 = scmp.eq.s32.totalorder %s33, 1
      %p77 = por %p75, %p76
      %p79 = scmp.ne.s32.totalorder %s64, %s78
      %p80 = scmp.eq.s32.totalorder %s33, 0
      %p81 = por %p79, %p80
      %s83 = sadd.s32 %s82, 1
      %p86 = scmp.eq.s32.totalorder %s27, 1
      %p87 = scmp.ne.s32.totalorder %s82, %s84
      %p88 = scmp.eq.s32.totalorder %s27, 0
      %p89 = por %p87, %p88
      %p90 = scmp.ne.s32.totalorder %s82, %s84
      %p91 = scmp.eq.s32.totalorder %s32, 1
      %p92 = por %p90, %p91
      %p93 = scmp.ne.s32.totalorder %s84, %s85
      %p94 = scmp.eq.s32.totalorder %s32, 0
      %p95 = por %p93, %p94
      %p96 = scmp.ne.s32.totalorder %s84, %s85
      %p97 = scmp.eq.s32.totalorder %s33, 1
      %p98 = por %p96, %p97
      %p100 = scmp.ne.s32.totalorder %s85, %s99
      %p101 = scmp.eq.s32.totalorder %s33, 0
      %p102 = por %p100, %p101
      %s104 = sadd.s32 %s103, 1
      %p107 = scmp.eq.s32.totalorder %s27, 1
      %p108 = scmp.ne.s32.totalorder %s103, %s105
      %p109 = scmp.eq.s32.totalorder %s27, 0
      %p110 = por %p108, %p109
      %p111 = scmp.ne.s32.totalorder %s103, %s105
      %p112 = scmp.eq.s32.totalorder %s32, 1
      %p113 = por %p111, %p112
      %p114 = scmp.ne.s32.totalorder %s105, %s106
      %p115 = scmp.eq.s32.totalorder %s32, 0
      %p116 = por %p114, %p115
      %p117 = scmp.ne.s32.totalorder %s105, %s106
      %p118 = scmp.eq.s32.totalorder %s33, 1
      %p119 = por %p117, %p118
      %p121 = scmp.ne.s32.totalorder %s106, %s120
      %p122 = scmp.eq.s32.totalorder %s33, 0
      %p123 = por %p121, %p122
      %s125 = sadd.s32 %s124, 1
      %p128 = scmp.eq.s32.totalorder %s27, 1
      %p129 = scmp.ne.s32.totalorder %s124, %s126
      %p130 = scmp.eq.s32.totalorder %s27, 0
      %p131 = por %p129, %p130
      %p132 = scmp.ne.s32.totalorder %s124, %s126
      %p133 = scmp.eq.s32.totalorder %s32, 1
      %p134 = por %p132, %p133
      %p135 = scmp.ne.s32.totalorder %s126, %s127
      %p136 = scmp.eq.s32.totalorder %s32, 0
      %p137 = por %p135, %p136
      %p138 = scmp.ne.s32.totalorder %s126, %s127
      %p139 = scmp.eq.s32.totalorder %s33, 1
      %p140 = por %p138, %p139
      %p142 = scmp.ne.s32.totalorder %s127, %s141
      %p143 = scmp.eq.s32.totalorder %s33, 0
      %p144 = por %p142, %p143
      %s146 = sadd.s32 %s145, 1
      %p149 = scmp.eq.s32.totalorder %s27, 1
      %p150 = scmp.ne.s32.totalorder %s145, %s147
      %p151 = scmp.eq.s32.totalorder %s27, 0
      %p152 = por %p150, %p151
      %p153 = scmp.ne.s32.totalorder %s145, %s147
      %p154 = scmp.eq.s32.totalorder %s32, 1
      %p155 = por %p153, %p154
      %p156 = scmp.ne.s32.totalorder %s147, %s148
      %p157 = scmp.eq.s32.totalorder %s32, 0
      %p158 = por %p156, %p157
      %p159 = scmp.ne.s32.totalorder %s147, %s148
      %p160 = scmp.eq.s32.totalorder %s33, 1
      %p161 = por %p159, %p160
      %p163 = scmp.ne.s32.totalorder %s148, %s162
      %p164 = scmp.eq.s32.totalorder %s33, 0
      %p165 = por %p163, %p164
      %s167 = sadd.s32 %s166, 1
      %p170 = scmp.eq.s32.totalorder %s27, 1
      %p171 = scmp.ne.s32.totalorder %s166, %s168
      %p172 = scmp.eq.s32.totalorder %s27, 0
      %p173 = por %p171, %p172
      %p174 = scmp.ne.s32.totalorder %s166, %s168
      %p175 = scmp.eq.s32.totalorder %s32, 1
      %p176 = por %p174, %p175
      %p177 = scmp.ne.s32.totalorder %s168, %s169
      %p178 = scmp.eq.s32.totalorder %s32, 0
      %p179 = por %p177, %p178
      %p180 = scmp.ne.s32.totalorder %s168, %s169
      %p181 = scmp.eq.s32.totalorder %s33, 1
      %p182 = por %p180, %p181
      %p184 = scmp.ne.s32.totalorder %s169, %s183
      %p185 = scmp.eq.s32.totalorder %s33, 0
      %p186 = por %p184, %p185
      %s188 = sadd.s32 %s187, 1
      %p191 = scmp.eq.s32.totalorder %s27, 1
      %p192 = scmp.ne.s32.totalorder %s187, %s189
      %p193 = scmp.eq.s32.totalorder %s27, 0
      %p194 = por %p192, %p193
      %p195 = scmp.ne.s32.totalorder %s187, %s189
      %p196 = scmp.eq.s32.totalorder %s32, 1
      %p197 = por %p195, %p196
      %p198 = scmp.ne.s32.totalorder %s189, %s190
      %p199 = scmp.eq.s32.totalorder %s32, 0
      %p200 = por %p198, %p199
      %p201 = scmp.ne.s32.totalorder %s189, %s190
      %p202 = scmp.eq.s32.totalorder %s33, 1
      %p203 = por %p201, %p202
      %p205 = scmp.ne.s32.totalorder %s190, %s204
      %p206 = scmp.eq.s32.totalorder %s33, 0
      %p207 = por %p205, %p206
      %s209 = sadd.s32 %s208, 1
      %p212 = scmp.eq.s32.totalorder %s27, 1
      %p213 = scmp.ne.s32.totalorder %s208, %s210
      %p214 = scmp.eq.s32.totalorder %s27, 0
      %p215 = por %p213, %p214
      %p216 = scmp.ne.s32.totalorder %s208, %s210
      %p217 = scmp.eq.s32.totalorder %s32, 1
      %p218 = por %p216, %p217
      %p219 = scmp.ne.s32.totalorder %s210, %s211
      %p220 = scmp.eq.s32.totalorder %s32, 0
      %p221 = por %p219, %p220
      %p222 = scmp.ne.s32.totalorder %s210, %s211
      %p223 = scmp.eq.s32.totalorder %s33, 1
      %p224 = por %p222, %p223
      %p226 = scmp.ne.s32.totalorder %s211, %s225
      %p227 = scmp.eq.s32.totalorder %s33, 0
      %p228 = por %p226, %p227
      %s230 = sadd.s32 %s229, 1
      %p233 = scmp.eq.s32.totalorder %s27, 1
      %p234 = scmp.ne.s32.totalorder %s229, %s231
      %p235 = scmp.eq.s32.totalorder %s27, 0
      %p236 = por %p234, %p235
      %p237 = scmp.ne.s32.totalorder %s229, %s231
      %p238 = scmp.eq.s32.totalorder %s32, 1
      %p239 = por %p237, %p238
      %p240 = scmp.ne.s32.totalorder %s231, %s232
      %p241 = scmp.eq.s32.totalorder %s32, 0
      %p242 = por %p240, %p241
      %p243 = scmp.ne.s32.totalorder %s231, %s232
      %p244 = scmp.eq.s32.totalorder %s33, 1
      %p245 = por %p243, %p244
      %p247 = scmp.ne.s32.totalorder %s232, %s246
      %p248 = scmp.eq.s32.totalorder %s33, 0
      %p249 = por %p247, %p248
      %s251 = sadd.s32 %s250, 1
      %p254 = scmp.eq.s32.totalorder %s27, 1
      %p255 = scmp.ne.s32.totalorder %s250, %s252
      %p256 = scmp.eq.s32.totalorder %s27, 0
      %p257 = por %p255, %p256
      %p258 = scmp.ne.s32.totalorder %s250, %s252
      %p259 = scmp.eq.s32.totalorder %s32, 1
      %p260 = por %p258, %p259
      %p261 = scmp.ne.s32.totalorder %s252, %s253
      %p262 = scmp.eq.s32.totalorder %s32, 0
      %p263 = por %p261, %p262
      %p264 = scmp.ne.s32.totalorder %s252, %s253
      %p265 = scmp.eq.s32.totalorder %s33, 1
      %p266 = por %p264, %p265
      %p268 = scmp.ne.s32.totalorder %s253, %s267
      %p269 = scmp.eq.s32.totalorder %s33, 0
      %p270 = por %p268, %p269
      %s272 = sadd.s32 %s271, 1
      %p275 = scmp.eq.s32.totalorder %s27, 1
      %p276 = scmp.ne.s32.totalorder %s271, %s273
      %p277 = scmp.eq.s32.totalorder %s27, 0
      %p278 = por %p276, %p277
      %p279 = scmp.ne.s32.totalorder %s271, %s273
      %p280 = scmp.eq.s32.totalorder %s32, 1
      %p281 = por %p279, %p280
      %p282 = scmp.ne.s32.totalorder %s273, %s274
      %p283 = scmp.eq.s32.totalorder %s32, 0
      %p284 = por %p282, %p283
      %p285 = scmp.ne.s32.totalorder %s273, %s274
      %p286 = scmp.eq.s32.totalorder %s33, 1
      %p287 = por %p285, %p286
      %p289 = scmp.ne.s32.totalorder %s274, %s288
      %p290 = scmp.eq.s32.totalorder %s33, 0
      %p291 = por %p289, %p290
      %s293 = sadd.s32 %s292, 1
      %p296 = scmp.eq.s32.totalorder %s27, 1
      %p297 = scmp.ne.s32.totalorder %s292, %s294
      %p298 = scmp.eq.s32.totalorder %s27, 0
      %p299 = por %p297, %p298
      %p300 = scmp.ne.s32.totalorder %s292, %s294
      %p301 = scmp.eq.s32.totalorder %s32, 1
      %p302 = por %p300, %p301
      %p303 = scmp.ne.s32.totalorder %s294, %s295
      %p304 = scmp.eq.s32.totalorder %s32, 0
      %p305 = por %p303, %p304
      %p306 = scmp.ne.s32.totalorder %s294, %s295
      %p307 = scmp.eq.s32.totalorder %s33, 1
      %p308 = por %p306, %p307
      %p310 = scmp.ne.s32.totalorder %s295, %s309
      %p311 = scmp.eq.s32.totalorder %s33, 0
      %p312 = por %p310, %p311
      %s313 = ssub.s32 %s27, %s34
      %p314 = scmp.eq.s32.totalorder %s313, 0
      %s316 = sadd.s32 %s315, 1
      %s317 = scalar_select %p314, %s315, %s316
      %p320 = pneg %p314
      %p321 = scmp.eq.s32.totalorder %s27, 1
      %p322 = por %p320, %p321
      %p323 = scmp.ne.s32.totalorder %s315, %s318
      %p324 = scmp.eq.s32.totalorder %s27, 0
      %p325 = por %p323, %p324
      %p326 = scmp.ne.s32.totalorder %s315, %s318
      %p327 = scmp.eq.s32.totalorder %s32, 1
      %p328 = por %p326, %p327
      %p329 = scmp.ne.s32.totalorder %s318, %s319
      %p330 = scmp.eq.s32.totalorder %s32, 0
      %p331 = por %p329, %p330
      %p332 = scmp.ne.s32.totalorder %s318, %s319
      %p333 = scmp.eq.s32.totalorder %s33, 1
      %p334 = por %p332, %p333
      %p336 = scmp.ne.s32.totalorder %s319, %s335
      %p337 = scmp.eq.s32.totalorder %s33, 0
      %p338 = por %p336, %p337
      %p339 = scmp.le.s32.totalorder 1, %s27
      %p340 = scmp.lt.s32.totalorder %s27, 3
      %p341 = pnand %p339, %p340
      %p342 = pneg %p341
      // Predicated region
      $region9: #{tpu_custom_call.1} parent=5 // pred_check
        _
      $region10: #{tpu_custom_call.1} parent=5 // pred_check_branch
        %344 = sbr.rel (%p341) target = $region12
      $region11: #{tpu_custom_call.1} parent=5 // pred_region
        %s345 = ssub.s32 %s27, 1
        // Predicated region
        $region13: #{tpu_custom_call.1} parent=11 // pred_check
          %p346 = pneg %p74
        $region14: #{tpu_custom_call.1} parent=11 // pred_check_branch
          %348 = sbr.rel (%p346) target = $region16
        $region15: #{tpu_custom_call.1} parent=11 // pred_region
          _
        $region16: #{tpu_custom_call.1} parent=11 // pred_fallthru
          _
        // Predicated region
        $region17: #{tpu_custom_call.1} parent=11 // pred_check
          %p349 = pneg %p95
        $region18: #{tpu_custom_call.1} parent=11 // pred_check_branch
          %351 = sbr.rel (%p349) target = $region20
        $region19: #{tpu_custom_call.1} parent=11 // pred_region
          _
        $region20: #{tpu_custom_call.1} parent=11 // pred_fallthru
          _
        // Predicated region
        $region21: #{tpu_custom_call.1} parent=11 // pred_check
          %p352 = pneg %p116
        $region22: #{tpu_custom_call.1} parent=11 // pred_check_branch
          %354 = sbr.rel (%p352) target = $region24
        $region23: #{tpu_custom_call.1} parent=11 // pred_region
          %s356 = ssub.s32 24576, 24576
          %357 = vsyncadd [#allocation6], %s356
          %s358 = sshll.u32 [#allocation5], 4
          %s359 = int_to_ptr.vmem [resolvable:$true] %s358
          %364 = dma.hbm_to_vmem [thread:$0]  %s3, 24576, %s359, [#allocation6], 768, 768, 48
        $region24: #{tpu_custom_call.1} parent=11 // pred_fallthru
          _
        // Predicated region
        $region25: #{tpu_custom_call.1} parent=11 // pred_check
          %p365 = pneg %p137
        $region26: #{tpu_custom_call.1} parent=11 // pred_check_branch
          %367 = sbr.rel (%p365) target = $region28
        $region27: #{tpu_custom_call.1} parent=11 // pred_region
          _
        $region28: #{tpu_custom_call.1} parent=11 // pred_fallthru
          _
        // Predicated region
        $region29: #{tpu_custom_call.1} parent=11 // pred_check
          %p368 = pneg %p158
        $region30: #{tpu_custom_call.1} parent=11 // pred_check_branch
          %370 = sbr.rel (%p368) target = $region32
        $region31: #{tpu_custom_call.1} parent=11 // pred_region
          %s372 = ssub.s32 8192, 8192
          %373 = vsyncadd [#allocation6], %s372
          %s374 = sshll.u32 [#allocation7], 4
          %s375 = int_to_ptr.vmem [resolvable:$true] %s374
          %380 = dma.hbm_to_vmem [thread:$0]  %s5, 8192, %s375, [#allocation6], 256, 256, 16
        $region32: #{tpu_custom_call.1} parent=11 // pred_fallthru
          _
        // Predicated region
        $region33: #{tpu_custom_call.1} parent=11 // pred_check
          %p381 = pneg %p179
        $region34: #{tpu_custom_call.1} parent=11 // pred_check_branch
          %383 = sbr.rel (%p381) target = $region36
        $region35: #{tpu_custom_call.1} parent=11 // pred_region
          _
        $region36: #{tpu_custom_call.1} parent=11 // pred_fallthru
          _
        // Predicated region
        $region37: #{tpu_custom_call.1} parent=11 // pred_check
          %p384 = pneg %p200
        $region38: #{tpu_custom_call.1} parent=11 // pred_check_branch
          %386 = sbr.rel (%p384) target = $region40
        $region39: #{tpu_custom_call.1} parent=11 // pred_region
          _
        $region40: #{tpu_custom_call.1} parent=11 // pred_fallthru
          _
        // Predicated region
        $region41: #{tpu_custom_call.1} parent=11 // pred_check
          %p387 = pneg %p221
        $region42: #{tpu_custom_call.1} parent=11 // pred_check_branch
          %389 = sbr.rel (%p387) target = $region44
        $region43: #{tpu_custom_call.1} parent=11 // pred_region
          _
        $region44: #{tpu_custom_call.1} parent=11 // pred_fallthru
          _
        // Predicated region
        $region45: #{tpu_custom_call.1} parent=11 // pred_check
          %p390 = pneg %p242
        $region46: #{tpu_custom_call.1} parent=11 // pred_check_branch
          %392 = sbr.rel (%p390) target = $region48
        $region47: #{tpu_custom_call.1} parent=11 // pred_region
          %s394 = ssub.s32 4096, 4096
          %395 = vsyncadd [#allocation9], %s394
          %s396 = sshll.u32 [#allocation8], 4
          %s397 = int_to_ptr.vmem [resolvable:$true] %s396
          %402 = dma.hbm_to_vmem [thread:$0]  %s9, 4096, %s397, [#allocation9], 128, 128, 8
        $region48: #{tpu_custom_call.1} parent=11 // pred_fallthru
          _
        // Predicated region
        $region49: #{tpu_custom_call.1} parent=11 // pred_check
          %p403 = pneg %p263
        $region50: #{tpu_custom_call.1} parent=11 // pred_check_branch
          %405 = sbr.rel (%p403) target = $region52
        $region51: #{tpu_custom_call.1} parent=11 // pred_region
          _
        $region52: #{tpu_custom_call.1} parent=11 // pred_fallthru
          _
        // Predicated region
        $region53: #{tpu_custom_call.1} parent=11 // pred_check
          %p406 = pneg %p284
        $region54: #{tpu_custom_call.1} parent=11 // pred_check_branch
          %408 = sbr.rel (%p406) target = $region56
        $region55: #{tpu_custom_call.1} parent=11 // pred_region
          %s410 = ssub.s32 4096, 4096
          %411 = vsyncadd [#allocation9], %s410
          %s412 = sshll.u32 [#allocation10], 4
          %s413 = int_to_ptr.vmem [resolvable:$true] %s412
          %418 = dma.hbm_to_vmem [thread:$0]  %s11, 4096, %s413, [#allocation9], 256, 256, 16
        $region56: #{tpu_custom_call.1} parent=11 // pred_fallthru
          _
        // Predicated region
        $region57: #{tpu_custom_call.1} parent=11 // pred_check
          %p419 = pneg %p305
        $region58: #{tpu_custom_call.1} parent=11 // pred_check_branch
          %421 = sbr.rel (%p419) target = $region60
        $region59: #{tpu_custom_call.1} parent=11 // pred_region
          _
        $region60: #{tpu_custom_call.1} parent=11 // pred_fallthru
          _
      $region12: #{tpu_custom_call.1} parent=5 // pred_fallthru
        _
      %p422 = scmp.lt.s32.totalorder %s27, 2
      // Predicated region
      $region61: #{tpu_custom_call.1} parent=5 // pred_check
        %p423 = pneg %p422
      $region62: #{tpu_custom_call.1} parent=5 // pred_check_branch
        %425 = sbr.rel (%p423) target = $region64
      $region63: #{tpu_custom_call.1} parent=5 // pred_region
        // Predicated region
        $region65: #{tpu_custom_call.1} parent=63 // pred_check
          %p426 = pneg %p47
        $region66: #{tpu_custom_call.1} parent=63 // pred_check_branch
          %428 = sbr.rel (%p426) target = $region68
        $region67: #{tpu_custom_call.1} parent=63 // pred_region
          %s429 = sand.u32 %s37, 1
          %s430 = scalar_lea.sflag [#allocation3], %s429
          %s431 = sand.u32 %s37, 1
          %s432 = smul.addr %s431, 32
          %s433 = scalar_lea.vmem [#allocation2], %s432
          %s435 = ssub.s32 512, 512
          %436 = vsyncadd %s430, %s435
          %s437 = smul.addr %s27, 4
          %s438 = smul.addr %s437, 128
          %s439 = scalar_lea.hbm %s0, %s438
          %s440 = sshll.u32 %s433, 4
          %s441 = int_to_ptr.vmem [resolvable:$true] %s440
          %446 = dma.hbm_to_vmem [thread:$0]  %s439, 512, %s441, %s430, 256, 256, 16
        $region68: #{tpu_custom_call.1} parent=63 // pred_fallthru
          _
      $region64: #{tpu_custom_call.1} parent=5 // pred_fallthru
        _
      %p447 = scmp.le.s32.totalorder 1, %s27
      %p448 = scmp.lt.s32.totalorder %s27, 3
      %p449 = pnand %p447, %p448
      %p450 = pneg %p449
      // Predicated region
      $region69: #{tpu_custom_call.1} parent=5 // pred_check
        _
      $region70: #{tpu_custom_call.1} parent=5 // pred_check_branch
        %452 = sbr.rel (%p449) target = $region72
      $region71: #{tpu_custom_call.1} parent=5 // pred_region
        %s453 = ssub.s32 %s27, 1
        %s454 = sand.u32 %s40, 1
        %s455 = scalar_lea.sflag [#allocation3], %s454
        %s456 = sand.u32 %s40, 1
        %s457 = smul.addr %s456, 32
        %s458 = scalar_lea.vmem [#allocation2], %s457
        // Predicated region
        $region73: #{tpu_custom_call.1} parent=71 // pred_check
          %p459 = pneg %p53
        $region74: #{tpu_custom_call.1} parent=71 // pred_check_branch
          %461 = sbr.rel (%p459) target = $region76
        $region75: #{tpu_custom_call.1} parent=71 // pred_region
          %462 = dma.done %s455, 512
        $region76: #{tpu_custom_call.1} parent=71 // pred_fallthru
          _
        // Predicated region
        $region77: #{tpu_custom_call.1} parent=71 // pred_check
          %p463 = pneg %p116
        $region78: #{tpu_custom_call.1} parent=71 // pred_check_branch
          %465 = sbr.rel (%p463) target = $region80
        $region79: #{tpu_custom_call.1} parent=71 // pred_region
          %466 = dma.done [#allocation6], 24576
        $region80: #{tpu_custom_call.1} parent=71 // pred_fallthru
          _
        // Predicated region
        $region81: #{tpu_custom_call.1} parent=71 // pred_check
          %p467 = pneg %p158
        $region82: #{tpu_custom_call.1} parent=71 // pred_check_branch
          %469 = sbr.rel (%p467) target = $region84
        $region83: #{tpu_custom_call.1} parent=71 // pred_region
          %470 = dma.done [#allocation6], 8192
        $region84: #{tpu_custom_call.1} parent=71 // pred_fallthru
          _
        // Predicated region
        $region85: #{tpu_custom_call.1} parent=71 // pred_check
          %p471 = pneg %p242
        $region86: #{tpu_custom_call.1} parent=71 // pred_check_branch
          %473 = sbr.rel (%p471) target = $region88
        $region87: #{tpu_custom_call.1} parent=71 // pred_region
          %474 = dma.done [#allocation9], 4096
        $region88: #{tpu_custom_call.1} parent=71 // pred_fallthru
          _
        // Predicated region
        $region89: #{tpu_custom_call.1} parent=71 // pred_check
          %p475 = pneg %p284
        $region90: #{tpu_custom_call.1} parent=71 // pred_check_branch
          %477 = sbr.rel (%p475) target = $region92
        $region91: #{tpu_custom_call.1} parent=71 // pred_region
          %478 = dma.done [#allocation9], 4096
        $region92: #{tpu_custom_call.1} parent=71 // pred_fallthru
          _
        %s479 = sand.u32 %s40, 1
        %s480 = scalar_lea.sflag [#allocation3], %s479
        %s481 = sand.u32 %s40, 1
        %s482 = smul.addr %s481, 32
        %s483 = scalar_lea.vmem [#allocation2], %s482
        %p484 = pneg %p53
        %p485 = pneg %p50
        %p486 = pneg %p74
        %p487 = pneg %p71
        %p488 = pneg %p95
        %p489 = pneg %p92
        %p490 = pneg %p116
        %p491 = pneg %p113
        %p492 = pneg %p137
        %p493 = pneg %p134
        %p494 = pneg %p158
        %p495 = pneg %p155
        %p496 = pneg %p179
        %p497 = pneg %p176
        %p498 = pneg %p200
        %p499 = pneg %p197
        %p500 = pneg %p221
        %p501 = pneg %p218
        %p502 = pneg %p242
        %p503 = pneg %p239
        %p504 = pneg %p263
        %p505 = pneg %p260
        %p506 = pneg %p284
        %p507 = pneg %p281
        %p508 = pneg %p305
        %p509 = pneg %p302
        %p510 = pneg %p331
        %p511 = pneg %p328
        %s512 = sand.u32 %s318, 1
        %s513 = scalar_lea.sflag [#allocation4], %s512
        %s514 = sand.u32 %s318, 1
        %s515 = smul.addr %s514, 32
        %s516 = scalar_lea.vmem [#allocation11], %s515
        %v517 = vld [vmem:[%s458] sm:$0xff]
        %v518 = vld [vmem:[%s458 + $0x8] sm:$0xff]
        %v519 = vld [vmem:[%s458 + $0x10] sm:$0xff]
        %v520 = vld [vmem:[%s458 + $0x18] sm:$0xff]
        %v521 = vadd.f32 %v517, %v518
        %522 = vadd.xlane.f32.xlu0 %v521
        %v523 = vpop.xlane.xlu0 %522
        %v524 = vadd.f32 %v519, %v520
        %525 = vadd.xlane.f32.xlu0 %v524
        %v526 = vpop.xlane.xlu0 %525
        %v527 = vrcp.pop 256.0
        %v528 = vmul.f32 %v523, %v527
        %v529 = vmul.f32 %v526, %v527
        %v530 = vsub.f32 %v517, %v528
        %v531 = vsub.f32 %v518, %v528
        %v532 = vsub.f32 %v519, %v529
        %v533 = vsub.f32 %v520, %v529
        %v534 = vmul.f32 %v530, %v530
        %v535 = vmul.f32 %v531, %v531
        %v536 = vmul.f32 %v532, %v532
        %v537 = vmul.f32 %v533, %v533
        %v538 = vadd.f32 %v534, %v535
        %539 = vadd.xlane.f32.xlu0 %v538
        %v540 = vpop.xlane.xlu0 %539
        %v541 = vadd.f32 %v536, %v537
        %542 = vadd.xlane.f32.xlu0 %v541
        %v543 = vpop.xlane.xlu0 %542
        %v544 = vmul.f32 %v540, %v527
        %v545 = vmul.f32 %v543, %v527
        %v546 = vadd.f32 %v544, 1e-06
        %v547 = vadd.f32 %v545, 1e-06
        %v548 = vrsqrt.pop %v546
        %v549 = vrsqrt.pop %v547
        %v550 = vmul.f32 %v530, %v548
        %v551 = vmul.f32 %v531, %v548
        %v552 = vmul.f32 %v532, %v549
        %v553 = vmul.f32 %v533, %v549
        %v554 = vld [vmem:[%s1] sm:$0x3]
        %v556 = vlaneseq
        %v557 = vshrl.u32 %v556, 7
        %v558 = vsub.s32 0, %v557
        %v559 = vrot.slane %v554, %v558
        %v560 = vlaneseq
        %v561 = vshrl.u32 %v560, 7
        %v562 = vsub.s32 1, %v561
        %v563 = vrot.slane %v554, %v562
        %v566 = vmul.f32 %v550, %v559
        %v567 = vmul.f32 %v551, %v563
        %v568 = vmul.f32 %v552, %v559
        %v569 = vmul.f32 %v553, %v563
        %v570 = vld [vmem:[%s2] sm:$0x3]
        %v572 = vlaneseq
        %v573 = vshrl.u32 %v572, 7
        %v574 = vsub.s32 0, %v573
        %v575 = vrot.slane %v570, %v574
        %v576 = vlaneseq
        %v577 = vshrl.u32 %v576, 7
        %v578 = vsub.s32 1, %v577
        %v579 = vrot.slane %v570, %v578
        %v582 = vadd.f32 %v566, %v575
        %v583 = vadd.f32 %v567, %v579
        %v584 = vadd.f32 %v568, %v575
        %v585 = vadd.f32 %v569, %v579
        %v586 = vld [vmem:[#allocation5] sm:$0xff]
        %v587 = vld [vmem:[#allocation5 + $0x8] sm:$0xff]
        %v588 = vld [vmem:[#allocation5 + $0x10] sm:$0xff]
        %v589 = vld [vmem:[#allocation5 + $0x18] sm:$0xff]
        %v590 = vld [vmem:[#allocation5 + $0x20] sm:$0xff]
        %v591 = vld [vmem:[#allocation5 + $0x28] sm:$0xff]
        %v592 = vld [vmem:[#allocation5 + $0x30] sm:$0xff]
        %v593 = vld [vmem:[#allocation5 + $0x38] sm:$0xff]
        %v594 = vld [vmem:[#allocation5 + $0x40] sm:$0xff]
        %v595 = vld [vmem:[#allocation5 + $0x48] sm:$0xff]
        %v596 = vld [vmem:[#allocation5 + $0x50] sm:$0xff]
        %v597 = vld [vmem:[#allocation5 + $0x58] sm:$0xff]
        %v598 = vld [vmem:[#allocation5 + $0x60] sm:$0xff]
        %v599 = vld [vmem:[#allocation5 + $0x68] sm:$0xff]
        %v600 = vld [vmem:[#allocation5 + $0x70] sm:$0xff]
        %v601 = vld [vmem:[#allocation5 + $0x78] sm:$0xff]
        %v602 = vld [vmem:[#allocation5 + $0x80] sm:$0xff]
        %v603 = vld [vmem:[#allocation5 + $0x88] sm:$0xff]
        %v604 = vld [vmem:[#allocation5 + $0x90] sm:$0xff]
        %v605 = vld [vmem:[#allocation5 + $0x98] sm:$0xff]
        %v606 = vld [vmem:[#allocation5 + $0xa0] sm:$0xff]
        %v607 = vld [vmem:[#allocation5 + $0xa8] sm:$0xff]
        %v608 = vld [vmem:[#allocation5 + $0xb0] sm:$0xff]
        %v609 = vld [vmem:[#allocation5 + $0xb8] sm:$0xff]
        %v610 = vld [vmem:[#allocation5 + $0xc0] sm:$0xff]
        %v611 = vld [vmem:[#allocation5 + $0xc8] sm:$0xff]
        %v612 = vld [vmem:[#allocation5 + $0xd0] sm:$0xff]
        %v613 = vld [vmem:[#allocation5 + $0xd8] sm:$0xff]
        %v614 = vld [vmem:[#allocation5 + $0xe0] sm:$0xff]
        %v615 = vld [vmem:[#allocation5 + $0xe8] sm:$0xff]
        %v616 = vld [vmem:[#allocation5 + $0xf0] sm:$0xff]
        %v617 = vld [vmem:[#allocation5 + $0xf8] sm:$0xff]
        %v618 = vld [vmem:[#allocation5 + $0x100] sm:$0xff]
        %v619 = vld [vmem:[#allocation5 + $0x108] sm:$0xff]
        %v620 = vld [vmem:[#allocation5 + $0x110] sm:$0xff]
        %v621 = vld [vmem:[#allocation5 + $0x118] sm:$0xff]
        %v622 = vld [vmem:[#allocation5 + $0x120] sm:$0xff]
        %v623 = vld [vmem:[#allocation5 + $0x128] sm:$0xff]
        %v624 = vld [vmem:[#allocation5 + $0x130] sm:$0xff]
        %v625 = vld [vmem:[#allocation5 + $0x138] sm:$0xff]
        %v626 = vld [vmem:[#allocation5 + $0x140] sm:$0xff]
        %v627 = vld [vmem:[#allocation5 + $0x148] sm:$0xff]
        %v628 = vld [vmem:[#allocation5 + $0x150] sm:$0xff]
        %v629 = vld [vmem:[#allocation5 + $0x158] sm:$0xff]
        %v630 = vld [vmem:[#allocation5 + $0x160] sm:$0xff]
        %v631 = vld [vmem:[#allocation5 + $0x168] sm:$0xff]
        %v632 = vld [vmem:[#allocation5 + $0x170] sm:$0xff]
        %v633 = vld [vmem:[#allocation5 + $0x178] sm:$0xff]
        %v634 = vld [vmem:[#allocation5 + $0x180] sm:$0xff]
        %v635 = vld [vmem:[#allocation5 + $0x188] sm:$0xff]
        %v636 = vld [vmem:[#allocation5 + $0x190] sm:$0xff]
        %v637 = vld [vmem:[#allocation5 + $0x198] sm:$0xff]
        %v638 = vld [vmem:[#allocation5 + $0x1a0] sm:$0xff]
        %v639 = vld [vmem:[#allocation5 + $0x1a8] sm:$0xff]
        %v640 = vld [vmem:[#allocation5 + $0x1b0] sm:$0xff]
        %v641 = vld [vmem:[#allocation5 + $0x1b8] sm:$0xff]
        %v642 = vld [vmem:[#allocation5 + $0x1c0] sm:$0xff]
        %v643 = vld [vmem:[#allocation5 + $0x1c8] sm:$0xff]
        %v644 = vld [vmem:[#allocation5 + $0x1d0] sm:$0xff]
        %v645 = vld [vmem:[#allocation5 + $0x1d8] sm:$0xff]
        %v646 = vld [vmem:[#allocation5 + $0x1e0] sm:$0xff]
        %v647 = vld [vmem:[#allocation5 + $0x1e8] sm:$0xff]
        %v648 = vld [vmem:[#allocation5 + $0x1f0] sm:$0xff]
        %v649 = vld [vmem:[#allocation5 + $0x1f8] sm:$0xff]
        %v650 = vld [vmem:[#allocation5 + $0x200] sm:$0xff]
        %v651 = vld [vmem:[#allocation5 + $0x208] sm:$0xff]
        %v652 = vld [vmem:[#allocation5 + $0x210] sm:$0xff]
        %v653 = vld [vmem:[#allocation5 + $0x218] sm:$0xff]
        %v654 = vld [vmem:[#allocation5 + $0x220] sm:$0xff]
        %v655 = vld [vmem:[#allocation5 + $0x228] sm:$0xff]
        %v656 = vld [vmem:[#allocation5 + $0x230] sm:$0xff]
        %v657 = vld [vmem:[#allocation5 + $0x238] sm:$0xff]
        %v658 = vld [vmem:[#allocation5 + $0x240] sm:$0xff]
        %v659 = vld [vmem:[#allocation5 + $0x248] sm:$0xff]
        %v660 = vld [vmem:[#allocation5 + $0x250] sm:$0xff]
        %v661 = vld [vmem:[#allocation5 + $0x258] sm:$0xff]
        %v662 = vld [vmem:[#allocation5 + $0x260] sm:$0xff]
        %v663 = vld [vmem:[#allocation5 + $0x268] sm:$0xff]
        %v664 = vld [vmem:[#allocation5 + $0x270] sm:$0xff]
        %v665 = vld [vmem:[#allocation5 + $0x278] sm:$0xff]
        %v666 = vld [vmem:[#allocation5 + $0x280] sm:$0xff]
        %v667 = vld [vmem:[#allocation5 + $0x288] sm:$0xff]
        %v668 = vld [vmem:[#allocation5 + $0x290] sm:$0xff]
        %v669 = vld [vmem:[#allocation5 + $0x298] sm:$0xff]
        %v670 = vld [vmem:[#allocation5 + $0x2a0] sm:$0xff]
        %v671 = vld [vmem:[#allocation5 + $0x2a8] sm:$0xff]
        %v672 = vld [vmem:[#allocation5 + $0x2b0] sm:$0xff]
        %v673 = vld [vmem:[#allocation5 + $0x2b8] sm:$0xff]
        %v674 = vld [vmem:[#allocation5 + $0x2c0] sm:$0xff]
        %v675 = vld [vmem:[#allocation5 + $0x2c8] sm:$0xff]
        %v676 = vld [vmem:[#allocation5 + $0x2d0] sm:$0xff]
        %v677 = vld [vmem:[#allocation5 + $0x2d8] sm:$0xff]
        %v678 = vld [vmem:[#allocation5 + $0x2e0] sm:$0xff]
        %v679 = vld [vmem:[#allocation5 + $0x2e8] sm:$0xff]
        %v680 = vld [vmem:[#allocation5 + $0x2f0] sm:$0xff]
        %v681 = vld [vmem:[#allocation5 + $0x2f8] sm:$0xff]
        %v682 = vld [vmem:[#allocation5 + $0x300] sm:$0xff]
        %v683 = vld [vmem:[#allocation5 + $0x308] sm:$0xff]
        %v684 = vld [vmem:[#allocation5 + $0x310] sm:$0xff]
        %v685 = vld [vmem:[#allocation5 + $0x318] sm:$0xff]
        %v686 = vld [vmem:[#allocation5 + $0x320] sm:$0xff]
        %v687 = vld [vmem:[#allocation5 + $0x328] sm:$0xff]
        %v688 = vld [vmem:[#allocation5 + $0x330] sm:$0xff]
        %v689 = vld [vmem:[#allocation5 + $0x338] sm:$0xff]
        %v690 = vld [vmem:[#allocation5 + $0x340] sm:$0xff]
        %v691 = vld [vmem:[#allocation5 + $0x348] sm:$0xff]
        %v692 = vld [vmem:[#allocation5 + $0x350] sm:$0xff]
        %v693 = vld [vmem:[#allocation5 + $0x358] sm:$0xff]
        %v694 = vld [vmem:[#allocation5 + $0x360] sm:$0xff]
        %v695 = vld [vmem:[#allocation5 + $0x368] sm:$0xff]
        %v696 = vld [vmem:[#allocation5 + $0x370] sm:$0xff]
        %v697 = vld [vmem:[#allocation5 + $0x378] sm:$0xff]
        %v698 = vld [vmem:[#allocation5 + $0x380] sm:$0xff]
        %v699 = vld [vmem:[#allocation5 + $0x388] sm:$0xff]
        %v700 = vld [vmem:[#allocation5 + $0x390] sm:$0xff]
        %v701 = vld [vmem:[#allocation5 + $0x398] sm:$0xff]
        %v702 = vld [vmem:[#allocation5 + $0x3a0] sm:$0xff]
        %v703 = vld [vmem:[#allocation5 + $0x3a8] sm:$0xff]
        %v704 = vld [vmem:[#allocation5 + $0x3b0] sm:$0xff]
        %v705 = vld [vmem:[#allocation5 + $0x3b8] sm:$0xff]
        %v706 = vld [vmem:[#allocation5 + $0x3c0] sm:$0xff]
        %v707 = vld [vmem:[#allocation5 + $0x3c8] sm:$0xff]
        %v708 = vld [vmem:[#allocation5 + $0x3d0] sm:$0xff]
        %v709 = vld [vmem:[#allocation5 + $0x3d8] sm:$0xff]
        %v710 = vld [vmem:[#allocation5 + $0x3e0] sm:$0xff]
        %v711 = vld [vmem:[#allocation5 + $0x3e8] sm:$0xff]
        %v712 = vld [vmem:[#allocation5 + $0x3f0] sm:$0xff]
        %v713 = vld [vmem:[#allocation5 + $0x3f8] sm:$0xff]
        %v714 = vld [vmem:[#allocation5 + $0x400] sm:$0xff]
        %v715 = vld [vmem:[#allocation5 + $0x408] sm:$0xff]
        %v716 = vld [vmem:[#allocation5 + $0x410] sm:$0xff]
        %v717 = vld [vmem:[#allocation5 + $0x418] sm:$0xff]
        %v718 = vld [vmem:[#allocation5 + $0x420] sm:$0xff]
        %v719 = vld [vmem:[#allocation5 + $0x428] sm:$0xff]
        %v720 = vld [vmem:[#allocation5 + $0x430] sm:$0xff]
        %v721 = vld [vmem:[#allocation5 + $0x438] sm:$0xff]
        %v722 = vld [vmem:[#allocation5 + $0x440] sm:$0xff]
        %v723 = vld [vmem:[#allocation5 + $0x448] sm:$0xff]
        %v724 = vld [vmem:[#allocation5 + $0x450] sm:$0xff]
        %v725 = vld [vmem:[#allocation5 + $0x458] sm:$0xff]
        %v726 = vld [vmem:[#allocation5 + $0x460] sm:$0xff]
        %v727 = vld [vmem:[#allocation5 + $0x468] sm:$0xff]
        %v728 = vld [vmem:[#allocation5 + $0x470] sm:$0xff]
        %v729 = vld [vmem:[#allocation5 + $0x478] sm:$0xff]
        %v730 = vld [vmem:[#allocation5 + $0x480] sm:$0xff]
        %v731 = vld [vmem:[#allocation5 + $0x488] sm:$0xff]
        %v732 = vld [vmem:[#allocation5 + $0x490] sm:$0xff]
        %v733 = vld [vmem:[#allocation5 + $0x498] sm:$0xff]
        %v734 = vld [vmem:[#allocation5 + $0x4a0] sm:$0xff]
        %v735 = vld [vmem:[#allocation5 + $0x4a8] sm:$0xff]
        %v736 = vld [vmem:[#allocation5 + $0x4b0] sm:$0xff]
        %v737 = vld [vmem:[#allocation5 + $0x4b8] sm:$0xff]
        %v738 = vld [vmem:[#allocation5 + $0x4c0] sm:$0xff]
        %v739 = vld [vmem:[#allocation5 + $0x4c8] sm:$0xff]
        %v740 = vld [vmem:[#allocation5 + $0x4d0] sm:$0xff]
        %v741 = vld [vmem:[#allocation5 + $0x4d8] sm:$0xff]
        %v742 = vld [vmem:[#allocation5 + $0x4e0] sm:$0xff]
        %v743 = vld [vmem:[#allocation5 + $0x4e8] sm:$0xff]
        %v744 = vld [vmem:[#allocation5 + $0x4f0] sm:$0xff]
        %v745 = vld [vmem:[#allocation5 + $0x4f8] sm:$0xff]
        %v746 = vld [vmem:[#allocation5 + $0x500] sm:$0xff]
        %v747 = vld [vmem:[#allocation5 + $0x508] sm:$0xff]
        %v748 = vld [vmem:[#allocation5 + $0x510] sm:$0xff]
        %v749 = vld [vmem:[#allocation5 + $0x518] sm:$0xff]
        %v750 = vld [vmem:[#allocation5 + $0x520] sm:$0xff]
        %v751 = vld [vmem:[#allocation5 + $0x528] sm:$0xff]
        %v752 = vld [vmem:[#allocation5 + $0x530] sm:$0xff]
        %v753 = vld [vmem:[#allocation5 + $0x538] sm:$0xff]
        %v754 = vld [vmem:[#allocation5 + $0x540] sm:$0xff]
        %v755 = vld [vmem:[#allocation5 + $0x548] sm:$0xff]
        %v756 = vld [vmem:[#allocation5 + $0x550] sm:$0xff]
        %v757 = vld [vmem:[#allocation5 + $0x558] sm:$0xff]
        %v758 = vld [vmem:[#allocation5 + $0x560] sm:$0xff]
        %v759 = vld [vmem:[#allocation5 + $0x568] sm:$0xff]
        %v760 = vld [vmem:[#allocation5 + $0x570] sm:$0xff]
        %v761 = vld [vmem:[#allocation5 + $0x578] sm:$0xff]
        %v762 = vld [vmem:[#allocation5 + $0x580] sm:$0xff]
        %v763 = vld [vmem:[#allocation5 + $0x588] sm:$0xff]
        %v764 = vld [vmem:[#allocation5 + $0x590] sm:$0xff]
        %v765 = vld [vmem:[#allocation5 + $0x598] sm:$0xff]
        %v766 = vld [vmem:[#allocation5 + $0x5a0] sm:$0xff]
        %v767 = vld [vmem:[#allocation5 + $0x5a8] sm:$0xff]
        %v768 = vld [vmem:[#allocation5 + $0x5b0] sm:$0xff]
        %v769 = vld [vmem:[#allocation5 + $0x5b8] sm:$0xff]
        %v770 = vld [vmem:[#allocation5 + $0x5c0] sm:$0xff]
        %v771 = vld [vmem:[#allocation5 + $0x5c8] sm:$0xff]
        %v772 = vld [vmem:[#allocation5 + $0x5d0] sm:$0xff]
        %v773 = vld [vmem:[#allocation5 + $0x5d8] sm:$0xff]
        %v774 = vld [vmem:[#allocation5 + $0x5e0] sm:$0xff]
        %v775 = vld [vmem:[#allocation5 + $0x5e8] sm:$0xff]
        %v776 = vld [vmem:[#allocation5 + $0x5f0] sm:$0xff]
        %v777 = vld [vmem:[#allocation5 + $0x5f8] sm:$0xff]
        %v778 = vld [vmem:[%s4] sm:$0x3f]
        %v780 = vlaneseq
        %v781 = vshrl.u32 %v780, 7
        %v782 = vsub.s32 0, %v781
        %v783 = vrot.slane %v778, %v782
        %v784 = vlaneseq
        %v785 = vshrl.u32 %v784, 7
        %v786 = vsub.s32 1, %v785
        %v787 = vrot.slane %v778, %v786
        %v788 = vlaneseq
        %v789 = vshrl.u32 %v788, 7
        %v790 = vsub.s32 2, %v789
        %v791 = vrot.slane %v778, %v790
        %v792 = vlaneseq
        %v793 = vshrl.u32 %v792, 7
        %v794 = vsub.s32 3, %v793
        %v795 = vrot.slane %v778, %v794
        %v796 = vlaneseq
        %v797 = vshrl.u32 %v796, 7
        %v798 = vsub.s32 4, %v797
        %v799 = vrot.slane %v778, %v798
        %v800 = vlaneseq
        %v801 = vshrl.u32 %v800, 7
        %v802 = vsub.s32 5, %v801
        %v803 = vrot.slane %v778, %v802
        %810 = vmatprep.subr.mxu0 %v587
        %811 = vmatpush1.msra.mxu0 %v586
        %812 = vmatprep.subr.mxu0 %v593
        %813 = vmatpush1.msra.mxu0 %v592
        %814 = vmatprep.subr.mxu0 %v599
        %815 = vmatpush1.msra.mxu0 %v598
        %816 = vmatprep.subr.mxu0 %v605
        %817 = vmatpush1.msra.mxu0 %v604
        %818 = vmatprep.subr.mxu0 %v611
        %819 = vmatpush1.msra.mxu0 %v610
        %820 = vmatprep.subr.mxu0 %v617
        %821 = vmatpush1.msra.mxu0 %v616
        %822 = vmatprep.subr.mxu0 %v623
        %823 = vmatpush1.msra.mxu0 %v622
        %824 = vmatprep.subr.mxu0 %v629
        %825 = vmatpush1.msra.mxu0 %v628
        %826 = vmatprep.subr.mxu0 %v635
        %827 = vmatpush1.msra.mxu0 %v634
        %828 = vmatprep.subr.mxu0 %v641
        %829 = vmatpush1.msra.mxu0 %v640
        %830 = vmatprep.subr.mxu0 %v647
        %831 = vmatpush1.msra.mxu0 %v646
        %832 = vmatprep.subr.mxu0 %v653
        %833 = vmatpush1.msra.mxu0 %v652
        %834 = vmatprep.subr.mxu0 %v659
        %835 = vmatpush1.msra.mxu0 %v658
        %836 = vmatprep.subr.mxu0 %v665
        %837 = vmatpush1.msra.mxu0 %v664
        %838 = vmatprep.subr.mxu0 %v671
        %839 = vmatpush1.msra.mxu0 %v670
        %840 = vmatprep.subr.mxu0 %v677
        %841 = vmatpush1.msra.mxu0 %v676
        %842 = vmatprep.subr.mxu0 %v683
        %843 = vmatpush1.msra.mxu0 %v682
        %844 = vmatprep.subr.mxu0 %v689
        %845 = vmatpush1.msra.mxu0 %v688
        %846 = vmatprep.subr.mxu0 %v695
        %847 = vmatpush1.msra.mxu0 %v694
        %848 = vmatprep.subr.mxu0 %v701
        %849 = vmatpush1.msra.mxu0 %v700
        %850 = vmatprep.subr.mxu0 %v707
        %851 = vmatpush1.msra.mxu0 %v706
        %852 = vmatprep.subr.mxu0 %v713
        %853 = vmatpush1.msra.mxu0 %v712
        %854 = vmatprep.subr.mxu0 %v719
        %855 = vmatpush1.msra.mxu0 %v718
        %856 = vmatprep.subr.mxu0 %v725
        %857 = vmatpush1.msra.mxu0 %v724
        %858 = vmatprep.subr.mxu0 %v731
        %859 = vmatpush1.msra.mxu0 %v730
        %860 = vmatprep.subr.mxu0 %v737
        %861 = vmatpush1.msra.mxu0 %v736
        %862 = vmatprep.subr.mxu0 %v743
        %863 = vmatpush1.msra.mxu0 %v742
        %864 = vmatprep.subr.mxu0 %v749
        %865 = vmatpush1.msra.mxu0 %v748
        %866 = vmatprep.subr.mxu0 %v755
        %867 = vmatpush1.msra.mxu0 %v754
        %868 = vmatprep.subr.mxu0 %v761
        %869 = vmatpush1.msra.mxu0 %v760
        %870 = vmatprep.subr.mxu0 %v767
        %871 = vmatpush1.msra.mxu0 %v766
        %872 = vmatprep.subr.mxu0 %v773
        %873 = vmatpush1.msra.mxu0 %v772
        %874 = vmatprep.mubr.f32.mxu0 %v583
        %875 = vmatmul.mubr.f32.gmra.mrb[0].mxu0 %v582
        %v876 = vpop.f32.mrb[0].mxu0
        %v877 = vadd.f32 %v783, %v876
        %v878 = vpop.f32.mrb[0].mxu0
        %v879 = vadd.f32 %v787, %v878
        %880 = vmatprep.mubr.f32.mxu0 %v585
        %881 = vmatmul.mubr.f32.gmra.mrb[0].mxu0 %v584
        %v882 = vpop.f32.mrb[0].mxu0
        %v883 = vadd.f32 %v783, %v882
        %v884 = vpop.f32.mrb[0].mxu0
        %v885 = vadd.f32 %v787, %v884
        %886 = vdwg.mxu0
        %887 = vmatprep.subr.mxu0 %v589
        %888 = vmatpush1.msra.mxu0 %v588
        %889 = vmatprep.subr.mxu0 %v595
        %890 = vmatpush1.msra.mxu0 %v594
        %891 = vmatprep.subr.mxu0 %v601
        %892 = vmatpush1.msra.mxu0 %v600
        %893 = vmatprep.subr.mxu0 %v607
        %894 = vmatpush1.msra.mxu0 %v606
        %895 = vmatprep.subr.mxu0 %v613
        %896 = vmatpush1.msra.mxu0 %v612
        %897 = vmatprep.subr.mxu0 %v619
        %898 = vmatpush1.msra.mxu0 %v618
        %899 = vmatprep.subr.mxu0 %v625
        %900 = vmatpush1.msra.mxu0 %v624
        %901 = vmatprep.subr.mxu0 %v631
        %902 = vmatpush1.msra.mxu0 %v630
        %903 = vmatprep.subr.mxu0 %v637
        %904 = vmatpush1.msra.mxu0 %v636
        %905 = vmatprep.subr.mxu0 %v643
        %906 = vmatpush1.msra.mxu0 %v642
        %907 = vmatprep.subr.mxu0 %v649
        %908 = vmatpush1.msra.mxu0 %v648
        %909 = vmatprep.subr.mxu0 %v655
        %910 = vmatpush1.msra.mxu0 %v654
        %911 = vmatprep.subr.mxu0 %v661
        %912 = vmatpush1.msra.mxu0 %v660
        %913 = vmatprep.subr.mxu0 %v667
        %914 = vmatpush1.msra.mxu0 %v666
        %915 = vmatprep.subr.mxu0 %v673
        %916 = vmatpush1.msra.mxu0 %v672
        %917 = vmatprep.subr.mxu0 %v679
        %918 = vmatpush1.msra.mxu0 %v678
        %919 = vmatprep.subr.mxu0 %v685
        %920 = vmatpush1.msra.mxu0 %v684
        %921 = vmatprep.subr.mxu0 %v691
        %922 = vmatpush1.msra.mxu0 %v690
        %923 = vmatprep.subr.mxu0 %v697
        %924 = vmatpush1.msra.mxu0 %v696
        %925 = vmatprep.subr.mxu0 %v703
        %926 = vmatpush1.msra.mxu0 %v702
        %927 = vmatprep.subr.mxu0 %v709
        %928 = vmatpush1.msra.mxu0 %v708
        %929 = vmatprep.subr.mxu0 %v715
        %930 = vmatpush1.msra.mxu0 %v714
        %931 = vmatprep.subr.mxu0 %v721
        %932 = vmatpush1.msra.mxu0 %v720
        %933 = vmatprep.subr.mxu0 %v727
        %934 = vmatpush1.msra.mxu0 %v726
        %935 = vmatprep.subr.mxu0 %v733
        %936 = vmatpush1.msra.mxu0 %v732
        %937 = vmatprep.subr.mxu0 %v739
        %938 = vmatpush1.msra.mxu0 %v738
        %939 = vmatprep.subr.mxu0 %v745
        %940 = vmatpush1.msra.mxu0 %v744
        %941 = vmatprep.subr.mxu0 %v751
        %942 = vmatpush1.msra.mxu0 %v750
        %943 = vmatprep.subr.mxu0 %v757
        %944 = vmatpush1.msra.mxu0 %v756
        %945 = vmatprep.subr.mxu0 %v763
        %946 = vmatpush1.msra.mxu0 %v762
        %947 = vmatprep.subr.mxu0 %v769
        %948 = vmatpush1.msra.mxu0 %v768
        %949 = vmatprep.subr.mxu0 %v775
        %950 = vmatpush1.msra.mxu0 %v774
        %951 = vmatprep.mubr.f32.mxu0 %v583
        %952 = vmatmul.mubr.f32.gmra.mrb[0].mxu0 %v582
        %v953 = vpop.f32.mrb[0].mxu0
        %v954 = vadd.f32 %v791, %v953
        %v955 = vpop.f32.mrb[0].mxu0
        %v956 = vadd.f32 %v795, %v955
        %957 = vmatprep.mubr.f32.mxu0 %v585
        %958 = vmatmul.mubr.f32.gmra.mrb[0].mxu0 %v584
        %v959 = vpop.f32.mrb[0].mxu0
        %v960 = vadd.f32 %v791, %v959
        %v961 = vpop.f32.mrb[0].mxu0
        %v962 = vadd.f32 %v795, %v961
        %963 = vdwg.mxu0
        %964 = vmatprep.subr.mxu0 %v591
        %965 = vmatpush1.msra.mxu0 %v590
        %966 = vmatprep.subr.mxu0 %v597
        %967 = vmatpush1.msra.mxu0 %v596
        %968 = vmatprep.subr.mxu0 %v603
        %969 = vmatpush1.msra.mxu0 %v602
        %970 = vmatprep.subr.mxu0 %v609
        %971 = vmatpush1.msra.mxu0 %v608
        %972 = vmatprep.subr.mxu0 %v615
        %973 = vmatpush1.msra.mxu0 %v614
        %974 = vmatprep.subr.mxu0 %v621
        %975 = vmatpush1.msra.mxu0 %v620
        %976 = vmatprep.subr.mxu0 %v627
        %977 = vmatpush1.msra.mxu0 %v626
        %978 = vmatprep.subr.mxu0 %v633
        %979 = vmatpush1.msra.mxu0 %v632
        %980 = vmatprep.subr.mxu0 %v639
        %981 = vmatpush1.msra.mxu0 %v638
        %982 = vmatprep.subr.mxu0 %v645
        %983 = vmatpush1.msra.mxu0 %v644
        %984 = vmatprep.subr.mxu0 %v651
        %985 = vmatpush1.msra.mxu0 %v650
        %986 = vmatprep.subr.mxu0 %v657
        %987 = vmatpush1.msra.mxu0 %v656
        %988 = vmatprep.subr.mxu0 %v663
        %989 = vmatpush1.msra.mxu0 %v662
        %990 = vmatprep.subr.mxu0 %v669
        %991 = vmatpush1.msra.mxu0 %v668
        %992 = vmatprep.subr.mxu0 %v675
        %993 = vmatpush1.msra.mxu0 %v674
        %994 = vmatprep.subr.mxu0 %v681
        %995 = vmatpush1.msra.mxu0 %v680
        %996 = vmatprep.subr.mxu0 %v687
        %997 = vmatpush1.msra.mxu0 %v686
        %998 = vmatprep.subr.mxu0 %v693
        %999 = vmatpush1.msra.mxu0 %v692
        %1000 = vmatprep.subr.mxu0 %v699
        %1001 = vmatpush1.msra.mxu0 %v698
        %1002 = vmatprep.subr.mxu0 %v705
        %1003 = vmatpush1.msra.mxu0 %v704
        %1004 = vmatprep.subr.mxu0 %v711
        %1005 = vmatpush1.msra.mxu0 %v710
        %1006 = vmatprep.subr.mxu0 %v717
        %1007 = vmatpush1.msra.mxu0 %v716
        %1008 = vmatprep.subr.mxu0 %v723
        %1009 = vmatpush1.msra.mxu0 %v722
        %1010 = vmatprep.subr.mxu0 %v729
        %1011 = vmatpush1.msra.mxu0 %v728
        %1012 = vmatprep.subr.mxu0 %v735
        %1013 = vmatpush1.msra.mxu0 %v734
        %1014 = vmatprep.subr.mxu0 %v741
        %1015 = vmatpush1.msra.mxu0 %v740
        %1016 = vmatprep.subr.mxu0 %v747
        %1017 = vmatpush1.msra.mxu0 %v746
        %1018 = vmatprep.subr.mxu0 %v753
        %1019 = vmatpush1.msra.mxu0 %v752
        %1020 = vmatprep.subr.mxu0 %v759
        %1021 = vmatpush1.msra.mxu0 %v758
        %1022 = vmatprep.subr.mxu0 %v765
        %1023 = vmatpush1.msra.mxu0 %v764
        %1024 = vmatprep.subr.mxu0 %v771
        %1025 = vmatpush1.msra.mxu0 %v770
        %1026 = vmatprep.subr.mxu0 %v777
        %1027 = vmatpush1.msra.mxu0 %v776
        %1028 = vmatprep.mubr.f32.mxu0 %v583
        %1029 = vmatmul.mubr.f32.gmra.mrb[0].mxu0 %v582
        %v1030 = vpop.f32.mrb[0].mxu0
        %v1031 = vadd.f32 %v799, %v1030
        %v1032 = vpop.f32.mrb[0].mxu0
        %v1033 = vadd.f32 %v803, %v1032
        %1034 = vmatprep.mubr.f32.mxu0 %v585
        %1035 = vmatmul.mubr.f32.gmra.mrb[0].mxu0 %v584
        %v1036 = vpop.f32.mrb[0].mxu0
        %v1037 = vadd.f32 %v799, %v1036
        %v1038 = vpop.f32.mrb[0].mxu0
        %v1039 = vadd.f32 %v803, %v1038
        %1040 = vdwg.mxu0
        %v1041 = vcombine.high %v877, 0.0
        %v1043 = vunpack.c.l.s4 1983009808
        %v1044 = vunpack.c.0.s8 %v1043
        %v1045 = vlaneseq
        %v1046 = vshrl.u32 %v1045, 7
        %v1047 = vsub.s32 %v1044, %v1046
        %v1048 = vrot.slane %v877, %v1047
        %v1050 = vunpack.c.l.s4 1983009808
        %v1051 = vunpack.c.0.s8 %v1050
        %v1052 = vlaneseq
        %v1053 = vshrl.u32 %v1052, 7
        %v1054 = vsub.s32 %v1051, %v1053
        %v1055 = vrot.slane %v1041, %v1054
        %v1056 = vcombine.high %v879, 0.0
        %v1058 = vunpack.c.l.s4 1983009808
        %v1059 = vunpack.c.0.s8 %v1058
        %v1060 = vlaneseq
        %v1061 = vshrl.u32 %v1060, 7
        %v1062 = vsub.s32 %v1059, %v1061
        %v1063 = vrot.slane %v879, %v1062
        %v1065 = vunpack.c.l.s4 1983009808
        %v1066 = vunpack.c.0.s8 %v1065
        %v1067 = vlaneseq
        %v1068 = vshrl.u32 %v1067, 7
        %v1069 = vsub.s32 %v1066, %v1068
        %v1070 = vrot.slane %v1056, %v1069
        %v1071 = vcombine.low %v1048, %v1063
        %v1072 = vcombine.high %v1048, %v1063
        %v1074 = vunpack.c.l.s4 1934713408
        %v1075 = vunpack.c.0.s8 %v1074
        %v1076 = vlaneseq
        %v1077 = vshrl.u32 %v1076, 7
        %v1078 = vsub.s32 %v1075, %v1077
        %v1079 = vrot.slane %v1071, %v1078
        %v1081 = vunpack.c.l.s4 1934713408
        %v1082 = vunpack.c.0.s8 %v1081
        %v1083 = vlaneseq
        %v1084 = vshrl.u32 %v1083, 7
        %v1085 = vsub.s32 %v1082, %v1084
        %v1086 = vrot.slane %v1072, %v1085
        %v1087 = vcombine.low %v1055, %v1070
        %v1088 = vcombine.high %v1055, %v1070
        %v1090 = vunpack.c.l.s4 1934713408
        %v1091 = vunpack.c.0.s8 %v1090
        %v1092 = vlaneseq
        %v1093 = vshrl.u32 %v1092, 7
        %v1094 = vsub.s32 %v1091, %v1093
        %v1095 = vrot.slane %v1087, %v1094
        %v1097 = vunpack.c.l.s4 1934713408
        %v1098 = vunpack.c.0.s8 %v1097
        %v1099 = vlaneseq
        %v1100 = vshrl.u32 %v1099, 7
        %v1101 = vsub.s32 %v1098, %v1100
        %v1102 = vrot.slane %v1088, %v1101
        %v1103 = vcombine.high %v1079, 0.0
        %v1104 = vcombine.high %v1086, 0.0
        %v1105 = vcombine.high %v1095, 0.0
        %v1106 = vcombine.high %v1102, 0.0
        %v1107 = vcombine.high %v883, 0.0
        %v1109 = vunpack.c.l.s4 1983009808
        %v1110 = vunpack.c.0.s8 %v1109
        %v1111 = vlaneseq
        %v1112 = vshrl.u32 %v1111, 7
        %v1113 = vsub.s32 %v1110, %v1112
        %v1114 = vrot.slane %v883, %v1113
        %v1116 = vunpack.c.l.s4 1983009808
        %v1117 = vunpack.c.0.s8 %v1116
        %v1118 = vlaneseq
        %v1119 = vshrl.u32 %v1118, 7
        %v1120 = vsub.s32 %v1117, %v1119
        %v1121 = vrot.slane %v1107, %v1120
        %v1122 = vcombine.high %v885, 0.0
        %v1124 = vunpack.c.l.s4 1983009808
        %v1125 = vunpack.c.0.s8 %v1124
        %v1126 = vlaneseq
        %v1127 = vshrl.u32 %v1126, 7
        %v1128 = vsub.s32 %v1125, %v1127
        %v1129 = vrot.slane %v885, %v1128
        %v1131 = vunpack.c.l.s4 1983009808
        %v1132 = vunpack.c.0.s8 %v1131
        %v1133 = vlaneseq
        %v1134 = vshrl.u32 %v1133, 7
        %v1135 = vsub.s32 %v1132, %v1134
        %v1136 = vrot.slane %v1122, %v1135
        %v1137 = vcombine.low %v1114, %v1129
        %v1138 = vcombine.high %v1114, %v1129
        %v1140 = vunpack.c.l.s4 1934713408
        %v1141 = vunpack.c.0.s8 %v1140
        %v1142 = vlaneseq
        %v1143 = vshrl.u32 %v1142, 7
        %v1144 = vsub.s32 %v1141, %v1143
        %v1145 = vrot.slane %v1137, %v1144
        %v1147 = vunpack.c.l.s4 1934713408
        %v1148 = vunpack.c.0.s8 %v1147
        %v1149 = vlaneseq
        %v1150 = vshrl.u32 %v1149, 7
        %v1151 = vsub.s32 %v1148, %v1150
        %v1152 = vrot.slane %v1138, %v1151
        %v1153 = vcombine.low %v1121, %v1136
        %v1154 = vcombine.high %v1121, %v1136
        %v1156 = vunpack.c.l.s4 1934713408
        %v1157 = vunpack.c.0.s8 %v1156
        %v1158 = vlaneseq
        %v1159 = vshrl.u32 %v1158, 7
        %v1160 = vsub.s32 %v1157, %v1159
        %v1161 = vrot.slane %v1153, %v1160
        %v1163 = vunpack.c.l.s4 1934713408
        %v1164 = vunpack.c.0.s8 %v1163
        %v1165 = vlaneseq
        %v1166 = vshrl.u32 %v1165, 7
        %v1167 = vsub.s32 %v1164, %v1166
        %v1168 = vrot.slane %v1154, %v1167
        %v1169 = vcombine.high %v1145, 0.0
        %v1170 = vcombine.high %v1152, 0.0
        %v1171 = vcombine.high %v1161, 0.0
        %v1172 = vcombine.high %v1168, 0.0
        %v1173 = vcombine.low %v1079, %v1086
        %v1175 = vunpack.c.l.s4 1983009808
        %v1176 = vunpack.c.0.s8 %v1175
        %v1177 = vlaneseq
        %v1178 = vshrl.u32 %v1177, 7
        %v1179 = vsub.s32 %v1176, %v1178
        %v1180 = vrot.slane %v1173, %v1179
        %v1181 = vcombine.low %v1103, %v1104
        %v1183 = vunpack.c.l.s4 1983009808
        %v1184 = vunpack.c.0.s8 %v1183
        %v1185 = vlaneseq
        %v1186 = vshrl.u32 %v1185, 7
        %v1187 = vsub.s32 %v1184, %v1186
        %v1188 = vrot.slane %v1181, %v1187
        %v1189 = vcombine.low %v1095, %v1102
        %v1191 = vunpack.c.l.s4 1983009808
        %v1192 = vunpack.c.0.s8 %v1191
        %v1193 = vlaneseq
        %v1194 = vshrl.u32 %v1193, 7
        %v1195 = vsub.s32 %v1192, %v1194
        %v1196 = vrot.slane %v1189, %v1195
        %v1197 = vcombine.low %v1105, %v1106
        %v1199 = vunpack.c.l.s4 1983009808
        %v1200 = vunpack.c.0.s8 %v1199
        %v1201 = vlaneseq
        %v1202 = vshrl.u32 %v1201, 7
        %v1203 = vsub.s32 %v1200, %v1202
        %v1204 = vrot.slane %v1197, %v1203
        %v1205 = vcombine.low %v1180, %v1188
        %v1207 = vunpack.c.l.s4 1934713408
        %v1208 = vunpack.c.0.s8 %v1207
        %v1209 = vlaneseq
        %v1210 = vshrl.u32 %v1209, 7
        %v1211 = vsub.s32 %v1208, %v1210
        %v1212 = vrot.slane %v1205, %v1211
        %v1213 = vcombine.low %v1196, %v1204
        %v1215 = vunpack.c.l.s4 1934713408
        %v1216 = vunpack.c.0.s8 %v1215
        %v1217 = vlaneseq
        %v1218 = vshrl.u32 %v1217, 7
        %v1219 = vsub.s32 %v1216, %v1218
        %v1220 = vrot.slane %v1213, %v1219
        %v1221 = vcombine.low %v1212, %v1220
        %v1222 = vcombine.high %v1212, %v1220
        %v1223 = vcombine.low %v1145, %v1152
        %v1225 = vunpack.c.l.s4 1983009808
        %v1226 = vunpack.c.0.s8 %v1225
        %v1227 = vlaneseq
        %v1228 = vshrl.u32 %v1227, 7
        %v1229 = vsub.s32 %v1226, %v1228
        %v1230 = vrot.slane %v1223, %v1229
        %v1231 = vcombine.low %v1169, %v1170
        %v1233 = vunpack.c.l.s4 1983009808
        %v1234 = vunpack.c.0.s8 %v1233
        %v1235 = vlaneseq
        %v1236 = vshrl.u32 %v1235, 7
        %v1237 = vsub.s32 %v1234, %v1236
        %v1238 = vrot.slane %v1231, %v1237
        %v1239 = vcombine.low %v1161, %v1168
        %v1241 = vunpack.c.l.s4 1983009808
        %v1242 = vunpack.c.0.s8 %v1241
        %v1243 = vlaneseq
        %v1244 = vshrl.u32 %v1243, 7
        %v1245 = vsub.s32 %v1242, %v1244
        %v1246 = vrot.slane %v1239, %v1245
        %v1247 = vcombine.low %v1171, %v1172
        %v1249 = vunpack.c.l.s4 1983009808
        %v1250 = vunpack.c.0.s8 %v1249
        %v1251 = vlaneseq
        %v1252 = vshrl.u32 %v1251, 7
        %v1253 = vsub.s32 %v1250, %v1252
        %v1254 = vrot.slane %v1247, %v1253
        %v1255 = vcombine.low %v1230, %v1238
        %v1257 = vunpack.c.l.s4 1934713408
        %v1258 = vunpack.c.0.s8 %v1257
        %v1259 = vlaneseq
        %v1260 = vshrl.u32 %v1259, 7
        %v1261 = vsub.s32 %v1258, %v1260
        %v1262 = vrot.slane %v1255, %v1261
        %v1263 = vcombine.low %v1246, %v1254
        %v1265 = vunpack.c.l.s4 1934713408
        %v1266 = vunpack.c.0.s8 %v1265
        %v1267 = vlaneseq
        %v1268 = vshrl.u32 %v1267, 7
        %v1269 = vsub.s32 %v1266, %v1268
        %v1270 = vrot.slane %v1263, %v1269
        %v1271 = vcombine.low %v1262, %v1270
        %v1272 = vcombine.high %v1262, %v1270
        %v1273 = vcombine.high %v954, 0.0
        %v1275 = vunpack.c.l.s4 1983009808
        %v1276 = vunpack.c.0.s8 %v1275
        %v1277 = vlaneseq
        %v1278 = vshrl.u32 %v1277, 7
        %v1279 = vsub.s32 %v1276, %v1278
        %v1280 = vrot.slane %v954, %v1279
        %v1282 = vunpack.c.l.s4 1983009808
        %v1283 = vunpack.c.0.s8 %v1282
        %v1284 = vlaneseq
        %v1285 = vshrl.u32 %v1284, 7
        %v1286 = vsub.s32 %v1283, %v1285
        %v1287 = vrot.slane %v1273, %v1286
        %v1288 = vcombine.high %v956, 0.0
        %v1290 = vunpack.c.l.s4 1983009808
        %v1291 = vunpack.c.0.s8 %v1290
        %v1292 = vlaneseq
        %v1293 = vshrl.u32 %v1292, 7
        %v1294 = vsub.s32 %v1291, %v1293
        %v1295 = vrot.slane %v956, %v1294
        %v1297 = vunpack.c.l.s4 1983009808
        %v1298 = vunpack.c.0.s8 %v1297
        %v1299 = vlaneseq
        %v1300 = vshrl.u32 %v1299, 7
        %v1301 = vsub.s32 %v1298, %v1300
        %v1302 = vrot.slane %v1288, %v1301
        %v1303 = vcombine.low %v1280, %v1295
        %v1304 = vcombine.high %v1280, %v1295
        %v1306 = vunpack.c.l.s4 1934713408
        %v1307 = vunpack.c.0.s8 %v1306
        %v1308 = vlaneseq
        %v1309 = vshrl.u32 %v1308, 7
        %v1310 = vsub.s32 %v1307, %v1309
        %v1311 = vrot.slane %v1303, %v1310
        %v1313 = vunpack.c.l.s4 1934713408
        %v1314 = vunpack.c.0.s8 %v1313
        %v1315 = vlaneseq
        %v1316 = vshrl.u32 %v1315, 7
        %v1317 = vsub.s32 %v1314, %v1316
        %v1318 = vrot.slane %v1304, %v1317
        %v1319 = vcombine.low %v1287, %v1302
        %v1320 = vcombine.high %v1287, %v1302
        %v1322 = vunpack.c.l.s4 1934713408
        %v1323 = vunpack.c.0.s8 %v1322
        %v1324 = vlaneseq
        %v1325 = vshrl.u32 %v1324, 7
        %v1326 = vsub.s32 %v1323, %v1325
        %v1327 = vrot.slane %v1319, %v1326
        %v1329 = vunpack.c.l.s4 1934713408
        %v1330 = vunpack.c.0.s8 %v1329
        %v1331 = vlaneseq
        %v1332 = vshrl.u32 %v1331, 7
        %v1333 = vsub.s32 %v1330, %v1332
        %v1334 = vrot.slane %v1320, %v1333
        %v1335 = vcombine.high %v1311, 0.0
        %v1336 = vcombine.high %v1318, 0.0
        %v1337 = vcombine.high %v1327, 0.0
        %v1338 = vcombine.high %v1334, 0.0
        %v1339 = vcombine.high %v960, 0.0
        %v1341 = vunpack.c.l.s4 1983009808
        %v1342 = vunpack.c.0.s8 %v1341
        %v1343 = vlaneseq
        %v1344 = vshrl.u32 %v1343, 7
        %v1345 = vsub.s32 %v1342, %v1344
        %v1346 = vrot.slane %v960, %v1345
        %v1348 = vunpack.c.l.s4 1983009808
        %v1349 = vunpack.c.0.s8 %v1348
        %v1350 = vlaneseq
        %v1351 = vshrl.u32 %v1350, 7
        %v1352 = vsub.s32 %v1349, %v1351
        %v1353 = vrot.slane %v1339, %v1352
        %v1354 = vcombine.high %v962, 0.0
        %v1356 = vunpack.c.l.s4 1983009808
        %v1357 = vunpack.c.0.s8 %v1356
        %v1358 = vlaneseq
        %v1359 = vshrl.u32 %v1358, 7
        %v1360 = vsub.s32 %v1357, %v1359
        %v1361 = vrot.slane %v962, %v1360
        %v1363 = vunpack.c.l.s4 1983009808
        %v1364 = vunpack.c.0.s8 %v1363
        %v1365 = vlaneseq
        %v1366 = vshrl.u32 %v1365, 7
        %v1367 = vsub.s32 %v1364, %v1366
        %v1368 = vrot.slane %v1354, %v1367
        %v1369 = vcombine.low %v1346, %v1361
        %v1370 = vcombine.high %v1346, %v1361
        %v1372 = vunpack.c.l.s4 1934713408
        %v1373 = vunpack.c.0.s8 %v1372
        %v1374 = vlaneseq
        %v1375 = vshrl.u32 %v1374, 7
        %v1376 = vsub.s32 %v1373, %v1375
        %v1377 = vrot.slane %v1369, %v1376
        %v1379 = vunpack.c.l.s4 1934713408
        %v1380 = vunpack.c.0.s8 %v1379
        %v1381 = vlaneseq
        %v1382 = vshrl.u32 %v1381, 7
        %v1383 = vsub.s32 %v1380, %v1382
        %v1384 = vrot.slane %v1370, %v1383
        %v1385 = vcombine.low %v1353, %v1368
        %v1386 = vcombine.high %v1353, %v1368
        %v1388 = vunpack.c.l.s4 1934713408
        %v1389 = vunpack.c.0.s8 %v1388
        %v1390 = vlaneseq
        %v1391 = vshrl.u32 %v1390, 7
        %v1392 = vsub.s32 %v1389, %v1391
        %v1393 = vrot.slane %v1385, %v1392
        %v1395 = vunpack.c.l.s4 1934713408
        %v1396 = vunpack.c.0.s8 %v1395
        %v1397 = vlaneseq
        %v1398 = vshrl.u32 %v1397, 7
        %v1399 = vsub.s32 %v1396, %v1398
        %v1400 = vrot.slane %v1386, %v1399
        %v1401 = vcombine.high %v1377, 0.0
        %v1402 = vcombine.high %v1384, 0.0
        %v1403 = vcombine.high %v1393, 0.0
        %v1404 = vcombine.high %v1400, 0.0
        %v1405 = vcombine.low %v1311, %v1318
        %v1407 = vunpack.c.l.s4 1983009808
        %v1408 = vunpack.c.0.s8 %v1407
        %v1409 = vlaneseq
        %v1410 = vshrl.u32 %v1409, 7
        %v1411 = vsub.s32 %v1408, %v1410
        %v1412 = vrot.slane %v1405, %v1411
        %v1413 = vcombine.low %v1335, %v1336
        %v1415 = vunpack.c.l.s4 1983009808
        %v1416 = vunpack.c.0.s8 %v1415
        %v1417 = vlaneseq
        %v1418 = vshrl.u32 %v1417, 7
        %v1419 = vsub.s32 %v1416, %v1418
        %v1420 = vrot.slane %v1413, %v1419
        %v1421 = vcombine.low %v1327, %v1334
        %v1423 = vunpack.c.l.s4 1983009808
        %v1424 = vunpack.c.0.s8 %v1423
        %v1425 = vlaneseq
        %v1426 = vshrl.u32 %v1425, 7
        %v1427 = vsub.s32 %v1424, %v1426
        %v1428 = vrot.slane %v1421, %v1427
        %v1429 = vcombine.low %v1337, %v1338
        %v1431 = vunpack.c.l.s4 1983009808
        %v1432 = vunpack.c.0.s8 %v1431
        %v1433 = vlaneseq
        %v1434 = vshrl.u32 %v1433, 7
        %v1435 = vsub.s32 %v1432, %v1434
        %v1436 = vrot.slane %v1429, %v1435
        %v1437 = vcombine.low %v1412, %v1420
        %v1439 = vunpack.c.l.s4 1934713408
        %v1440 = vunpack.c.0.s8 %v1439
        %v1441 = vlaneseq
        %v1442 = vshrl.u32 %v1441, 7
        %v1443 = vsub.s32 %v1440, %v1442
        %v1444 = vrot.slane %v1437, %v1443
        %v1445 = vcombine.low %v1428, %v1436
        %v1447 = vunpack.c.l.s4 1934713408
        %v1448 = vunpack.c.0.s8 %v1447
        %v1449 = vlaneseq
        %v1450 = vshrl.u32 %v1449, 7
        %v1451 = vsub.s32 %v1448, %v1450
        %v1452 = vrot.slane %v1445, %v1451
        %v1453 = vcombine.low %v1444, %v1452
        %v1454 = vcombine.high %v1444, %v1452
        %v1455 = vcombine.low %v1377, %v1384
        %v1457 = vunpack.c.l.s4 1983009808
        %v1458 = vunpack.c.0.s8 %v1457
        %v1459 = vlaneseq
        %v1460 = vshrl.u32 %v1459, 7
        %v1461 = vsub.s32 %v1458, %v1460
        %v1462 = vrot.slane %v1455, %v1461
        %v1463 = vcombine.low %v1401, %v1402
        %v1465 = vunpack.c.l.s4 1983009808
        %v1466 = vunpack.c.0.s8 %v1465
        %v1467 = vlaneseq
        %v1468 = vshrl.u32 %v1467, 7
        %v1469 = vsub.s32 %v1466, %v1468
        %v1470 = vrot.slane %v1463, %v1469
        %v1471 = vcombine.low %v1393, %v1400
        %v1473 = vunpack.c.l.s4 1983009808
        %v1474 = vunpack.c.0.s8 %v1473
        %v1475 = vlaneseq
        %v1476 = vshrl.u32 %v1475, 7
        %v1477 = vsub.s32 %v1474, %v1476
        %v1478 = vrot.slane %v1471, %v1477
        %v1479 = vcombine.low %v1403, %v1404
        %v1481 = vunpack.c.l.s4 1983009808
        %v1482 = vunpack.c.0.s8 %v1481
        %v1483 = vlaneseq
        %v1484 = vshrl.u32 %v1483, 7
        %v1485 = vsub.s32 %v1482, %v1484
        %v1486 = vrot.slane %v1479, %v1485
        %v1487 = vcombine.low %v1462, %v1470
        %v1489 = vunpack.c.l.s4 1934713408
        %v1490 = vunpack.c.0.s8 %v1489
        %v1491 = vlaneseq
        %v1492 = vshrl.u32 %v1491, 7
        %v1493 = vsub.s32 %v1490, %v1492
        %v1494 = vrot.slane %v1487, %v1493
        %v1495 = vcombine.low %v1478, %v1486
        %v1497 = vunpack.c.l.s4 1934713408
        %v1498 = vunpack.c.0.s8 %v1497
        %v1499 = vlaneseq
        %v1500 = vshrl.u32 %v1499, 7
        %v1501 = vsub.s32 %v1498, %v1500
        %v1502 = vrot.slane %v1495, %v1501
        %v1503 = vcombine.low %v1494, %v1502
        %v1504 = vcombine.high %v1494, %v1502
        %v1505 = vcombine.high %v1031, 0.0
        %v1507 = vunpack.c.l.s4 1983009808
        %v1508 = vunpack.c.0.s8 %v1507
        %v1509 = vlaneseq
        %v1510 = vshrl.u32 %v1509, 7
        %v1511 = vsub.s32 %v1508, %v1510
        %v1512 = vrot.slane %v1031, %v1511
        %v1514 = vunpack.c.l.s4 1983009808
        %v1515 = vunpack.c.0.s8 %v1514
        %v1516 = vlaneseq
        %v1517 = vshrl.u32 %v1516, 7
        %v1518 = vsub.s32 %v1515, %v1517
        %v1519 = vrot.slane %v1505, %v1518
        %v1520 = vcombine.high %v1033, 0.0
        %v1522 = vunpack.c.l.s4 1983009808
        %v1523 = vunpack.c.0.s8 %v1522
        %v1524 = vlaneseq
        %v1525 = vshrl.u32 %v1524, 7
        %v1526 = vsub.s32 %v1523, %v1525
        %v1527 = vrot.slane %v1033, %v1526
        %v1529 = vunpack.c.l.s4 1983009808
        %v1530 = vunpack.c.0.s8 %v1529
        %v1531 = vlaneseq
        %v1532 = vshrl.u32 %v1531, 7
        %v1533 = vsub.s32 %v1530, %v1532
        %v1534 = vrot.slane %v1520, %v1533
        %v1535 = vcombine.low %v1512, %v1527
        %v1536 = vcombine.high %v1512, %v1527
        %v1538 = vunpack.c.l.s4 1934713408
        %v1539 = vunpack.c.0.s8 %v1538
        %v1540 = vlaneseq
        %v1541 = vshrl.u32 %v1540, 7
        %v1542 = vsub.s32 %v1539, %v1541
        %v1543 = vrot.slane %v1535, %v1542
        %v1545 = vunpack.c.l.s4 1934713408
        %v1546 = vunpack.c.0.s8 %v1545
        %v1547 = vlaneseq
        %v1548 = vshrl.u32 %v1547, 7
        %v1549 = vsub.s32 %v1546, %v1548
        %v1550 = vrot.slane %v1536, %v1549
        %v1551 = vcombine.low %v1519, %v1534
        %v1552 = vcombine.high %v1519, %v1534
        %v1554 = vunpack.c.l.s4 1934713408
        %v1555 = vunpack.c.0.s8 %v1554
        %v1556 = vlaneseq
        %v1557 = vshrl.u32 %v1556, 7
        %v1558 = vsub.s32 %v1555, %v1557
        %v1559 = vrot.slane %v1551, %v1558
        %v1561 = vunpack.c.l.s4 1934713408
        %v1562 = vunpack.c.0.s8 %v1561
        %v1563 = vlaneseq
        %v1564 = vshrl.u32 %v1563, 7
        %v1565 = vsub.s32 %v1562, %v1564
        %v1566 = vrot.slane %v1552, %v1565
        %v1567 = vcombine.high %v1543, 0.0
        %v1568 = vcombine.high %v1550, 0.0
        %v1569 = vcombine.high %v1559, 0.0
        %v1570 = vcombine.high %v1566, 0.0
        %v1571 = vcombine.high %v1037, 0.0
        %v1573 = vunpack.c.l.s4 1983009808
        %v1574 = vunpack.c.0.s8 %v1573
        %v1575 = vlaneseq
        %v1576 = vshrl.u32 %v1575, 7
        %v1577 = vsub.s32 %v1574, %v1576
        %v1578 = vrot.slane %v1037, %v1577
        %v1580 = vunpack.c.l.s4 1983009808
        %v1581 = vunpack.c.0.s8 %v1580
        %v1582 = vlaneseq
        %v1583 = vshrl.u32 %v1582, 7
        %v1584 = vsub.s32 %v1581, %v1583
        %v1585 = vrot.slane %v1571, %v1584
        %v1586 = vcombine.high %v1039, 0.0
        %v1588 = vunpack.c.l.s4 1983009808
        %v1589 = vunpack.c.0.s8 %v1588
        %v1590 = vlaneseq
        %v1591 = vshrl.u32 %v1590, 7
        %v1592 = vsub.s32 %v1589, %v1591
        %v1593 = vrot.slane %v1039, %v1592
        %v1595 = vunpack.c.l.s4 1983009808
        %v1596 = vunpack.c.0.s8 %v1595
        %v1597 = vlaneseq
        %v1598 = vshrl.u32 %v1597, 7
        %v1599 = vsub.s32 %v1596, %v1598
        %v1600 = vrot.slane %v1586, %v1599
        %v1601 = vcombine.low %v1578, %v1593
        %v1602 = vcombine.high %v1578, %v1593
        %v1604 = vunpack.c.l.s4 1934713408
        %v1605 = vunpack.c.0.s8 %v1604
        %v1606 = vlaneseq
        %v1607 = vshrl.u32 %v1606, 7
        %v1608 = vsub.s32 %v1605, %v1607
        %v1609 = vrot.slane %v1601, %v1608
        %v1611 = vunpack.c.l.s4 1934713408
        %v1612 = vunpack.c.0.s8 %v1611
        %v1613 = vlaneseq
        %v1614 = vshrl.u32 %v1613, 7
        %v1615 = vsub.s32 %v1612, %v1614
        %v1616 = vrot.slane %v1602, %v1615
        %v1617 = vcombine.low %v1585, %v1600
        %v1618 = vcombine.high %v1585, %v1600
        %v1620 = vunpack.c.l.s4 1934713408
        %v1621 = vunpack.c.0.s8 %v1620
        %v1622 = vlaneseq
        %v1623 = vshrl.u32 %v1622, 7
        %v1624 = vsub.s32 %v1621, %v1623
        %v1625 = vrot.slane %v1617, %v1624
        %v1627 = vunpack.c.l.s4 1934713408
        %v1628 = vunpack.c.0.s8 %v1627
        %v1629 = vlaneseq
        %v1630 = vshrl.u32 %v1629, 7
        %v1631 = vsub.s32 %v1628, %v1630
        %v1632 = vrot.slane %v1618, %v1631
        %v1633 = vcombine.high %v1609, 0.0
        %v1634 = vcombine.high %v1616, 0.0
        %v1635 = vcombine.high %v1625, 0.0
        %v1636 = vcombine.high %v1632, 0.0
        %v1637 = vcombine.low %v1543, %v1550
        %v1639 = vunpack.c.l.s4 1983009808
        %v1640 = vunpack.c.0.s8 %v1639
        %v1641 = vlaneseq
        %v1642 = vshrl.u32 %v1641, 7
        %v1643 = vsub.s32 %v1640, %v1642
        %v1644 = vrot.slane %v1637, %v1643
        %v1645 = vcombine.low %v1567, %v1568
        %v1647 = vunpack.c.l.s4 1983009808
        %v1648 = vunpack.c.0.s8 %v1647
        %v1649 = vlaneseq
        %v1650 = vshrl.u32 %v1649, 7
        %v1651 = vsub.s32 %v1648, %v1650
        %v1652 = vrot.slane %v1645, %v1651
        %v1653 = vcombine.low %v1559, %v1566
        %v1655 = vunpack.c.l.s4 1983009808
        %v1656 = vunpack.c.0.s8 %v1655
        %v1657 = vlaneseq
        %v1658 = vshrl.u32 %v1657, 7
        %v1659 = vsub.s32 %v1656, %v1658
        %v1660 = vrot.slane %v1653, %v1659
        %v1661 = vcombine.low %v1569, %v1570
        %v1663 = vunpack.c.l.s4 1983009808
        %v1664 = vunpack.c.0.s8 %v1663
        %v1665 = vlaneseq
        %v1666 = vshrl.u32 %v1665, 7
        %v1667 = vsub.s32 %v1664, %v1666
        %v1668 = vrot.slane %v1661, %v1667
        %v1669 = vcombine.low %v1644, %v1652
        %v1671 = vunpack.c.l.s4 1934713408
        %v1672 = vunpack.c.0.s8 %v1671
        %v1673 = vlaneseq
        %v1674 = vshrl.u32 %v1673, 7
        %v1675 = vsub.s32 %v1672, %v1674
        %v1676 = vrot.slane %v1669, %v1675
        %v1677 = vcombine.low %v1660, %v1668
        %v1679 = vunpack.c.l.s4 1934713408
        %v1680 = vunpack.c.0.s8 %v1679
        %v1681 = vlaneseq
        %v1682 = vshrl.u32 %v1681, 7
        %v1683 = vsub.s32 %v1680, %v1682
        %v1684 = vrot.slane %v1677, %v1683
        %v1685 = vcombine.low %v1676, %v1684
        %v1686 = vcombine.high %v1676, %v1684
        %v1687 = vcombine.low %v1609, %v1616
        %v1689 = vunpack.c.l.s4 1983009808
        %v1690 = vunpack.c.0.s8 %v1689
        %v1691 = vlaneseq
        %v1692 = vshrl.u32 %v1691, 7
        %v1693 = vsub.s32 %v1690, %v1692
        %v1694 = vrot.slane %v1687, %v1693
        %v1695 = vcombine.low %v1633, %v1634
        %v1697 = vunpack.c.l.s4 1983009808
        %v1698 = vunpack.c.0.s8 %v1697
        %v1699 = vlaneseq
        %v1700 = vshrl.u32 %v1699, 7
        %v1701 = vsub.s32 %v1698, %v1700
        %v1702 = vrot.slane %v1695, %v1701
        %v1703 = vcombine.low %v1625, %v1632
        %v1705 = vunpack.c.l.s4 1983009808
        %v1706 = vunpack.c.0.s8 %v1705
        %v1707 = vlaneseq
        %v1708 = vshrl.u32 %v1707, 7
        %v1709 = vsub.s32 %v1706, %v1708
        %v1710 = vrot.slane %v1703, %v1709
        %v1711 = vcombine.low %v1635, %v1636
        %v1713 = vunpack.c.l.s4 1983009808
        %v1714 = vunpack.c.0.s8 %v1713
        %v1715 = vlaneseq
        %v1716 = vshrl.u32 %v1715, 7
        %v1717 = vsub.s32 %v1714, %v1716
        %v1718 = vrot.slane %v1711, %v1717
        %v1719 = vcombine.low %v1694, %v1702
        %v1721 = vunpack.c.l.s4 1934713408
        %v1722 = vunpack.c.0.s8 %v1721
        %v1723 = vlaneseq
        %v1724 = vshrl.u32 %v1723, 7
        %v1725 = vsub.s32 %v1722, %v1724
        %v1726 = vrot.slane %v1719, %v1725
        %v1727 = vcombine.low %v1710, %v1718
        %v1729 = vunpack.c.l.s4 1934713408
        %v1730 = vunpack.c.0.s8 %v1729
        %v1731 = vlaneseq
        %v1732 = vshrl.u32 %v1731, 7
        %v1733 = vsub.s32 %v1730, %v1732
        %v1734 = vrot.slane %v1727, %v1733
        %v1735 = vcombine.low %v1726, %v1734
        %v1736 = vcombine.high %v1726, %v1734
        %1737 = vmatprep.subr.mxu0 0.0
        %1738 = vmatpush1.xpose.msra.mxu0 %v1453
        %1739 = vmatprep.subr.mxu0 0.0
        %1740 = vmatpush1.xpose.msra.mxu0 %v1503
        %1741 = vmatprep.subr.mxu0 0.0
        %1742 = vmatpush1.xpose.msra.mxu0 0.0
        %1743 = vmatprep.subr.mxu0 0.0
        %1744 = vmatpush1.xpose.msra.mxu0 0.0
        %1745 = vmatprep.subr.mxu0 0.0
        %1746 = vmatpush1.xpose.msra.mxu0 0.0
        %1747 = vmatprep.subr.mxu0 0.0
        %1748 = vmatpush1.xpose.msra.mxu0 0.0
        %1749 = vmatprep.subr.mxu0 0.0
        %1750 = vmatpush1.xpose.msra.mxu0 0.0
        %1751 = vmatprep.subr.mxu0 0.0
        %1752 = vmatpush1.xpose.msra.mxu0 0.0
        %1753 = vmatprep.subr.mxu0 0.0
        %1754 = vmatpush1.xpose.msra.mxu0 0.0
        %1755 = vmatprep.subr.mxu0 0.0
        %1756 = vmatpush1.xpose.msra.mxu0 0.0
        %1757 = vmatprep.subr.mxu0 0.0
        %1758 = vmatpush1.xpose.msra.mxu0 0.0
        %1759 = vmatprep.subr.mxu0 0.0
        %1760 = vmatpush1.xpose.msra.mxu0 0.0
        %1761 = vmatprep.subr.mxu0 0.0
        %1762 = vmatpush1.xpose.msra.mxu0 0.0
        %1763 = vmatprep.subr.mxu0 0.0
        %1764 = vmatpush1.xpose.msra.mxu0 0.0
        %1765 = vmatprep.subr.mxu0 0.0
        %1766 = vmatpush1.xpose.msra.mxu0 0.0
        %1767 = vmatprep.subr.mxu0 0.0
        %1768 = vmatpush1.xpose.msra.mxu0 0.0
        %1769 = vmatprep.subr.mxu0 0.0
        %1770 = vmatpush1.xpose.msra.mxu0 0.0
        %1771 = vmatprep.subr.mxu0 0.0
        %1772 = vmatpush1.xpose.msra.mxu0 0.0
        %1773 = vmatprep.subr.mxu0 0.0
        %1774 = vmatpush1.xpose.msra.mxu0 0.0
        %1775 = vmatprep.subr.mxu0 0.0
        %1776 = vmatpush1.xpose.msra.mxu0 0.0
        %1777 = vmatprep.subr.mxu0 0.0
        %1778 = vmatpush1.xpose.msra.mxu0 0.0
        %1779 = vmatprep.subr.mxu0 0.0
        %1780 = vmatpush1.xpose.msra.mxu0 0.0
        %1781 = vmatprep.subr.mxu0 0.0
        %1782 = vmatpush1.xpose.msra.mxu0 0.0
        %1783 = vmatprep.subr.mxu0 0.0
        %1784 = vmatpush1.xpose.msra.mxu0 0.0
        %1785 = vmatprep.subr.mxu0 0.0
        %1786 = vmatpush1.xpose.msra.mxu0 0.0
        %1787 = vmatprep.subr.mxu0 0.0
        %1788 = vmatpush1.xpose.msra.mxu0 0.0
        %1789 = vmatprep.subr.mxu0 0.0
        %1790 = vmatpush1.xpose.msra.mxu0 0.0
        %1791 = vmatprep.subr.mxu0 0.0
        %1792 = vmatpush1.xpose.msra.mxu0 0.0
        %1793 = vmatprep.subr.mxu0 0.0
        %1794 = vmatpush1.xpose.msra.mxu0 0.0
        %1795 = vmatprep.subr.mxu0 0.0
        %1796 = vmatpush1.xpose.msra.mxu0 0.0
        %1797 = vmatprep.subr.mxu0 0.0
        %1798 = vmatpush1.xpose.msra.mxu0 0.0
        %1799 = vmatprep.subr.mxu0 0.0
        %1800 = vmatpush1.xpose.msra.mxu0 0.0
        %1801 = vmatprep.mubr.f32.mxu0 0.0
        %1802 = vmatmul.mubr.f32.gmra.mrb[0].mxu0 %v1221
        %v1803 = vpop.f32.mrb[0].mxu0
        %v1804 = vadd.f32 0.0, %v1803
        %v1805 = vpop.f32.mrb[0].mxu0
        %1806 = vmatprep.mubr.f32.mxu0 0.0
        %1807 = vmatmul.mubr.f32.gmra.mrb[0].mxu0 %v1271
        %v1808 = vpop.f32.mrb[0].mxu0
        %v1809 = vadd.f32 0.0, %v1808
        %v1810 = vpop.f32.mrb[0].mxu0
        %1811 = vdwg.mxu0
        %1812 = vmatprep.subr.mxu0 0.0
        %1813 = vmatpush1.xpose.msra.mxu0 %v1454
        %1814 = vmatprep.subr.mxu0 0.0
        %1815 = vmatpush1.xpose.msra.mxu0 %v1504
        %1816 = vmatprep.subr.mxu0 0.0
        %1817 = vmatpush1.xpose.msra.mxu0 0.0
        %1818 = vmatprep.subr.mxu0 0.0
        %1819 = vmatpush1.xpose.msra.mxu0 0.0
        %1820 = vmatprep.subr.mxu0 0.0
        %1821 = vmatpush1.xpose.msra.mxu0 0.0
        %1822 = vmatprep.subr.mxu0 0.0
        %1823 = vmatpush1.xpose.msra.mxu0 0.0
        %1824 = vmatprep.subr.mxu0 0.0
        %1825 = vmatpush1.xpose.msra.mxu0 0.0
        %1826 = vmatprep.subr.mxu0 0.0
        %1827 = vmatpush1.xpose.msra.mxu0 0.0
        %1828 = vmatprep.subr.mxu0 0.0
        %1829 = vmatpush1.xpose.msra.mxu0 0.0
        %1830 = vmatprep.subr.mxu0 0.0
        %1831 = vmatpush1.xpose.msra.mxu0 0.0
        %1832 = vmatprep.subr.mxu0 0.0
        %1833 = vmatpush1.xpose.msra.mxu0 0.0
        %1834 = vmatprep.subr.mxu0 0.0
        %1835 = vmatpush1.xpose.msra.mxu0 0.0
        %1836 = vmatprep.subr.mxu0 0.0
        %1837 = vmatpush1.xpose.msra.mxu0 0.0
        %1838 = vmatprep.subr.mxu0 0.0
        %1839 = vmatpush1.xpose.msra.mxu0 0.0
        %1840 = vmatprep.subr.mxu0 0.0
        %1841 = vmatpush1.xpose.msra.mxu0 0.0
        %1842 = vmatprep.subr.mxu0 0.0
        %1843 = vmatpush1.xpose.msra.mxu0 0.0
        %1844 = vmatprep.subr.mxu0 0.0
        %1845 = vmatpush1.xpose.msra.mxu0 0.0
        %1846 = vmatprep.subr.mxu0 0.0
        %1847 = vmatpush1.xpose.msra.mxu0 0.0
        %1848 = vmatprep.subr.mxu0 0.0
        %1849 = vmatpush1.xpose.msra.mxu0 0.0
        %1850 = vmatprep.subr.mxu0 0.0
        %1851 = vmatpush1.xpose.msra.mxu0 0.0
        %1852 = vmatprep.subr.mxu0 0.0
        %1853 = vmatpush1.xpose.msra.mxu0 0.0
        %1854 = vmatprep.subr.mxu0 0.0
        %1855 = vmatpush1.xpose.msra.mxu0 0.0
        %1856 = vmatprep.subr.mxu0 0.0
        %1857 = vmatpush1.xpose.msra.mxu0 0.0
        %1858 = vmatprep.subr.mxu0 0.0
        %1859 = vmatpush1.xpose.msra.mxu0 0.0
        %1860 = vmatprep.subr.mxu0 0.0
        %1861 = vmatpush1.xpose.msra.mxu0 0.0
        %1862 = vmatprep.subr.mxu0 0.0
        %1863 = vmatpush1.xpose.msra.mxu0 0.0
        %1864 = vmatprep.subr.mxu0 0.0
        %1865 = vmatpush1.xpose.msra.mxu0 0.0
        %1866 = vmatprep.subr.mxu0 0.0
        %1867 = vmatpush1.xpose.msra.mxu0 0.0
        %1868 = vmatprep.subr.mxu0 0.0
        %1869 = vmatpush1.xpose.msra.mxu0 0.0
        %1870 = vmatprep.subr.mxu0 0.0
        %1871 = vmatpush1.xpose.msra.mxu0 0.0
        %1872 = vmatprep.subr.mxu0 0.0
        %1873 = vmatpush1.xpose.msra.mxu0 0.0
        %1874 = vmatprep.subr.mxu0 0.0
        %1875 = vmatpush1.xpose.msra.mxu0 0.0
        %1876 = vmatprep.mubr.f32.mxu0 0.0
        %1877 = vmatmul.mubr.f32.gmra.mrb[0].mxu0 %v1222
        %v1878 = vpop.f32.mrb[0].mxu0
        %v1879 = vadd.f32 0.0, %v1878
        %v1880 = vpop.f32.mrb[0].mxu0
        %1881 = vmatprep.mubr.f32.mxu0 0.0
        %1882 = vmatmul.mubr.f32.gmra.mrb[0].mxu0 %v1272
        %v1883 = vpop.f32.mrb[0].mxu0
        %v1884 = vadd.f32 0.0, %v1883
        %v1885 = vpop.f32.mrb[0].mxu0
        %1886 = vdwg.mxu0
        %vm1887 = vcmask 130048
        %v1888 = vsel %vm1887, %v1804, -inf
        %1889 = vmax.xlane.f32.xlu0 %v1888
        %v1890 = vpop.xlane.xlu0 %1889
        %v1891 = vsel %vm1887, %v1809, -inf
        %1892 = vmax.xlane.f32.xlu0 %v1891
        %v1893 = vpop.xlane.xlu0 %1892
        %v1894 = vsel %vm1887, %v1879, -inf
        %1895 = vmax.xlane.f32.xlu0 %v1894
        %v1896 = vpop.xlane.xlu0 %1895
        %v1897 = vsel %vm1887, %v1884, -inf
        %1898 = vmax.xlane.f32.xlu0 %v1897
        %v1899 = vpop.xlane.xlu0 %1898
        %v1900 = vsub.f32 %v1804, %v1890
        %v1901 = vsub.f32 %v1809, %v1893
        %v1902 = vsub.f32 %v1879, %v1896
        %v1903 = vsub.f32 %v1884, %v1899
        %v1904 = vmul.f32 %v1900, 1.442695
        %v1905 = vpow.pop %v1904
        %v1906 = vmul.f32 %v1901, 1.442695
        %v1907 = vpow.pop %v1906
        %v1908 = vmul.f32 %v1902, 1.442695
        %v1909 = vpow.pop %v1908
        %v1910 = vmul.f32 %v1903, 1.442695
        %v1911 = vpow.pop %v1910
        %v1912 = vsel %vm1887, %v1905, 0.0
        %1913 = vadd.xlane.f32.xlu0 %v1912
        %v1914 = vpop.xlane.xlu0 %1913
        %v1915 = vsel %vm1887, %v1907, 0.0
        %1916 = vadd.xlane.f32.xlu0 %v1915
        %v1917 = vpop.xlane.xlu0 %1916
        %v1918 = vsel %vm1887, %v1909, 0.0
        %1919 = vadd.xlane.f32.xlu0 %v1918
        %v1920 = vpop.xlane.xlu0 %1919
        %v1921 = vsel %vm1887, %v1911, 0.0
        %1922 = vadd.xlane.f32.xlu0 %v1921
        %v1923 = vpop.xlane.xlu0 %1922
        %v1925 = vsel %vm1887, %v1905, 0
        %v1928 = vsel %vm1887, %v1907, 0
        %1930 = vmatprep.subr.mxu0 0.0
        %1931 = vmatpush1.msra.mxu0 %v1685
        %1932 = vmatprep.subr.mxu0 0.0
        %1933 = vmatpush1.msra.mxu0 %v1735
        %1934 = vmatprep.subr.mxu0 0.0
        %1935 = vmatpush1.msra.mxu0 0.0
        %1936 = vmatprep.subr.mxu0 0.0
        %1937 = vmatpush1.msra.mxu0 0.0
        %1938 = vmatprep.subr.mxu0 0.0
        %1939 = vmatpush1.msra.mxu0 0.0
        %1940 = vmatprep.subr.mxu0 0.0
        %1941 = vmatpush1.msra.mxu0 0.0
        %1942 = vmatprep.subr.mxu0 0.0
        %1943 = vmatpush1.msra.mxu0 0.0
        %1944 = vmatprep.subr.mxu0 0.0
        %1945 = vmatpush1.msra.mxu0 0.0
        %1946 = vmatprep.subr.mxu0 0.0
        %1947 = vmatpush1.msra.mxu0 0.0
        %1948 = vmatprep.subr.mxu0 0.0
        %1949 = vmatpush1.msra.mxu0 0.0
        %1950 = vmatprep.subr.mxu0 0.0
        %1951 = vmatpush1.msra.mxu0 0.0
        %1952 = vmatprep.subr.mxu0 0.0
        %1953 = vmatpush1.msra.mxu0 0.0
        %1954 = vmatprep.subr.mxu0 0.0
        %1955 = vmatpush1.msra.mxu0 0.0
        %1956 = vmatprep.subr.mxu0 0.0
        %1957 = vmatpush1.msra.mxu0 0.0
        %1958 = vmatprep.subr.mxu0 0.0
        %1959 = vmatpush1.msra.mxu0 0.0
        %1960 = vmatprep.subr.mxu0 0.0
        %1961 = vmatpush1.msra.mxu0 0.0
        %1962 = vmatprep.subr.mxu0 0.0
        %1963 = vmatpush1.msra.mxu0 0.0
        %1964 = vmatprep.subr.mxu0 0.0
        %1965 = vmatpush1.msra.mxu0 0.0
        %1966 = vmatprep.subr.mxu0 0.0
        %1967 = vmatpush1.msra.mxu0 0.0
        %1968 = vmatprep.subr.mxu0 0.0
        %1969 = vmatpush1.msra.mxu0 0.0
        %1970 = vmatprep.subr.mxu0 0.0
        %1971 = vmatpush1.msra.mxu0 0.0
        %1972 = vmatprep.subr.mxu0 0.0
        %1973 = vmatpush1.msra.mxu0 0.0
        %1974 = vmatprep.subr.mxu0 0.0
        %1975 = vmatpush1.msra.mxu0 0.0
        %1976 = vmatprep.subr.mxu0 0.0
        %1977 = vmatpush1.msra.mxu0 0.0
        %1978 = vmatprep.subr.mxu0 0.0
        %1979 = vmatpush1.msra.mxu0 0.0
        %1980 = vmatprep.subr.mxu0 0.0
        %1981 = vmatpush1.msra.mxu0 0.0
        %1982 = vmatprep.subr.mxu0 0.0
        %1983 = vmatpush1.msra.mxu0 0.0
        %1984 = vmatprep.subr.mxu0 0.0
        %1985 = vmatpush1.msra.mxu0 0.0
        %1986 = vmatprep.subr.mxu0 0.0
        %1987 = vmatpush1.msra.mxu0 0.0
        %1988 = vmatprep.subr.mxu0 0.0
        %1989 = vmatpush1.msra.mxu0 0.0
        %1990 = vmatprep.subr.mxu0 0.0
        %1991 = vmatpush1.msra.mxu0 0.0
        %1992 = vmatprep.subr.mxu0 0.0
        %1993 = vmatpush1.msra.mxu0 0.0
        %1994 = vmatprep.mubr.f32.mxu0 0.0
        %1995 = vmatmul.mubr.f32.gmra.mrb[0].mxu0 %v1925
        %v1996 = vpop.f32.mrb[0].mxu0
        %v1997 = vadd.f32 0.0, %v1996
        %v1998 = vpop.f32.mrb[0].mxu0
        %1999 = vmatprep.mubr.f32.mxu0 0.0
        %2000 = vmatmul.mubr.f32.gmra.mrb[0].mxu0 %v1928
        %v2001 = vpop.f32.mrb[0].mxu0
        %v2002 = vadd.f32 0.0, %v2001
        %v2003 = vpop.f32.mrb[0].mxu0
        %2004 = vdwg.mxu0
        %v2006 = vsel %vm1887, %v1909, 0
        %v2009 = vsel %vm1887, %v1911, 0
        %2011 = vmatprep.subr.mxu0 0.0
        %2012 = vmatpush1.msra.mxu0 %v1686
        %2013 = vmatprep.subr.mxu0 0.0
        %2014 = vmatpush1.msra.mxu0 %v1736
        %2015 = vmatprep.subr.mxu0 0.0
        %2016 = vmatpush1.msra.mxu0 0.0
        %2017 = vmatprep.subr.mxu0 0.0
        %2018 = vmatpush1.msra.mxu0 0.0
        %2019 = vmatprep.subr.mxu0 0.0
        %2020 = vmatpush1.msra.mxu0 0.0
        %2021 = vmatprep.subr.mxu0 0.0
        %2022 = vmatpush1.msra.mxu0 0.0
        %2023 = vmatprep.subr.mxu0 0.0
        %2024 = vmatpush1.msra.mxu0 0.0
        %2025 = vmatprep.subr.mxu0 0.0
        %2026 = vmatpush1.msra.mxu0 0.0
        %2027 = vmatprep.subr.mxu0 0.0
        %2028 = vmatpush1.msra.mxu0 0.0
        %2029 = vmatprep.subr.mxu0 0.0
        %2030 = vmatpush1.msra.mxu0 0.0
        %2031 = vmatprep.subr.mxu0 0.0
        %2032 = vmatpush1.msra.mxu0 0.0
        %2033 = vmatprep.subr.mxu0 0.0
        %2034 = vmatpush1.msra.mxu0 0.0
        %2035 = vmatprep.subr.mxu0 0.0
        %2036 = vmatpush1.msra.mxu0 0.0
        %2037 = vmatprep.subr.mxu0 0.0
        %2038 = vmatpush1.msra.mxu0 0.0
        %2039 = vmatprep.subr.mxu0 0.0
        %2040 = vmatpush1.msra.mxu0 0.0
        %2041 = vmatprep.subr.mxu0 0.0
        %2042 = vmatpush1.msra.mxu0 0.0
        %2043 = vmatprep.subr.mxu0 0.0
        %2044 = vmatpush1.msra.mxu0 0.0
        %2045 = vmatprep.subr.mxu0 0.0
        %2046 = vmatpush1.msra.mxu0 0.0
        %2047 = vmatprep.subr.mxu0 0.0
        %2048 = vmatpush1.msra.mxu0 0.0
        %2049 = vmatprep.subr.mxu0 0.0
        %2050 = vmatpush1.msra.mxu0 0.0
        %2051 = vmatprep.subr.mxu0 0.0
        %2052 = vmatpush1.msra.mxu0 0.0
        %2053 = vmatprep.subr.mxu0 0.0
        %2054 = vmatpush1.msra.mxu0 0.0
        %2055 = vmatprep.subr.mxu0 0.0
        %2056 = vmatpush1.msra.mxu0 0.0
        %2057 = vmatprep.subr.mxu0 0.0
        %2058 = vmatpush1.msra.mxu0 0.0
        %2059 = vmatprep.subr.mxu0 0.0
        %2060 = vmatpush1.msra.mxu0 0.0
        %2061 = vmatprep.subr.mxu0 0.0
        %2062 = vmatpush1.msra.mxu0 0.0
        %2063 = vmatprep.subr.mxu0 0.0
        %2064 = vmatpush1.msra.mxu0 0.0
        %2065 = vmatprep.subr.mxu0 0.0
        %2066 = vmatpush1.msra.mxu0 0.0
        %2067 = vmatprep.subr.mxu0 0.0
        %2068 = vmatpush1.msra.mxu0 0.0
        %2069 = vmatprep.subr.mxu0 0.0
        %2070 = vmatpush1.msra.mxu0 0.0
        %2071 = vmatprep.subr.mxu0 0.0
        %2072 = vmatpush1.msra.mxu0 0.0
        %2073 = vmatprep.subr.mxu0 0.0
        %2074 = vmatpush1.msra.mxu0 0.0
        %2075 = vmatprep.mubr.f32.mxu0 0.0
        %2076 = vmatmul.mubr.f32.gmra.mrb[0].mxu0 %v2006
        %v2077 = vpop.f32.mrb[0].mxu0
        %v2078 = vadd.f32 0.0, %v2077
        %v2079 = vpop.f32.mrb[0].mxu0
        %2080 = vmatprep.mubr.f32.mxu0 0.0
        %2081 = vmatmul.mubr.f32.gmra.mrb[0].mxu0 %v2009
        %v2082 = vpop.f32.mrb[0].mxu0
        %v2083 = vadd.f32 0.0, %v2082
        %v2084 = vpop.f32.mrb[0].mxu0
        %2085 = vdwg.mxu0
        %v2086 = vrcp.pop %v1914
        %v2087 = vmul.f32 %v1997, %v2086
        %v2088 = vrcp.pop %v1917
        %v2089 = vmul.f32 %v2002, %v2088
        %v2090 = vrcp.pop %v1920
        %v2091 = vmul.f32 %v2078, %v2090
        %v2092 = vrcp.pop %v1923
        %v2093 = vmul.f32 %v2083, %v2092
        %v2094 = vcombine.high %v2087, 0.0
        %v2096 = vunpack.c.l.s4 1983009808
        %v2097 = vunpack.c.0.s8 %v2096
        %v2098 = vlaneseq
        %v2099 = vshrl.u32 %v2098, 7
        %v2100 = vsub.s32 %v2097, %v2099
        %v2101 = vrot.slane %v2087, %v2100
        %v2103 = vunpack.c.l.s4 1983009808
        %v2104 = vunpack.c.0.s8 %v2103
        %v2105 = vlaneseq
        %v2106 = vshrl.u32 %v2105, 7
        %v2107 = vsub.s32 %v2104, %v2106
        %v2108 = vrot.slane %v2094, %v2107
        %v2109 = vcombine.high %v2091, 0.0
        %v2111 = vunpack.c.l.s4 1983009808
        %v2112 = vunpack.c.0.s8 %v2111
        %v2113 = vlaneseq
        %v2114 = vshrl.u32 %v2113, 7
        %v2115 = vsub.s32 %v2112, %v2114
        %v2116 = vrot.slane %v2091, %v2115
        %v2118 = vunpack.c.l.s4 1983009808
        %v2119 = vunpack.c.0.s8 %v2118
        %v2120 = vlaneseq
        %v2121 = vshrl.u32 %v2120, 7
        %v2122 = vsub.s32 %v2119, %v2121
        %v2123 = vrot.slane %v2109, %v2122
        %v2124 = vcombine.low %v2101, %v2116
        %v2125 = vcombine.high %v2101, %v2116
        %v2127 = vunpack.c.l.s4 1934713408
        %v2128 = vunpack.c.0.s8 %v2127
        %v2129 = vlaneseq
        %v2130 = vshrl.u32 %v2129, 7
        %v2131 = vsub.s32 %v2128, %v2130
        %v2132 = vrot.slane %v2124, %v2131
        %v2134 = vunpack.c.l.s4 1934713408
        %v2135 = vunpack.c.0.s8 %v2134
        %v2136 = vlaneseq
        %v2137 = vshrl.u32 %v2136, 7
        %v2138 = vsub.s32 %v2135, %v2137
        %v2139 = vrot.slane %v2125, %v2138
        %v2140 = vcombine.low %v2108, %v2123
        %v2141 = vcombine.high %v2108, %v2123
        %v2143 = vunpack.c.l.s4 1934713408
        %v2144 = vunpack.c.0.s8 %v2143
        %v2145 = vlaneseq
        %v2146 = vshrl.u32 %v2145, 7
        %v2147 = vsub.s32 %v2144, %v2146
        %v2148 = vrot.slane %v2140, %v2147
        %v2150 = vunpack.c.l.s4 1934713408
        %v2151 = vunpack.c.0.s8 %v2150
        %v2152 = vlaneseq
        %v2153 = vshrl.u32 %v2152, 7
        %v2154 = vsub.s32 %v2151, %v2153
        %v2155 = vrot.slane %v2141, %v2154
        %v2156 = vcombine.high %v2132, 0.0
        %v2157 = vcombine.high %v2139, 0.0
        %v2158 = vcombine.high %v2148, 0.0
        %v2159 = vcombine.high %v2155, 0.0
        %v2160 = vcombine.high %v2089, 0.0
        %v2162 = vunpack.c.l.s4 1983009808
        %v2163 = vunpack.c.0.s8 %v2162
        %v2164 = vlaneseq
        %v2165 = vshrl.u32 %v2164, 7
        %v2166 = vsub.s32 %v2163, %v2165
        %v2167 = vrot.slane %v2089, %v2166
        %v2169 = vunpack.c.l.s4 1983009808
        %v2170 = vunpack.c.0.s8 %v2169
        %v2171 = vlaneseq
        %v2172 = vshrl.u32 %v2171, 7
        %v2173 = vsub.s32 %v2170, %v2172
        %v2174 = vrot.slane %v2160, %v2173
        %v2175 = vcombine.high %v2093, 0.0
        %v2177 = vunpack.c.l.s4 1983009808
        %v2178 = vunpack.c.0.s8 %v2177
        %v2179 = vlaneseq
        %v2180 = vshrl.u32 %v2179, 7
        %v2181 = vsub.s32 %v2178, %v2180
        %v2182 = vrot.slane %v2093, %v2181
        %v2184 = vunpack.c.l.s4 1983009808
        %v2185 = vunpack.c.0.s8 %v2184
        %v2186 = vlaneseq
        %v2187 = vshrl.u32 %v2186, 7
        %v2188 = vsub.s32 %v2185, %v2187
        %v2189 = vrot.slane %v2175, %v2188
        %v2190 = vcombine.low %v2167, %v2182
        %v2191 = vcombine.high %v2167, %v2182
        %v2193 = vunpack.c.l.s4 1934713408
        %v2194 = vunpack.c.0.s8 %v2193
        %v2195 = vlaneseq
        %v2196 = vshrl.u32 %v2195, 7
        %v2197 = vsub.s32 %v2194, %v2196
        %v2198 = vrot.slane %v2190, %v2197
        %v2200 = vunpack.c.l.s4 1934713408
        %v2201 = vunpack.c.0.s8 %v2200
        %v2202 = vlaneseq
        %v2203 = vshrl.u32 %v2202, 7
        %v2204 = vsub.s32 %v2201, %v2203
        %v2205 = vrot.slane %v2191, %v2204
        %v2206 = vcombine.low %v2174, %v2189
        %v2207 = vcombine.high %v2174, %v2189
        %v2209 = vunpack.c.l.s4 1934713408
        %v2210 = vunpack.c.0.s8 %v2209
        %v2211 = vlaneseq
        %v2212 = vshrl.u32 %v2211, 7
        %v2213 = vsub.s32 %v2210, %v2212
        %v2214 = vrot.slane %v2206, %v2213
        %v2216 = vunpack.c.l.s4 1934713408
        %v2217 = vunpack.c.0.s8 %v2216
        %v2218 = vlaneseq
        %v2219 = vshrl.u32 %v2218, 7
        %v2220 = vsub.s32 %v2217, %v2219
        %v2221 = vrot.slane %v2207, %v2220
        %v2222 = vcombine.high %v2198, 0.0
        %v2223 = vcombine.high %v2205, 0.0
        %v2224 = vcombine.high %v2214, 0.0
        %v2225 = vcombine.high %v2221, 0.0
        %v2226 = vcombine.low %v2132, %v2139
        %v2228 = vunpack.c.l.s4 1983009808
        %v2229 = vunpack.c.0.s8 %v2228
        %v2230 = vlaneseq
        %v2231 = vshrl.u32 %v2230, 7
        %v2232 = vsub.s32 %v2229, %v2231
        %v2233 = vrot.slane %v2226, %v2232
        %v2234 = vcombine.low %v2156, %v2157
        %v2236 = vunpack.c.l.s4 1983009808
        %v2237 = vunpack.c.0.s8 %v2236
        %v2238 = vlaneseq
        %v2239 = vshrl.u32 %v2238, 7
        %v2240 = vsub.s32 %v2237, %v2239
        %v2241 = vrot.slane %v2234, %v2240
        %v2242 = vcombine.low %v2148, %v2155
        %v2244 = vunpack.c.l.s4 1983009808
        %v2245 = vunpack.c.0.s8 %v2244
        %v2246 = vlaneseq
        %v2247 = vshrl.u32 %v2246, 7
        %v2248 = vsub.s32 %v2245, %v2247
        %v2249 = vrot.slane %v2242, %v2248
        %v2250 = vcombine.low %v2158, %v2159
        %v2252 = vunpack.c.l.s4 1983009808
        %v2253 = vunpack.c.0.s8 %v2252
        %v2254 = vlaneseq
        %v2255 = vshrl.u32 %v2254, 7
        %v2256 = vsub.s32 %v2253, %v2255
        %v2257 = vrot.slane %v2250, %v2256
        %v2258 = vcombine.low %v2233, %v2241
        %v2260 = vunpack.c.l.s4 1934713408
        %v2261 = vunpack.c.0.s8 %v2260
        %v2262 = vlaneseq
        %v2263 = vshrl.u32 %v2262, 7
        %v2264 = vsub.s32 %v2261, %v2263
        %v2265 = vrot.slane %v2258, %v2264
        %v2266 = vcombine.low %v2249, %v2257
        %v2268 = vunpack.c.l.s4 1934713408
        %v2269 = vunpack.c.0.s8 %v2268
        %v2270 = vlaneseq
        %v2271 = vshrl.u32 %v2270, 7
        %v2272 = vsub.s32 %v2269, %v2271
        %v2273 = vrot.slane %v2266, %v2272
        %v2274 = vcombine.low %v2265, %v2273
        %v2275 = vcombine.high %v2265, %v2273
        %v2276 = vcombine.low %v2198, %v2205
        %v2278 = vunpack.c.l.s4 1983009808
        %v2279 = vunpack.c.0.s8 %v2278
        %v2280 = vlaneseq
        %v2281 = vshrl.u32 %v2280, 7
        %v2282 = vsub.s32 %v2279, %v2281
        %v2283 = vrot.slane %v2276, %v2282
        %v2284 = vcombine.low %v2222, %v2223
        %v2286 = vunpack.c.l.s4 1983009808
        %v2287 = vunpack.c.0.s8 %v2286
        %v2288 = vlaneseq
        %v2289 = vshrl.u32 %v2288, 7
        %v2290 = vsub.s32 %v2287, %v2289
        %v2291 = vrot.slane %v2284, %v2290
        %v2292 = vcombine.low %v2214, %v2221
        %v2294 = vunpack.c.l.s4 1983009808
        %v2295 = vunpack.c.0.s8 %v2294
        %v2296 = vlaneseq
        %v2297 = vshrl.u32 %v2296, 7
        %v2298 = vsub.s32 %v2295, %v2297
        %v2299 = vrot.slane %v2292, %v2298
        %v2300 = vcombine.low %v2224, %v2225
        %v2302 = vunpack.c.l.s4 1983009808
        %v2303 = vunpack.c.0.s8 %v2302
        %v2304 = vlaneseq
        %v2305 = vshrl.u32 %v2304, 7
        %v2306 = vsub.s32 %v2303, %v2305
        %v2307 = vrot.slane %v2300, %v2306
        %v2308 = vcombine.low %v2283, %v2291
        %v2310 = vunpack.c.l.s4 1934713408
        %v2311 = vunpack.c.0.s8 %v2310
        %v2312 = vlaneseq
        %v2313 = vshrl.u32 %v2312, 7
        %v2314 = vsub.s32 %v2311, %v2313
        %v2315 = vrot.slane %v2308, %v2314
        %v2316 = vcombine.low %v2299, %v2307
        %v2318 = vunpack.c.l.s4 1934713408
        %v2319 = vunpack.c.0.s8 %v2318
        %v2320 = vlaneseq
        %v2321 = vshrl.u32 %v2320, 7
        %v2322 = vsub.s32 %v2319, %v2321
        %v2323 = vrot.slane %v2316, %v2322
        %v2324 = vcombine.low %v2315, %v2323
        %v2325 = vcombine.high %v2315, %v2323
        %v2326 = vld [vmem:[#allocation7] sm:$0xff]
        %v2327 = vld [vmem:[#allocation7 + $0x8] sm:$0xff]
        %v2328 = vld [vmem:[#allocation7 + $0x10] sm:$0xff]
        %v2329 = vld [vmem:[#allocation7 + $0x18] sm:$0xff]
        %v2330 = vld [vmem:[#allocation7 + $0x20] sm:$0xff]
        %v2331 = vld [vmem:[#allocation7 + $0x28] sm:$0xff]
        %v2332 = vld [vmem:[#allocation7 + $0x30] sm:$0xff]
        %v2333 = vld [vmem:[#allocation7 + $0x38] sm:$0xff]
        %v2334 = vld [vmem:[#allocation7 + $0x40] sm:$0xff]
        %v2335 = vld [vmem:[#allocation7 + $0x48] sm:$0xff]
        %v2336 = vld [vmem:[#allocation7 + $0x50] sm:$0xff]
        %v2337 = vld [vmem:[#allocation7 + $0x58] sm:$0xff]
        %v2338 = vld [vmem:[#allocation7 + $0x60] sm:$0xff]
        %v2339 = vld [vmem:[#allocation7 + $0x68] sm:$0xff]
        %v2340 = vld [vmem:[#allocation7 + $0x70] sm:$0xff]
        %v2341 = vld [vmem:[#allocation7 + $0x78] sm:$0xff]
        %v2342 = vld [vmem:[#allocation7 + $0x80] sm:$0xff]
        %v2343 = vld [vmem:[#allocation7 + $0x88] sm:$0xff]
        %v2344 = vld [vmem:[#allocation7 + $0x90] sm:$0xff]
        %v2345 = vld [vmem:[#allocation7 + $0x98] sm:$0xff]
        %v2346 = vld [vmem:[#allocation7 + $0xa0] sm:$0xff]
        %v2347 = vld [vmem:[#allocation7 + $0xa8] sm:$0xff]
        %v2348 = vld [vmem:[#allocation7 + $0xb0] sm:$0xff]
        %v2349 = vld [vmem:[#allocation7 + $0xb8] sm:$0xff]
        %v2350 = vld [vmem:[#allocation7 + $0xc0] sm:$0xff]
        %v2351 = vld [vmem:[#allocation7 + $0xc8] sm:$0xff]
        %v2352 = vld [vmem:[#allocation7 + $0xd0] sm:$0xff]
        %v2353 = vld [vmem:[#allocation7 + $0xd8] sm:$0xff]
        %v2354 = vld [vmem:[#allocation7 + $0xe0] sm:$0xff]
        %v2355 = vld [vmem:[#allocation7 + $0xe8] sm:$0xff]
        %v2356 = vld [vmem:[#allocation7 + $0xf0] sm:$0xff]
        %v2357 = vld [vmem:[#allocation7 + $0xf8] sm:$0xff]
        %v2358 = vld [vmem:[#allocation7 + $0x100] sm:$0xff]
        %v2359 = vld [vmem:[#allocation7 + $0x108] sm:$0xff]
        %v2360 = vld [vmem:[#allocation7 + $0x110] sm:$0xff]
        %v2361 = vld [vmem:[#allocation7 + $0x118] sm:$0xff]
        %v2362 = vld [vmem:[#allocation7 + $0x120] sm:$0xff]
        %v2363 = vld [vmem:[#allocation7 + $0x128] sm:$0xff]
        %v2364 = vld [vmem:[#allocation7 + $0x130] sm:$0xff]
        %v2365 = vld [vmem:[#allocation7 + $0x138] sm:$0xff]
        %v2366 = vld [vmem:[#allocation7 + $0x140] sm:$0xff]
        %v2367 = vld [vmem:[#allocation7 + $0x148] sm:$0xff]
        %v2368 = vld [vmem:[#allocation7 + $0x150] sm:$0xff]
        %v2369 = vld [vmem:[#allocation7 + $0x158] sm:$0xff]
        %v2370 = vld [vmem:[#allocation7 + $0x160] sm:$0xff]
        %v2371 = vld [vmem:[#allocation7 + $0x168] sm:$0xff]
        %v2372 = vld [vmem:[#allocation7 + $0x170] sm:$0xff]
        %v2373 = vld [vmem:[#allocation7 + $0x178] sm:$0xff]
        %v2374 = vld [vmem:[#allocation7 + $0x180] sm:$0xff]
        %v2375 = vld [vmem:[#allocation7 + $0x188] sm:$0xff]
        %v2376 = vld [vmem:[#allocation7 + $0x190] sm:$0xff]
        %v2377 = vld [vmem:[#allocation7 + $0x198] sm:$0xff]
        %v2378 = vld [vmem:[#allocation7 + $0x1a0] sm:$0xff]
        %v2379 = vld [vmem:[#allocation7 + $0x1a8] sm:$0xff]
        %v2380 = vld [vmem:[#allocation7 + $0x1b0] sm:$0xff]
        %v2381 = vld [vmem:[#allocation7 + $0x1b8] sm:$0xff]
        %v2382 = vld [vmem:[#allocation7 + $0x1c0] sm:$0xff]
        %v2383 = vld [vmem:[#allocation7 + $0x1c8] sm:$0xff]
        %v2384 = vld [vmem:[#allocation7 + $0x1d0] sm:$0xff]
        %v2385 = vld [vmem:[#allocation7 + $0x1d8] sm:$0xff]
        %v2386 = vld [vmem:[#allocation7 + $0x1e0] sm:$0xff]
        %v2387 = vld [vmem:[#allocation7 + $0x1e8] sm:$0xff]
        %v2388 = vld [vmem:[#allocation7 + $0x1f0] sm:$0xff]
        %v2389 = vld [vmem:[#allocation7 + $0x1f8] sm:$0xff]
        %v2390 = vld [vmem:[%s6] sm:$0x3]
        %v2392 = vlaneseq
        %v2393 = vshrl.u32 %v2392, 7
        %v2394 = vsub.s32 0, %v2393
        %v2395 = vrot.slane %v2390, %v2394
        %v2396 = vlaneseq
        %v2397 = vshrl.u32 %v2396, 7
        %v2398 = vsub.s32 1, %v2397
        %v2399 = vrot.slane %v2390, %v2398
        %2402 = vmatprep.subr.mxu0 %v2327
        %2403 = vmatpush1.msra.mxu0 %v2326
        %2404 = vmatprep.subr.mxu0 %v2329
        %2405 = vmatpush1.msra.mxu0 %v2328
        %2406 = vmatprep.subr.mxu0 %v2331
        %2407 = vmatpush1.msra.mxu0 %v2330
        %2408 = vmatprep.subr.mxu0 %v2333
        %2409 = vmatpush1.msra.mxu0 %v2332
        %2410 = vmatprep.subr.mxu0 %v2335
        %2411 = vmatpush1.msra.mxu0 %v2334
        %2412 = vmatprep.subr.mxu0 %v2337
        %2413 = vmatpush1.msra.mxu0 %v2336
        %2414 = vmatprep.subr.mxu0 %v2339
        %2415 = vmatpush1.msra.mxu0 %v2338
        %2416 = vmatprep.subr.mxu0 %v2341
        %2417 = vmatpush1.msra.mxu0 %v2340
        %2418 = vmatprep.subr.mxu0 %v2343
        %2419 = vmatpush1.msra.mxu0 %v2342
        %2420 = vmatprep.subr.mxu0 %v2345
        %2421 = vmatpush1.msra.mxu0 %v2344
        %2422 = vmatprep.subr.mxu0 %v2347
        %2423 = vmatpush1.msra.mxu0 %v2346
        %2424 = vmatprep.subr.mxu0 %v2349
        %2425 = vmatpush1.msra.mxu0 %v2348
        %2426 = vmatprep.subr.mxu0 %v2351
        %2427 = vmatpush1.msra.mxu0 %v2350
        %2428 = vmatprep.subr.mxu0 %v2353
        %2429 = vmatpush1.msra.mxu0 %v2352
        %2430 = vmatprep.subr.mxu0 %v2355
        %2431 = vmatpush1.msra.mxu0 %v2354
        %2432 = vmatprep.subr.mxu0 %v2357
        %2433 = vmatpush1.msra.mxu0 %v2356
        %2434 = vmatprep.subr.mxu0 %v2359
        %2435 = vmatpush1.msra.mxu0 %v2358
        %2436 = vmatprep.subr.mxu0 %v2361
        %2437 = vmatpush1.msra.mxu0 %v2360
        %2438 = vmatprep.subr.mxu0 %v2363
        %2439 = vmatpush1.msra.mxu0 %v2362
        %2440 = vmatprep.subr.mxu0 %v2365
        %2441 = vmatpush1.msra.mxu0 %v2364
        %2442 = vmatprep.subr.mxu0 %v2367
        %2443 = vmatpush1.msra.mxu0 %v2366
        %2444 = vmatprep.subr.mxu0 %v2369
        %2445 = vmatpush1.msra.mxu0 %v2368
        %2446 = vmatprep.subr.mxu0 %v2371
        %2447 = vmatpush1.msra.mxu0 %v2370
        %2448 = vmatprep.subr.mxu0 %v2373
        %2449 = vmatpush1.msra.mxu0 %v2372
        %2450 = vmatprep.subr.mxu0 %v2375
        %2451 = vmatpush1.msra.mxu0 %v2374
        %2452 = vmatprep.subr.mxu0 %v2377
        %2453 = vmatpush1.msra.mxu0 %v2376
        %2454 = vmatprep.subr.mxu0 %v2379
        %2455 = vmatpush1.msra.mxu0 %v2378
        %2456 = vmatprep.subr.mxu0 %v2381
        %2457 = vmatpush1.msra.mxu0 %v2380
        %2458 = vmatprep.subr.mxu0 %v2383
        %2459 = vmatpush1.msra.mxu0 %v2382
        %2460 = vmatprep.subr.mxu0 %v2385
        %2461 = vmatpush1.msra.mxu0 %v2384
        %2462 = vmatprep.subr.mxu0 %v2387
        %2463 = vmatpush1.msra.mxu0 %v2386
        %2464 = vmatprep.subr.mxu0 %v2389
        %2465 = vmatpush1.msra.mxu0 %v2388
        %2466 = vmatprep.mubr.f32.mxu0 %v2275
        %2467 = vmatmul.mubr.f32.gmra.mrb[0].mxu0 %v2274
        %v2468 = vpop.f32.mrb[0].mxu0
        %v2469 = vadd.f32 %v2395, %v2468
        %v2470 = vpop.f32.mrb[0].mxu0
        %v2471 = vadd.f32 %v2399, %v2470
        %2472 = vmatprep.mubr.f32.mxu0 %v2325
        %2473 = vmatmul.mubr.f32.gmra.mrb[0].mxu0 %v2324
        %v2474 = vpop.f32.mrb[0].mxu0
        %v2475 = vadd.f32 %v2395, %v2474
        %v2476 = vpop.f32.mrb[0].mxu0
        %v2477 = vadd.f32 %v2399, %v2476
        %2478 = vdwg.mxu0
        %v2479 = vadd.f32 %v582, %v583
        %2480 = vadd.xlane.f32.xlu0 %v2479
        %v2481 = vpop.xlane.xlu0 %2480
        %v2482 = vadd.f32 %v584, %v585
        %2483 = vadd.xlane.f32.xlu0 %v2482
        %v2484 = vpop.xlane.xlu0 %2483
        %v2485 = vmul.f32 %v2481, %v527
        %v2486 = vmul.f32 %v2484, %v527
        %v2487 = vsub.f32 %v582, %v2485
        %v2488 = vsub.f32 %v583, %v2485
        %v2489 = vsub.f32 %v584, %v2486
        %v2490 = vsub.f32 %v585, %v2486
        %v2491 = vmul.f32 %v2487, %v2487
        %v2492 = vmul.f32 %v2488, %v2488
        %v2493 = vmul.f32 %v2489, %v2489
        %v2494 = vmul.f32 %v2490, %v2490
        %v2495 = vadd.f32 %v2491, %v2492
        %2496 = vadd.xlane.f32.xlu0 %v2495
        %v2497 = vpop.xlane.xlu0 %2496
        %v2498 = vadd.f32 %v2493, %v2494
        %2499 = vadd.xlane.f32.xlu0 %v2498
        %v2500 = vpop.xlane.xlu0 %2499
        %v2501 = vmul.f32 %v2497, %v527
        %v2502 = vmul.f32 %v2500, %v527
        %v2503 = vadd.f32 %v2501, 1e-05
        %v2504 = vadd.f32 %v2502, 1e-05
        %v2505 = vrsqrt.pop %v2503
        %v2506 = vrsqrt.pop %v2504
        %v2507 = vmul.f32 %v2487, %v2505
        %v2508 = vmul.f32 %v2488, %v2505
        %v2509 = vmul.f32 %v2489, %v2506
        %v2510 = vmul.f32 %v2490, %v2506
        %v2511 = vld [vmem:[%s7] sm:$0x3]
        %v2513 = vlaneseq
        %v2514 = vshrl.u32 %v2513, 7
        %v2515 = vsub.s32 0, %v2514
        %v2516 = vrot.slane %v2511, %v2515
        %v2517 = vlaneseq
        %v2518 = vshrl.u32 %v2517, 7
        %v2519 = vsub.s32 1, %v2518
        %v2520 = vrot.slane %v2511, %v2519
        %v2523 = vmul.f32 %v2507, %v2516
        %v2524 = vmul.f32 %v2508, %v2520
        %v2525 = vmul.f32 %v2509, %v2516
        %v2526 = vmul.f32 %v2510, %v2520
        %v2527 = vld [vmem:[%s8] sm:$0x3]
        %v2529 = vlaneseq
        %v2530 = vshrl.u32 %v2529, 7
        %v2531 = vsub.s32 0, %v2530
        %v2532 = vrot.slane %v2527, %v2531
        %v2533 = vlaneseq
        %v2534 = vshrl.u32 %v2533, 7
        %v2535 = vsub.s32 1, %v2534
        %v2536 = vrot.slane %v2527, %v2535
        %v2539 = vadd.f32 %v2523, %v2532
        %v2540 = vadd.f32 %v2524, %v2536
        %v2541 = vadd.f32 %v2525, %v2532
        %v2542 = vadd.f32 %v2526, %v2536
        %v2543 = vld [vmem:[#allocation8] sm:$0xff]
        %v2544 = vld [vmem:[#allocation8 + $0x8] sm:$0xff]
        %v2545 = vld [vmem:[#allocation8 + $0x10] sm:$0xff]
        %v2546 = vld [vmem:[#allocation8 + $0x18] sm:$0xff]
        %v2547 = vld [vmem:[#allocation8 + $0x20] sm:$0xff]
        %v2548 = vld [vmem:[#allocation8 + $0x28] sm:$0xff]
        %v2549 = vld [vmem:[#allocation8 + $0x30] sm:$0xff]
        %v2550 = vld [vmem:[#allocation8 + $0x38] sm:$0xff]
        %v2551 = vld [vmem:[#allocation8 + $0x40] sm:$0xff]
        %v2552 = vld [vmem:[#allocation8 + $0x48] sm:$0xff]
        %v2553 = vld [vmem:[#allocation8 + $0x50] sm:$0xff]
        %v2554 = vld [vmem:[#allocation8 + $0x58] sm:$0xff]
        %v2555 = vld [vmem:[#allocation8 + $0x60] sm:$0xff]
        %v2556 = vld [vmem:[#allocation8 + $0x68] sm:$0xff]
        %v2557 = vld [vmem:[#allocation8 + $0x70] sm:$0xff]
        %v2558 = vld [vmem:[#allocation8 + $0x78] sm:$0xff]
        %v2559 = vld [vmem:[#allocation8 + $0x80] sm:$0xff]
        %v2560 = vld [vmem:[#allocation8 + $0x88] sm:$0xff]
        %v2561 = vld [vmem:[#allocation8 + $0x90] sm:$0xff]
        %v2562 = vld [vmem:[#allocation8 + $0x98] sm:$0xff]
        %v2563 = vld [vmem:[#allocation8 + $0xa0] sm:$0xff]
        %v2564 = vld [vmem:[#allocation8 + $0xa8] sm:$0xff]
        %v2565 = vld [vmem:[#allocation8 + $0xb0] sm:$0xff]
        %v2566 = vld [vmem:[#allocation8 + $0xb8] sm:$0xff]
        %v2567 = vld [vmem:[#allocation8 + $0xc0] sm:$0xff]
        %v2568 = vld [vmem:[#allocation8 + $0xc8] sm:$0xff]
        %v2569 = vld [vmem:[#allocation8 + $0xd0] sm:$0xff]
        %v2570 = vld [vmem:[#allocation8 + $0xd8] sm:$0xff]
        %v2571 = vld [vmem:[#allocation8 + $0xe0] sm:$0xff]
        %v2572 = vld [vmem:[#allocation8 + $0xe8] sm:$0xff]
        %v2573 = vld [vmem:[#allocation8 + $0xf0] sm:$0xff]
        %v2574 = vld [vmem:[#allocation8 + $0xf8] sm:$0xff]
        %v2575 = vld [vmem:[%s10] sm:$0x1]
        %v2577 = vlaneseq
        %v2578 = vshrl.u32 %v2577, 7
        %v2579 = vsub.s32 0, %v2578
        %v2580 = vrot.slane %v2575, %v2579
        %2582 = vmatprep.subr.mxu0 0.0
        %2583 = vmatpush1.msra.mxu0 %v2543
        %2584 = vmatprep.subr.mxu0 0.0
        %2585 = vmatpush1.msra.mxu0 %v2544
        %2586 = vmatprep.subr.mxu0 0.0
        %2587 = vmatpush1.msra.mxu0 %v2545
        %2588 = vmatprep.subr.mxu0 0.0
        %2589 = vmatpush1.msra.mxu0 %v2546
        %2590 = vmatprep.subr.mxu0 0.0
        %2591 = vmatpush1.msra.mxu0 %v2547
        %2592 = vmatprep.subr.mxu0 0.0
        %2593 = vmatpush1.msra.mxu0 %v2548
        %2594 = vmatprep.subr.mxu0 0.0
        %2595 = vmatpush1.msra.mxu0 %v2549
        %2596 = vmatprep.subr.mxu0 0.0
        %2597 = vmatpush1.msra.mxu0 %v2550
        %2598 = vmatprep.subr.mxu0 0.0
        %2599 = vmatpush1.msra.mxu0 %v2551
        %2600 = vmatprep.subr.mxu0 0.0
        %2601 = vmatpush1.msra.mxu0 %v2552
        %2602 = vmatprep.subr.mxu0 0.0
        %2603 = vmatpush1.msra.mxu0 %v2553
        %2604 = vmatprep.subr.mxu0 0.0
        %2605 = vmatpush1.msra.mxu0 %v2554
        %2606 = vmatprep.subr.mxu0 0.0
        %2607 = vmatpush1.msra.mxu0 %v2555
        %2608 = vmatprep.subr.mxu0 0.0
        %2609 = vmatpush1.msra.mxu0 %v2556
        %2610 = vmatprep.subr.mxu0 0.0
        %2611 = vmatpush1.msra.mxu0 %v2557
        %2612 = vmatprep.subr.mxu0 0.0
        %2613 = vmatpush1.msra.mxu0 %v2558
        %2614 = vmatprep.subr.mxu0 0.0
        %2615 = vmatpush1.msra.mxu0 %v2559
        %2616 = vmatprep.subr.mxu0 0.0
        %2617 = vmatpush1.msra.mxu0 %v2560
        %2618 = vmatprep.subr.mxu0 0.0
        %2619 = vmatpush1.msra.mxu0 %v2561
        %2620 = vmatprep.subr.mxu0 0.0
        %2621 = vmatpush1.msra.mxu0 %v2562
        %2622 = vmatprep.subr.mxu0 0.0
        %2623 = vmatpush1.msra.mxu0 %v2563
        %2624 = vmatprep.subr.mxu0 0.0
        %2625 = vmatpush1.msra.mxu0 %v2564
        %2626 = vmatprep.subr.mxu0 0.0
        %2627 = vmatpush1.msra.mxu0 %v2565
        %2628 = vmatprep.subr.mxu0 0.0
        %2629 = vmatpush1.msra.mxu0 %v2566
        %2630 = vmatprep.subr.mxu0 0.0
        %2631 = vmatpush1.msra.mxu0 %v2567
        %2632 = vmatprep.subr.mxu0 0.0
        %2633 = vmatpush1.msra.mxu0 %v2568
        %2634 = vmatprep.subr.mxu0 0.0
        %2635 = vmatpush1.msra.mxu0 %v2569
        %2636 = vmatprep.subr.mxu0 0.0
        %2637 = vmatpush1.msra.mxu0 %v2570
        %2638 = vmatprep.subr.mxu0 0.0
        %2639 = vmatpush1.msra.mxu0 %v2571
        %2640 = vmatprep.subr.mxu0 0.0
        %2641 = vmatpush1.msra.mxu0 %v2572
        %2642 = vmatprep.subr.mxu0 0.0
        %2643 = vmatpush1.msra.mxu0 %v2573
        %2644 = vmatprep.subr.mxu0 0.0
        %2645 = vmatpush1.msra.mxu0 %v2574
        %2646 = vmatprep.mubr.f32.mxu0 %v2540
        %2647 = vmatmul.mubr.f32.gmra.mrb[0].mxu0 %v2539
        %v2648 = vpop.f32.mrb[0].mxu0
        %v2649 = vadd.f32 %v2580, %v2648
        %v2650 = vpop.f32.mrb[0].mxu0
        %2651 = vmatprep.mubr.f32.mxu0 %v2542
        %2652 = vmatmul.mubr.f32.gmra.mrb[0].mxu0 %v2541
        %v2653 = vpop.f32.mrb[0].mxu0
        %v2654 = vadd.f32 %v2580, %v2653
        %v2655 = vpop.f32.mrb[0].mxu0
        %2656 = vdwg.mxu0
        %v2657 = vmax.f32 %v2649, 0.0
        %v2658 = vmax.f32 %v2654, 0.0
        %v2659 = vld [vmem:[#allocation10] sm:$0xff]
        %v2660 = vld [vmem:[#allocation10 + $0x8] sm:$0xff]
        %v2661 = vld [vmem:[#allocation10 + $0x10] sm:$0xff]
        %v2662 = vld [vmem:[#allocation10 + $0x18] sm:$0xff]
        %v2663 = vld [vmem:[#allocation10 + $0x20] sm:$0xff]
        %v2664 = vld [vmem:[#allocation10 + $0x28] sm:$0xff]
        %v2665 = vld [vmem:[#allocation10 + $0x30] sm:$0xff]
        %v2666 = vld [vmem:[#allocation10 + $0x38] sm:$0xff]
        %v2667 = vld [vmem:[#allocation10 + $0x40] sm:$0xff]
        %v2668 = vld [vmem:[#allocation10 + $0x48] sm:$0xff]
        %v2669 = vld [vmem:[#allocation10 + $0x50] sm:$0xff]
        %v2670 = vld [vmem:[#allocation10 + $0x58] sm:$0xff]
        %v2671 = vld [vmem:[#allocation10 + $0x60] sm:$0xff]
        %v2672 = vld [vmem:[#allocation10 + $0x68] sm:$0xff]
        %v2673 = vld [vmem:[#allocation10 + $0x70] sm:$0xff]
        %v2674 = vld [vmem:[#allocation10 + $0x78] sm:$0xff]
        %v2675 = vld [vmem:[#allocation10 + $0x80] sm:$0xff]
        %v2676 = vld [vmem:[#allocation10 + $0x88] sm:$0xff]
        %v2677 = vld [vmem:[#allocation10 + $0x90] sm:$0xff]
        %v2678 = vld [vmem:[#allocation10 + $0x98] sm:$0xff]
        %v2679 = vld [vmem:[#allocation10 + $0xa0] sm:$0xff]
        %v2680 = vld [vmem:[#allocation10 + $0xa8] sm:$0xff]
        %v2681 = vld [vmem:[#allocation10 + $0xb0] sm:$0xff]
        %v2682 = vld [vmem:[#allocation10 + $0xb8] sm:$0xff]
        %v2683 = vld [vmem:[#allocation10 + $0xc0] sm:$0xff]
        %v2684 = vld [vmem:[#allocation10 + $0xc8] sm:$0xff]
        %v2685 = vld [vmem:[#allocation10 + $0xd0] sm:$0xff]
        %v2686 = vld [vmem:[#allocation10 + $0xd8] sm:$0xff]
        %v2687 = vld [vmem:[#allocation10 + $0xe0] sm:$0xff]
        %v2688 = vld [vmem:[#allocation10 + $0xe8] sm:$0xff]
        %v2689 = vld [vmem:[#allocation10 + $0xf0] sm:$0xff]
        %v2690 = vld [vmem:[#allocation10 + $0xf8] sm:$0xff]
        %v2691 = vld [vmem:[%s12] sm:$0x3]
        %v2693 = vlaneseq
        %v2694 = vshrl.u32 %v2693, 7
        %v2695 = vsub.s32 0, %v2694
        %v2696 = vrot.slane %v2691, %v2695
        %v2697 = vlaneseq
        %v2698 = vshrl.u32 %v2697, 7
        %v2699 = vsub.s32 1, %v2698
        %v2700 = vrot.slane %v2691, %v2699
        %2703 = vmatprep.subr.mxu0 %v2660
        %2704 = vmatpush1.msra.mxu0 %v2659
        %2705 = vmatprep.subr.mxu0 %v2662
        %2706 = vmatpush1.msra.mxu0 %v2661
        %2707 = vmatprep.subr.mxu0 %v2664
        %2708 = vmatpush1.msra.mxu0 %v2663
        %2709 = vmatprep.subr.mxu0 %v2666
        %2710 = vmatpush1.msra.mxu0 %v2665
        %2711 = vmatprep.subr.mxu0 %v2668
        %2712 = vmatpush1.msra.mxu0 %v2667
        %2713 = vmatprep.subr.mxu0 %v2670
        %2714 = vmatpush1.msra.mxu0 %v2669
        %2715 = vmatprep.subr.mxu0 %v2672
        %2716 = vmatpush1.msra.mxu0 %v2671
        %2717 = vmatprep.subr.mxu0 %v2674
        %2718 = vmatpush1.msra.mxu0 %v2673
        %2719 = vmatprep.subr.mxu0 %v2676
        %2720 = vmatpush1.msra.mxu0 %v2675
        %2721 = vmatprep.subr.mxu0 %v2678
        %2722 = vmatpush1.msra.mxu0 %v2677
        %2723 = vmatprep.subr.mxu0 %v2680
        %2724 = vmatpush1.msra.mxu0 %v2679
        %2725 = vmatprep.subr.mxu0 %v2682
        %2726 = vmatpush1.msra.mxu0 %v2681
        %2727 = vmatprep.subr.mxu0 %v2684
        %2728 = vmatpush1.msra.mxu0 %v2683
        %2729 = vmatprep.subr.mxu0 %v2686
        %2730 = vmatpush1.msra.mxu0 %v2685
        %2731 = vmatprep.subr.mxu0 %v2688
        %2732 = vmatpush1.msra.mxu0 %v2687
        %2733 = vmatprep.subr.mxu0 %v2690
        %2734 = vmatpush1.msra.mxu0 %v2689
        %2735 = vmatprep.subr.mxu0 0.0
        %2736 = vmatpush1.msra.mxu0 0.0
        %2737 = vmatprep.subr.mxu0 0.0
        %2738 = vmatpush1.msra.mxu0 0.0
        %2739 = vmatprep.subr.mxu0 0.0
        %2740 = vmatpush1.msra.mxu0 0.0
        %2741 = vmatprep.subr.mxu0 0.0
        %2742 = vmatpush1.msra.mxu0 0.0
        %2743 = vmatprep.subr.mxu0 0.0
        %2744 = vmatpush1.msra.mxu0 0.0
        %2745 = vmatprep.subr.mxu0 0.0
        %2746 = vmatpush1.msra.mxu0 0.0
        %2747 = vmatprep.subr.mxu0 0.0
        %2748 = vmatpush1.msra.mxu0 0.0
        %2749 = vmatprep.subr.mxu0 0.0
        %2750 = vmatpush1.msra.mxu0 0.0
        %2751 = vmatprep.subr.mxu0 0.0
        %2752 = vmatpush1.msra.mxu0 0.0
        %2753 = vmatprep.subr.mxu0 0.0
        %2754 = vmatpush1.msra.mxu0 0.0
        %2755 = vmatprep.subr.mxu0 0.0
        %2756 = vmatpush1.msra.mxu0 0.0
        %2757 = vmatprep.subr.mxu0 0.0
        %2758 = vmatpush1.msra.mxu0 0.0
        %2759 = vmatprep.subr.mxu0 0.0
        %2760 = vmatpush1.msra.mxu0 0.0
        %2761 = vmatprep.subr.mxu0 0.0
        %2762 = vmatpush1.msra.mxu0 0.0
        %2763 = vmatprep.subr.mxu0 0.0
        %2764 = vmatpush1.msra.mxu0 0.0
        %2765 = vmatprep.subr.mxu0 0.0
        %2766 = vmatpush1.msra.mxu0 0.0
        %2767 = vmatprep.mubr.f32.mxu0 0.0
        %2768 = vmatmul.mubr.f32.gmra.mrb[0].mxu0 %v2657
        %v2769 = vpop.f32.mrb[0].mxu0
        %v2770 = vadd.f32 %v2696, %v2769
        %v2771 = vpop.f32.mrb[0].mxu0
        %v2772 = vadd.f32 %v2700, %v2771
        %2773 = vmatprep.mubr.f32.mxu0 0.0
        %2774 = vmatmul.mubr.f32.gmra.mrb[0].mxu0 %v2658
        %v2775 = vpop.f32.mrb[0].mxu0
        %v2776 = vadd.f32 %v2696, %v2775
        %v2777 = vpop.f32.mrb[0].mxu0
        %v2778 = vadd.f32 %v2700, %v2777
        %2779 = vdwg.mxu0
        %v2780 = vadd.f32 %v517, %v2469
        %v2781 = vadd.f32 %v518, %v2471
        %v2782 = vadd.f32 %v519, %v2475
        %v2783 = vadd.f32 %v520, %v2477
        %v2784 = vadd.f32 %v2780, %v2770
        %v2785 = vadd.f32 %v2781, %v2772
        %v2786 = vadd.f32 %v2782, %v2776
        %v2787 = vadd.f32 %v2783, %v2778
        %2788 = vst [vmem:[%s516] sm:$0xff] %v2784
        %2789 = vst [vmem:[%s516 + $0x8] sm:$0xff] %v2785
        %2790 = vst [vmem:[%s516 + $0x10] sm:$0xff] %v2786
        %2791 = vst [vmem:[%s516 + $0x18] sm:$0xff] %v2787
        %s2792 = sand.u32 %s318, 1
        %s2793 = scalar_lea.sflag [#allocation4], %s2792
        %s2794 = sand.u32 %s318, 1
        %s2795 = smul.addr %s2794, 32
        %s2796 = scalar_lea.vmem [#allocation11], %s2795
        // Predicated region
        $region93: #{tpu_custom_call.1} parent=71 // pred_check
          %p2797 = pneg %p328
        $region94: #{tpu_custom_call.1} parent=71 // pred_check_branch
          %2799 = sbr.rel (%p2797) target = $region96
        $region95: #{tpu_custom_call.1} parent=71 // pred_region
          %s2801 = ssub.s32 512, 512
          %2802 = vsyncadd %s2793, %s2801
          %s2803 = smul.addr %s32, 4
          %s2804 = smul.addr %s2803, 128
          %s2805 = scalar_lea.hbm %s13, %s2804
          %s2806 = sshll.u32 %s2796, 4
          %s2807 = int_to_ptr.vmem [resolvable:$true] %s2806
          %2812 = dma.vmem_to_hbm [thread:$0]  %s2807, 512, %s2805, %s2793, 256, 256, 16
        $region96: #{tpu_custom_call.1} parent=71 // pred_fallthru
          _
      $region72: #{tpu_custom_call.1} parent=5 // pred_fallthru
        _
      %p2813 = scmp.le.s32.totalorder 2, %s27
      // Predicated region
      $region97: #{tpu_custom_call.1} parent=5 // pred_check
        %p2814 = pneg %p2813
      $region98: #{tpu_custom_call.1} parent=5 // pred_check_branch
        %2816 = sbr.rel (%p2814) target = $region100
      $region99: #{tpu_custom_call.1} parent=5 // pred_region
        %s2817 = ssub.s32 %s27, 2
        // Predicated region
        $region101: #{tpu_custom_call.1} parent=99 // pred_check
          %p2818 = pneg %p334
        $region102: #{tpu_custom_call.1} parent=99 // pred_check_branch
          %2820 = sbr.rel (%p2818) target = $region104
        $region103: #{tpu_custom_call.1} parent=99 // pred_region
          %s2821 = sand.u32 %s319, 1
          %s2822 = scalar_lea.sflag [#allocation4], %s2821
          %s2823 = sand.u32 %s319, 1
          %s2824 = smul.addr %s2823, 32
          %s2825 = scalar_lea.vmem [#allocation11], %s2824
          %2826 = dma.done %s2822, 512
        $region104: #{tpu_custom_call.1} parent=99 // pred_fallthru
          _
      $region100: #{tpu_custom_call.1} parent=5 // pred_fallthru
        _
    $region6: #{tpu_custom_call.1} parent=1 // loop_footer
      %s31 = sadd.s32 1, %s27
    $region7: #{tpu_custom_call.1} parent=1 // loop_footer_branch
      %26 = sbr.rel target = $region3
    $region8: #{tpu_custom_call.1} parent=1 // loop_exit
      _
    %2827 = vsyncpa [#allocation3], 1
    %s2828 = scalar_lea.sflag [#allocation3], 1
    %2829 = vsyncpa %s2828, 1
    %2830 = vsyncpa [#allocation6], 1
    %2831 = vsyncpa [#allocation9], 1
    %2832 = vsyncpa [#allocation4], 1
    %s2833 = scalar_lea.sflag [#allocation4], 1
    %2834 = vsyncpa %s2833, 1

</llo_original>
